<compile_context>
chip_gen: v5e
topology: v5e:2x2
jax: 0.10.0
libtpu: 0.0.40
codegen_flags: <defaults>
</compile_context>

<pallas_src>
import math

import jax
import jax.numpy as jnp
from jax import lax
from jax.experimental import pallas as pl
from jax.experimental.pallas import tpu as pltpu

PAD = 0  # s2s.Constants.PAD


def _round_up(x, m):
    return ((x + m - 1) // m) * m


# ----------------------------------------------------------------------------
# Pallas kernel: fused bidirectional GRU recurrence, time-chunked, both
# direction chains interleaved per step (ILP on a single TensorCore).
# ----------------------------------------------------------------------------
def _make_bigru_kernel(TT: int, C: int, Hp: int, unroll):
    """grid = (C,) time chunks (axis "arbitrary": hidden state carried in VMEM
    scratch).  The forward chain walks chunk c rows 0..TT-1; the backward
    chain walks chunk C-1-c rows TT-1..0, so at loop step s the two chains are
    fully independent."""

    def kernel(len_ref, gif_ref, gib_ref, whh_ref, bhhn_ref,
               outf_ref, outb_ref, hfin_ref, h_scr):
        c = pl.program_id(0)

        @pl.when(c == 0)
        def _init():
            h_scr[...] = jnp.zeros_like(h_scr)

        lengths = len_ref[...]          # (Bp, 1) int32
        whh_f = whh_ref[0]              # (Hp, 3*Hp) f32, resident weights
        whh_b = whh_ref[1]
        bhh_nf = bhhn_ref[0]            # (1, Hp) hidden bias of the n gate
        bhh_nb = bhhn_ref[1]

        base_f = c * TT                 # global time offset of the fwd chunk
        base_b = (C - 1 - c) * TT       # global time offset of the bwd chunk

        def gru_step(gi, gh, bhh_n, h):
            r = jax.nn.sigmoid(gi[:, 0:Hp] + gh[:, 0:Hp])
            z = jax.nn.sigmoid(gi[:, Hp:2 * Hp] + gh[:, Hp:2 * Hp])
            n = jnp.tanh(gi[:, 2 * Hp:3 * Hp] + r * (gh[:, 2 * Hp:3 * Hp] + bhh_n))
            return (1.0 - z) * n + z * h

        def body(s, carry):
            h_f, h_b = carry
            s_b = TT - 1 - s
            # GI is streamed as bf16 (halves HBM traffic); math stays f32.
            gi_f = gif_ref[s].astype(jnp.float32)        # (Bp, 3*Hp)
            gi_b = gib_ref[s_b].astype(jnp.float32)
            # TODO(synk): weight-stationary MXU (matmul_push_rhs once per
            # chunk) would avoid re-pushing W_hh every step; needs bundle dump
            # validation, so plain jnp.dot (single bf16 pass) is used here.
            gh_f = jnp.dot(h_f, whh_f, preferred_element_type=jnp.float32)
            gh_b = jnp.dot(h_b, whh_b, preferred_element_type=jnp.float32)
            hn_f = gru_step(gi_f, gh_f, bhh_nf, h_f)
            hn_b = gru_step(gi_b, gh_b, bhh_nb, h_b)
            m_f = lengths > (base_f + s)                  # packed-seq masks
            m_b = lengths > (base_b + s_b)
            outf_ref[s] = jnp.where(m_f, hn_f, 0.0)       # pad_packed -> zeros
            outb_ref[s_b] = jnp.where(m_b, hn_b, 0.0)
            # hold h past each sequence's length
            return (jnp.where(m_f, hn_f, h_f), jnp.where(m_b, hn_b, h_b))

        h_f, h_b = lax.fori_loop(0, TT, body, (h_scr[0], h_scr[1]),
                                 unroll=unroll)
        h_scr[0] = h_f
        h_scr[1] = h_b
        # Written every chunk (cheap (2,Bp,Hp) store) so the final-h output
        # never relies on accumulator-finalize writeback timing.
        hfin_ref[0] = h_f
        hfin_ref[1] = h_b

    return kernel


def run_bigru_layer(lengths2d, gi_f, gi_b, whh_all, bhhn_all, *, TT):
    """gi_f / gi_b: (Tp, Bp, 3*Hp) bf16 (fwd / bwd input projections);
    whh_all: (2, Hp, 3*Hp) f32; bhhn_all: (2, 1, Hp) f32.
    Returns (out_f (Tp,Bp,Hp), out_b (Tp,Bp,Hp), h_fin (2,Bp,Hp)), all f32."""
    Tp, Bp, threeHp = gi_f.shape
    Hp = threeHp // 3
    C = Tp // TT
    # Two interleaved chains double per-step register pressure -> modest unroll.
    unroll = True if TT <= 8 else 2

    grid_spec = pltpu.PrefetchScalarGridSpec(
        num_scalar_prefetch=0,
        grid=(C,),
        in_specs=[
            pl.BlockSpec((Bp, 1), lambda c: (0, 0)),                    # lengths
            pl.BlockSpec((TT, Bp, threeHp), lambda c: (c, 0, 0)),       # GI fwd
            pl.BlockSpec((TT, Bp, threeHp), lambda c: (C - 1 - c, 0, 0)),  # GI bwd
            pl.BlockSpec((2, Hp, threeHp), lambda c: (0, 0, 0)),        # W_hh^T
            pl.BlockSpec((2, 1, Hp), lambda c: (0, 0, 0)),              # b_hh (n)
        ],
        out_specs=[
            pl.BlockSpec((TT, Bp, Hp), lambda c: (c, 0, 0)),            # out fwd
            pl.BlockSpec((TT, Bp, Hp), lambda c: (C - 1 - c, 0, 0)),    # out bwd
            pl.BlockSpec((2, Bp, Hp), lambda c: (0, 0, 0)),             # final h
        ],
        scratch_shapes=[pltpu.VMEM((2, Bp, Hp), jnp.float32)],
    )

    out_f, out_b, hfin = pl.pallas_call(
        _make_bigru_kernel(TT, C, Hp, unroll),
        out_shape=(
            jax.ShapeDtypeStruct((Tp, Bp, Hp), jnp.float32),
            jax.ShapeDtypeStruct((Tp, Bp, Hp), jnp.float32),
            jax.ShapeDtypeStruct((2, Bp, Hp), jnp.float32),
        ),
        grid_spec=grid_spec,
        compiler_params=pltpu.CompilerParams(
            dimension_semantics=("arbitrary",),
            vmem_limit_bytes=64 * 1024 * 1024),
    )(lengths2d, gi_f, gi_b, whh_all, bhhn_all)
    return out_f, out_b, hfin


# ----------------------------------------------------------------------------
# Padding helpers (gate blocks 128-lane aligned, batch padded to 8 sublanes)
# ----------------------------------------------------------------------------
def _pad_gates(gi3, Hp):
    """gi3: (Tp, Bp, 3*H) f32 -> (Tp, Bp, 3*Hp) bf16; gate g starts at g*Hp."""
    Tp, Bp, threeH = gi3.shape
    H = threeH // 3
    # TODO(synk): for H < 128 the three gates could be packed into a single
    # 128-lane block (3H lanes) to cut GI HBM traffic ~3x more; kept on the
    # aligned per-gate layout for lowering robustness.
    out = jnp.zeros((Tp, Bp, 3, Hp), jnp.bfloat16)
    out = out.at[:, :, :, :H].set(gi3.reshape(Tp, Bp, 3, H).astype(jnp.bfloat16))
    return out.reshape(Tp, Bp, 3 * Hp)


def _pad_whh(whh_t, Hp):
    """whh_t: (H, 3*H) -> (Hp, 3*Hp), gate blocks 128-aligned, pads zeroed."""
    H = whh_t.shape[0]
    out = jnp.zeros((Hp, 3, Hp), jnp.float32)
    out = out.at[:H, :, :H].set(whh_t.reshape(H, 3, H))
    return out.reshape(Hp, 3 * Hp)


# ----------------------------------------------------------------------------
# Encoder forward (glue in plain JAX)
# ----------------------------------------------------------------------------
def encoder_forward(params, tokens, lengths):
    """tokens: (T, B) int32, lengths: (B,) int32.
    Returns (hidden_t (L*2, B, H), outputs (T, B, 2H)) — matches the module."""
    T, B = tokens.shape
    H = params["layers"][0]["whh_f"].shape[0]
    E = params["word_lut"].shape[1]
    Bp = _round_up(B, 8)        # sublane padding
    Hp = _round_up(H, 128)      # lane padding -> aligned gates, lane-dense stores
    C = (T + 127) // 128        # number of time chunks (TT <= 128 per chunk)
    TT = (T + C - 1) // C
    Tp = TT * C

    lengths2d = jnp.zeros((Bp, 1), jnp.int32).at[:B, 0].set(lengths.astype(jnp.int32))

    emb = params["word_lut"][tokens]                        # (T, B, E); PAD row zeros
    x_pad = jnp.zeros((Tp, Bp, E), jnp.float32).at[:T, :B].set(emb)

    # Padded activation slabs feeding the (hoisted) GI projection of each layer.
    acts = [x_pad]
    hiddens = []
    for li, lp in enumerate(params["layers"]):
        gi_dir, whh_dir, bhhn_dir = [], [], []
        for tag in ("f", "b"):
            wih = lp["wih_" + tag]      # (in_size, 3H)
            whh = lp["whh_" + tag]      # (H, 3H)
            bih = lp["bih_" + tag]      # (3H,)
            bhh = lp["bhh_" + tag]      # (3H,)
            if li == 0:
                ws = [wih]
            else:
                # Consume the padded fwd/bwd slabs directly (no slice+concat):
                # pad the corresponding W_ih row blocks with zeros instead.
                wf = jnp.zeros((Hp, 3 * H), jnp.float32).at[:H].set(wih[:H])
                wb = jnp.zeros((Hp, 3 * H), jnp.float32).at[:H].set(wih[H:])
                ws = [wf, wb]
            # Fold b_ih fully, and b_hh for the r/z gates, into the hoisted
            # input projection; only the n-gate b_hh stays in the kernel.
            bias = bih + jnp.concatenate(
                [bhh[:H], bhh[H:2 * H], jnp.zeros((H,), jnp.float32)])
            gi3 = bias
            for a, w in zip(acts, ws):
                # One large MXU matmul per layer/direction, bf16_3x precision.
                gi3 = gi3 + jnp.einsum("tbk,kg->tbg", a, w,
                                       precision=lax.Precision.HIGH)
            gi_dir.append(_pad_gates(gi3, Hp))      # bf16 in HBM
            whh_dir.append(_pad_whh(whh, Hp))
            bhhn_dir.append(
                jnp.zeros((1, Hp), jnp.float32).at[0, :H].set(bhh[2 * H:]))

        out_f, out_b, hfin = run_bigru_layer(
            lengths2d, gi_dir[0], gi_dir[1],
            jnp.stack(whh_dir, 0), jnp.stack(bhhn_dir, 0), TT=TT)
        hiddens += [hfin[0, :B, :H], hfin[1, :B, :H]]
        acts = [out_f, out_b]
        # TODO(synk): inter-layer dropout skipped (eval-mode / dropout=0.0)

    hidden_t = jnp.stack(hiddens, axis=0)
    outputs = jnp.concatenate([acts[0][:T, :B, :H], acts[1][:T, :B, :H]], axis=-1)
    return hidden_t, outputs


# ----------------------------------------------------------------------------
# Pure-JAX reference (f32, highest-precision matmuls) for correctness check
# ----------------------------------------------------------------------------
def _ref_gru_direction(x, lengths, wih_t, whh_t, bih, bhh, reverse):
    T, B, _ = x.shape
    H = whh_t.shape[0]
    h = jnp.zeros((B, H), jnp.float32)
    outs = [None] * T
    ts = range(T - 1, -1, -1) if reverse else range(T)
    for t in ts:
        gi = jnp.dot(x[t], wih_t, precision=lax.Precision.HIGHEST) + bih
        gh = jnp.dot(h, whh_t, precision=lax.Precision.HIGHEST) + bhh
        r = jax.nn.sigmoid(gi[:, :H] + gh[:, :H])
        z = jax.nn.sigmoid(gi[:, H:2 * H] + gh[:, H:2 * H])
        n = jnp.tanh(gi[:, 2 * H:] + r * gh[:, 2 * H:])
        h_new = (1 - z) * n + z * h
        mask = (lengths > t)[:, None]
        h = jnp.where(mask, h_new, h)
        outs[t] = jnp.where(mask, h_new, 0.0)
    return jnp.stack(outs, 0), h


def _ref_encoder_forward(params, tokens, lengths):
    x = params["word_lut"][tokens]
    hiddens = []
    for lp in params["layers"]:
        of, hf = _ref_gru_direction(x, lengths, lp["wih_f"], lp["whh_f"],
                                    lp["bih_f"], lp["bhh_f"], False)
        ob, hb = _ref_gru_direction(x, lengths, lp["wih_b"], lp["whh_b"],
                                    lp["bih_b"], lp["bhh_b"], True)
        x = jnp.concatenate([of, ob], axis=-1)
        hiddens += [hf, hb]
    return jnp.stack(hiddens, 0), x


# ----------------------------------------------------------------------------
# Deterministic parameter init (shapes from Encoder.__init__)
# ----------------------------------------------------------------------------
def init_params(key, vocab, word_vec_size, enc_rnn_size, layers, brnn=True):
    num_dir = 2 if brnn else 1
    assert enc_rnn_size % num_dir == 0
    H = enc_rnn_size // num_dir
    bound = 1.0 / math.sqrt(H)

    key, k_emb = jax.random.split(key)
    word_lut = jax.random.normal(k_emb, (vocab, word_vec_size), jnp.float32)
    word_lut = word_lut.at[PAD].set(0.0)   # nn.Embedding padding_idx=PAD

    def unif(k, shape):
        return jax.random.uniform(k, shape, jnp.float32, -bound, bound)

    layer_params = []
    in_size = word_vec_size
    for _ in range(layers):
        lp = {}
        for tag in ("f", "b"):
            key, k1, k2, k3, k4 = jax.random.split(key, 5)
            lp["wih_" + tag] = unif(k1, (in_size, 3 * H))   # W_ih^T
            lp["whh_" + tag] = unif(k2, (H, 3 * H))         # W_hh^T
            lp["bih_" + tag] = unif(k3, (3 * H,))
            lp["bhh_" + tag] = unif(k4, (3 * H,))
        layer_params.append(lp)
        in_size = num_dir * H
    return {"word_lut": word_lut, "layers": layer_params}


# ----------------------------------------------------------------------------
if __name__ == "__main__":
    # small "opt": layers=2, brnn=True, word_vec_size=32, enc_rnn_size=64, dropout=0
    VOCAB, E, RNN, LAYERS = 20, 32, 64, 2
    T, B = 8, 2

    key = jax.random.PRNGKey(0)
    params = init_params(key, VOCAB, E, RNN, LAYERS, brnn=True)

    key, k_tok = jax.random.split(key)
    tokens = jax.random.randint(k_tok, (T, B), 1, VOCAB, dtype=jnp.int32)
    lengths = jnp.array([T, 5], dtype=jnp.int32)
    # pad positions beyond each length with PAD token
    t_ids = jnp.arange(T)[:, None]
    tokens = jnp.where(t_ids < lengths[None, :], tokens, PAD)

    hidden_t, outputs = jax.jit(encoder_forward)(params, tokens, lengths)
    jax.block_until_ready((hidden_t, outputs))

    ref_hidden, ref_out = _ref_encoder_forward(params, tokens, lengths)
    assert hidden_t.shape == (LAYERS * 2, B, RNN // 2)
    assert outputs.shape == (T, B, RNN)
    # Tolerance reflects bf16 GI storage + default (bf16 MXU) recurrence matmul
    # vs. the f32 highest-precision reference; real layout/logic bugs give
    # errors O(0.1+).
    err_h = float(jnp.max(jnp.abs(hidden_t - ref_hidden)))
    err_o = float(jnp.max(jnp.abs(outputs - ref_out)))
    assert jnp.allclose(hidden_t, ref_hidden, atol=4e-2), err_h
    assert jnp.allclose(outputs, ref_out, atol=4e-2), err_o

    print("KERNEL_OK")
</pallas_src>

<mosaic_0001>
module attributes {stable_mosaic.version = 11 : i64} {
  func.func @kernel(%arg0: i32, %arg1: memref<8x1xi32, #tpu.memory_space<vmem>>, %arg2: memref<8x8x384xbf16, #tpu.memory_space<vmem>>, %arg3: memref<8x8x384xbf16, #tpu.memory_space<vmem>>, %arg4: memref<2x128x384xf32, #tpu.memory_space<vmem>>, %arg5: memref<2x1x128xf32, #tpu.memory_space<vmem>>, %arg6: memref<8x8x128xf32, #tpu.memory_space<vmem>>, %arg7: memref<8x8x128xf32, #tpu.memory_space<vmem>>, %arg8: memref<2x8x128xf32, #tpu.memory_space<vmem>>, %arg9: memref<2x8x128xf32, #tpu.memory_space<vmem>>) attributes {dimension_semantics = [#tpu.dimension_semantics<arbitrary>], iteration_bounds = array<i64: 1>, scalar_prefetch = 0 : i64, scratch_operands = 1 : i64, tpu.core_type = #tpu.core_type<tc>, window_params = [{pipeline_mode = #tpu.pipeline_mode<synchronous>, transform_indices = @transform_0, window_bounds = array<i64: 8, 1>}, {transform_indices = @transform_1, window_bounds = array<i64: 8, 8, 384>}, {transform_indices = @transform_2, window_bounds = array<i64: 8, 8, 384>}, {pipeline_mode = #tpu.pipeline_mode<synchronous>, transform_indices = @transform_3, window_bounds = array<i64: 2, 128, 384>}, {pipeline_mode = #tpu.pipeline_mode<synchronous>, transform_indices = @transform_4, window_bounds = array<i64: 2, 1, 128>}, {transform_indices = @transform_5, window_bounds = array<i64: 8, 8, 128>}, {transform_indices = @transform_6, window_bounds = array<i64: 8, 8, 128>}, {pipeline_mode = #tpu.pipeline_mode<synchronous>, transform_indices = @transform_7, window_bounds = array<i64: 2, 8, 128>}]} {
    %c0_i32 = arith.constant 0 : i32
    %0 = arith.cmpi eq, %arg0, %c0_i32 : i32
    %1 = arith.extui %0 : i1 to i32
    %c0_i32_0 = arith.constant 0 : i32
    %2 = arith.cmpi ne, %1, %c0_i32_0 : i32
    scf.if %2 {
      %cst_186 = arith.constant 0.000000e+00 : f32
      %791 = vector.broadcast %cst_186 : f32 to vector<2x8x128xf32>
      %c0_187 = arith.constant 0 : index
      %c0_188 = arith.constant 0 : index
      %c0_189 = arith.constant 0 : index
      %792 = vector.load %arg9[%c0_187, %c0_188, %c0_189] : memref<2x8x128xf32, #tpu.memory_space<vmem>>, vector<2x8x128xf32>
      tpu.vector_store %arg9[%c0_187, %c0_188, %c0_189], %791 {strides = array<i32>} : memref<2x8x128xf32, #tpu.memory_space<vmem>>, vector<2x8x128xf32>,
    } else {
    }
    %c0 = arith.constant 0 : index
    %c0_1 = arith.constant 0 : index
    %3 = vector.load %arg1[%c0, %c0_1] : memref<8x1xi32, #tpu.memory_space<vmem>>, vector<8x1xi32>
    %c0_2 = arith.constant 0 : index
    %c0_3 = arith.constant 0 : index
    %c0_4 = arith.constant 0 : index
    %4 = vector.load %arg4[%c0_2, %c0_3, %c0_4] : memref<2x128x384xf32, #tpu.memory_space<vmem>>, vector<1x128x384xf32>
    %5 = vector.shape_cast %4 : vector<1x128x384xf32> to vector<128x384xf32>
    %c1 = arith.constant 1 : index
    %c0_5 = arith.constant 0 : index
    %c0_6 = arith.constant 0 : index
    %6 = vector.load %arg4[%c1, %c0_5, %c0_6] : memref<2x128x384xf32, #tpu.memory_space<vmem>>, vector<1x128x384xf32>
    %7 = vector.shape_cast %6 : vector<1x128x384xf32> to vector<128x384xf32>
    %c0_7 = arith.constant 0 : index
    %c0_8 = arith.constant 0 : index
    %c0_9 = arith.constant 0 : index
    %8 = vector.load %arg5[%c0_7, %c0_8, %c0_9] : memref<2x1x128xf32, #tpu.memory_space<vmem>>, vector<1x1x128xf32>
    %9 = vector.shape_cast %8 : vector<1x1x128xf32> to vector<1x128xf32>
    %c1_10 = arith.constant 1 : index
    %c0_11 = arith.constant 0 : index
    %c0_12 = arith.constant 0 : index
    %10 = vector.load %arg5[%c1_10, %c0_11, %c0_12] : memref<2x1x128xf32, #tpu.memory_space<vmem>>, vector<1x1x128xf32>
    %11 = vector.shape_cast %10 : vector<1x1x128xf32> to vector<1x128xf32>
    %c8_i32 = arith.constant 8 : i32
    %12 = arith.muli %arg0, %c8_i32 : i32
    %c0_i32_13 = arith.constant 0 : i32
    %13 = arith.subi %c0_i32_13, %arg0 : i32
    %c8_i32_14 = arith.constant 8 : i32
    %14 = arith.muli %13, %c8_i32_14 : i32
    %c0_15 = arith.constant 0 : index
    %c0_16 = arith.constant 0 : index
    %c0_17 = arith.constant 0 : index
    %15 = vector.load %arg9[%c0_15, %c0_16, %c0_17] : memref<2x8x128xf32, #tpu.memory_space<vmem>>, vector<1x8x128xf32>
    %16 = vector.shape_cast %15 : vector<1x8x128xf32> to vector<8x128xf32>
    %c1_18 = arith.constant 1 : index
    %c0_19 = arith.constant 0 : index
    %c0_20 = arith.constant 0 : index
    %17 = vector.load %arg9[%c1_18, %c0_19, %c0_20] : memref<2x8x128xf32, #tpu.memory_space<vmem>>, vector<1x8x128xf32>
    %18 = vector.shape_cast %17 : vector<1x8x128xf32> to vector<8x128xf32>
    %c0_i32_21 = arith.constant 0 : i32
    %c7_i32 = arith.constant 7 : i32
    %19 = arith.subi %c7_i32, %c0_i32_21 : i32
    %20 = arith.index_cast %c0_i32_21 : i32 to index
    %c0_22 = arith.constant 0 : index
    %c0_23 = arith.constant 0 : index
    %21 = vector.load %arg2[%20, %c0_22, %c0_23] : memref<8x8x384xbf16, #tpu.memory_space<vmem>>, vector<1x8x384xbf16>
    %22 = vector.shape_cast %21 : vector<1x8x384xbf16> to vector<8x384xbf16>
    %23 = arith.extf %22 : vector<8x384xbf16> to vector<8x384xf32>
    %24 = arith.index_cast %19 : i32 to index
    %c0_24 = arith.constant 0 : index
    %c0_25 = arith.constant 0 : index
    %25 = vector.load %arg3[%24, %c0_24, %c0_25] : memref<8x8x384xbf16, #tpu.memory_space<vmem>>, vector<1x8x384xbf16>
    %26 = vector.shape_cast %25 : vector<1x8x384xbf16> to vector<8x384xbf16>
    %27 = arith.extf %26 : vector<8x384xbf16> to vector<8x384xf32>
    %cst = arith.constant dense<0.000000e+00> : vector<8x384xf32>
    %28 = tpu.matmul %16, %5, %cst {dimension_numbers = #tpu.dot_dimension_numbers<[1], [0], [0], [1], [0, 0, 1, 1], [], []>} : vector<8x128xf32>, vector<128x384xf32>, vector<8x384xf32> -> vector<8x384xf32>
    %cst_26 = arith.constant dense<0.000000e+00> : vector<8x384xf32>
    %29 = tpu.matmul %18, %7, %cst_26 {dimension_numbers = #tpu.dot_dimension_numbers<[1], [0], [0], [1], [0, 0, 1, 1], [], []>} : vector<8x128xf32>, vector<128x384xf32>, vector<8x384xf32> -> vector<8x384xf32>
    %30 = vector.extract_strided_slice %23 {offsets = [0, 0], sizes = [8, 128], strides = [1, 1]} : vector<8x384xf32> to vector<8x128xf32>
    %31 = vector.extract_strided_slice %28 {offsets = [0, 0], sizes = [8, 128], strides = [1, 1]} : vector<8x384xf32> to vector<8x128xf32>
    %32 = arith.addf %30, %31 : vector<8x128xf32>
    %33 = arith.negf %32 : vector<8x128xf32>
    %34 = math.exp %33 : vector<8x128xf32>
    %cst_27 = arith.constant 1.000000e+00 : f32
    %35 = vector.broadcast %cst_27 : f32 to vector<8x128xf32>
    %36 = arith.addf %35, %34 : vector<8x128xf32>
    %37 = arith.divf %35, %36 : vector<8x128xf32>
    %38 = vector.extract_strided_slice %23 {offsets = [0, 128], sizes = [8, 128], strides = [1, 1]} : vector<8x384xf32> to vector<8x128xf32>
    %39 = vector.extract_strided_slice %28 {offsets = [0, 128], sizes = [8, 128], strides = [1, 1]} : vector<8x384xf32> to vector<8x128xf32>
    %40 = arith.addf %38, %39 : vector<8x128xf32>
    %41 = arith.negf %40 : vector<8x128xf32>
    %42 = math.exp %41 : vector<8x128xf32>
    %cst_28 = arith.constant 1.000000e+00 : f32
    %43 = vector.broadcast %cst_28 : f32 to vector<8x128xf32>
    %44 = arith.addf %43, %42 : vector<8x128xf32>
    %45 = arith.divf %43, %44 : vector<8x128xf32>
    %46 = vector.extract_strided_slice %23 {offsets = [0, 256], sizes = [8, 128], strides = [1, 1]} : vector<8x384xf32> to vector<8x128xf32>
    %47 = vector.extract_strided_slice %28 {offsets = [0, 256], sizes = [8, 128], strides = [1, 1]} : vector<8x384xf32> to vector<8x128xf32>
    %48 = vector.broadcast %9 : vector<1x128xf32> to vector<8x128xf32>
    %49 = arith.addf %47, %48 : vector<8x128xf32>
    %50 = arith.mulf %37, %49 : vector<8x128xf32>
    %51 = arith.addf %46, %50 : vector<8x128xf32>
    %52 = math.tanh %51 : vector<8x128xf32>
    %cst_29 = arith.constant 1.000000e+00 : f32
    %53 = vector.broadcast %cst_29 : f32 to vector<8x128xf32>
    %54 = arith.subf %53, %45 : vector<8x128xf32>
    %55 = arith.mulf %54, %52 : vector<8x128xf32>
    %56 = arith.mulf %45, %16 : vector<8x128xf32>
    %57 = arith.addf %55, %56 : vector<8x128xf32>
    %58 = vector.extract_strided_slice %27 {offsets = [0, 0], sizes = [8, 128], strides = [1, 1]} : vector<8x384xf32> to vector<8x128xf32>
    %59 = vector.extract_strided_slice %29 {offsets = [0, 0], sizes = [8, 128], strides = [1, 1]} : vector<8x384xf32> to vector<8x128xf32>
    %60 = arith.addf %58, %59 : vector<8x128xf32>
    %61 = arith.negf %60 : vector<8x128xf32>
    %62 = math.exp %61 : vector<8x128xf32>
    %cst_30 = arith.constant 1.000000e+00 : f32
    %63 = vector.broadcast %cst_30 : f32 to vector<8x128xf32>
    %64 = arith.addf %63, %62 : vector<8x128xf32>
    %65 = arith.divf %63, %64 : vector<8x128xf32>
    %66 = vector.extract_strided_slice %27 {offsets = [0, 128], sizes = [8, 128], strides = [1, 1]} : vector<8x384xf32> to vector<8x128xf32>
    %67 = vector.extract_strided_slice %29 {offsets = [0, 128], sizes = [8, 128], strides = [1, 1]} : vector<8x384xf32> to vector<8x128xf32>
    %68 = arith.addf %66, %67 : vector<8x128xf32>
    %69 = arith.negf %68 : vector<8x128xf32>
    %70 = math.exp %69 : vector<8x128xf32>
    %cst_31 = arith.constant 1.000000e+00 : f32
    %71 = vector.broadcast %cst_31 : f32 to vector<8x128xf32>
    %72 = arith.addf %71, %70 : vector<8x128xf32>
    %73 = arith.divf %71, %72 : vector<8x128xf32>
    %74 = vector.extract_strided_slice %27 {offsets = [0, 256], sizes = [8, 128], strides = [1, 1]} : vector<8x384xf32> to vector<8x128xf32>
    %75 = vector.extract_strided_slice %29 {offsets = [0, 256], sizes = [8, 128], strides = [1, 1]} : vector<8x384xf32> to vector<8x128xf32>
    %76 = vector.broadcast %11 : vector<1x128xf32> to vector<8x128xf32>
    %77 = arith.addf %75, %76 : vector<8x128xf32>
    %78 = arith.mulf %65, %77 : vector<8x128xf32>
    %79 = arith.addf %74, %78 : vector<8x128xf32>
    %80 = math.tanh %79 : vector<8x128xf32>
    %cst_32 = arith.constant 1.000000e+00 : f32
    %81 = vector.broadcast %cst_32 : f32 to vector<8x128xf32>
    %82 = arith.subf %81, %73 : vector<8x128xf32>
    %83 = arith.mulf %82, %80 : vector<8x128xf32>
    %84 = arith.mulf %73, %18 : vector<8x128xf32>
    %85 = arith.addf %83, %84 : vector<8x128xf32>
    %86 = arith.addi %12, %c0_i32_21 : i32
    %87 = vector.broadcast %86 : i32 to vector<8x1xi32>
    %88 = arith.cmpi sgt, %3, %87 : vector<8x1xi32>
    %89 = arith.addi %14, %19 : i32
    %90 = vector.broadcast %89 : i32 to vector<8x1xi32>
    %91 = arith.cmpi sgt, %3, %90 : vector<8x1xi32>
    %cst_33 = arith.constant 0.000000e+00 : f32
    %92 = vector.shape_cast %88 : vector<8x1xi1> to vector<8x1xi1>
    %93 = vector.broadcast %92 : vector<8x1xi1> to vector<8x128xi1>
    %94 = vector.broadcast %cst_33 : f32 to vector<8x128xf32>
    %95 = arith.select %93, %57, %94 : vector<8x128xi1>, vector<8x128xf32>
    %96 = arith.index_cast %c0_i32_21 : i32 to index
    %c0_34 = arith.constant 0 : index
    %c0_35 = arith.constant 0 : index
    %97 = vector.load %arg6[%96, %c0_34, %c0_35] : memref<8x8x128xf32, #tpu.memory_space<vmem>>, vector<1x8x128xf32>
    %98 = vector.shape_cast %97 : vector<1x8x128xf32> to vector<8x128xf32>
    %99 = vector.shape_cast %95 : vector<8x128xf32> to vector<1x8x128xf32>
    tpu.vector_store %arg6[%96, %c0_34, %c0_35], %99 {strides = array<i32>} : memref<8x8x128xf32, #tpu.memory_space<vmem>>, vector<1x8x128xf32>,
    %cst_36 = arith.constant 0.000000e+00 : f32
    %100 = vector.shape_cast %91 : vector<8x1xi1> to vector<8x1xi1>
    %101 = vector.broadcast %100 : vector<8x1xi1> to vector<8x128xi1>
    %102 = vector.broadcast %cst_36 : f32 to vector<8x128xf32>
    %103 = arith.select %101, %85, %102 : vector<8x128xi1>, vector<8x128xf32>
    %104 = arith.index_cast %19 : i32 to index
    %c0_37 = arith.constant 0 : index
    %c0_38 = arith.constant 0 : index
    %105 = vector.load %arg7[%104, %c0_37, %c0_38] : memref<8x8x128xf32, #tpu.memory_space<vmem>>, vector<1x8x128xf32>
    %106 = vector.shape_cast %105 : vector<1x8x128xf32> to vector<8x128xf32>
    %107 = vector.shape_cast %103 : vector<8x128xf32> to vector<1x8x128xf32>
    tpu.vector_store %arg7[%104, %c0_37, %c0_38], %107 {strides = array<i32>} : memref<8x8x128xf32, #tpu.memory_space<vmem>>, vector<1x8x128xf32>,
    %108 = vector.shape_cast %88 : vector<8x1xi1> to vector<8x1xi1>
    %109 = vector.broadcast %108 : vector<8x1xi1> to vector<8x128xi1>
    %110 = arith.select %109, %57, %16 : vector<8x128xi1>, vector<8x128xf32>
    %111 = vector.shape_cast %91 : vector<8x1xi1> to vector<8x1xi1>
    %112 = vector.broadcast %111 : vector<8x1xi1> to vector<8x128xi1>
    %113 = arith.select %112, %85, %18 : vector<8x128xi1>, vector<8x128xf32>
    %c1_i32 = arith.constant 1 : i32
    %c7_i32_39 = arith.constant 7 : i32
    %114 = arith.subi %c7_i32_39, %c1_i32 : i32
    %115 = arith.index_cast %c1_i32 : i32 to index
    %c0_40 = arith.constant 0 : index
    %c0_41 = arith.constant 0 : index
    %116 = vector.load %arg2[%115, %c0_40, %c0_41] : memref<8x8x384xbf16, #tpu.memory_space<vmem>>, vector<1x8x384xbf16>
    %117 = vector.shape_cast %116 : vector<1x8x384xbf16> to vector<8x384xbf16>
    %118 = arith.extf %117 : vector<8x384xbf16> to vector<8x384xf32>
    %119 = arith.index_cast %114 : i32 to index
    %c0_42 = arith.constant 0 : index
    %c0_43 = arith.constant 0 : index
    %120 = vector.load %arg3[%119, %c0_42, %c0_43] : memref<8x8x384xbf16, #tpu.memory_space<vmem>>, vector<1x8x384xbf16>
    %121 = vector.shape_cast %120 : vector<1x8x384xbf16> to vector<8x384xbf16>
    %122 = arith.extf %121 : vector<8x384xbf16> to vector<8x384xf32>
    %cst_44 = arith.constant dense<0.000000e+00> : vector<8x384xf32>
    %123 = tpu.matmul %110, %5, %cst_44 {dimension_numbers = #tpu.dot_dimension_numbers<[1], [0], [0], [1], [0, 0, 1, 1], [], []>} : vector<8x128xf32>, vector<128x384xf32>, vector<8x384xf32> -> vector<8x384xf32>
    %cst_45 = arith.constant dense<0.000000e+00> : vector<8x384xf32>
    %124 = tpu.matmul %113, %7, %cst_45 {dimension_numbers = #tpu.dot_dimension_numbers<[1], [0], [0], [1], [0, 0, 1, 1], [], []>} : vector<8x128xf32>, vector<128x384xf32>, vector<8x384xf32> -> vector<8x384xf32>
    %125 = vector.extract_strided_slice %118 {offsets = [0, 0], sizes = [8, 128], strides = [1, 1]} : vector<8x384xf32> to vector<8x128xf32>
    %126 = vector.extract_strided_slice %123 {offsets = [0, 0], sizes = [8, 128], strides = [1, 1]} : vector<8x384xf32> to vector<8x128xf32>
    %127 = arith.addf %125, %126 : vector<8x128xf32>
    %128 = arith.negf %127 : vector<8x128xf32>
    %129 = math.exp %128 : vector<8x128xf32>
    %cst_46 = arith.constant 1.000000e+00 : f32
    %130 = vector.broadcast %cst_46 : f32 to vector<8x128xf32>
    %131 = arith.addf %130, %129 : vector<8x128xf32>
    %132 = arith.divf %130, %131 : vector<8x128xf32>
    %133 = vector.extract_strided_slice %118 {offsets = [0, 128], sizes = [8, 128], strides = [1, 1]} : vector<8x384xf32> to vector<8x128xf32>
    %134 = vector.extract_strided_slice %123 {offsets = [0, 128], sizes = [8, 128], strides = [1, 1]} : vector<8x384xf32> to vector<8x128xf32>
    %135 = arith.addf %133, %134 : vector<8x128xf32>
    %136 = arith.negf %135 : vector<8x128xf32>
    %137 = math.exp %136 : vector<8x128xf32>
    %cst_47 = arith.constant 1.000000e+00 : f32
    %138 = vector.broadcast %cst_47 : f32 to vector<8x128xf32>
    %139 = arith.addf %138, %137 : vector<8x128xf32>
    %140 = arith.divf %138, %139 : vector<8x128xf32>
    %141 = vector.extract_strided_slice %118 {offsets = [0, 256], sizes = [8, 128], strides = [1, 1]} : vector<8x384xf32> to vector<8x128xf32>
    %142 = vector.extract_strided_slice %123 {offsets = [0, 256], sizes = [8, 128], strides = [1, 1]} : vector<8x384xf32> to vector<8x128xf32>
    %143 = vector.broadcast %9 : vector<1x128xf32> to vector<8x128xf32>
    %144 = arith.addf %142, %143 : vector<8x128xf32>
    %145 = arith.mulf %132, %144 : vector<8x128xf32>
    %146 = arith.addf %141, %145 : vector<8x128xf32>
    %147 = math.tanh %146 : vector<8x128xf32>
    %cst_48 = arith.constant 1.000000e+00 : f32
    %148 = vector.broadcast %cst_48 : f32 to vector<8x128xf32>
    %149 = arith.subf %148, %140 : vector<8x128xf32>
    %150 = arith.mulf %149, %147 : vector<8x128xf32>
    %151 = arith.mulf %140, %110 : vector<8x128xf32>
    %152 = arith.addf %150, %151 : vector<8x128xf32>
    %153 = vector.extract_strided_slice %122 {offsets = [0, 0], sizes = [8, 128], strides = [1, 1]} : vector<8x384xf32> to vector<8x128xf32>
    %154 = vector.extract_strided_slice %124 {offsets = [0, 0], sizes = [8, 128], strides = [1, 1]} : vector<8x384xf32> to vector<8x128xf32>
    %155 = arith.addf %153, %154 : vector<8x128xf32>
    %156 = arith.negf %155 : vector<8x128xf32>
    %157 = math.exp %156 : vector<8x128xf32>
    %cst_49 = arith.constant 1.000000e+00 : f32
    %158 = vector.broadcast %cst_49 : f32 to vector<8x128xf32>
    %159 = arith.addf %158, %157 : vector<8x128xf32>
    %160 = arith.divf %158, %159 : vector<8x128xf32>
    %161 = vector.extract_strided_slice %122 {offsets = [0, 128], sizes = [8, 128], strides = [1, 1]} : vector<8x384xf32> to vector<8x128xf32>
    %162 = vector.extract_strided_slice %124 {offsets = [0, 128], sizes = [8, 128], strides = [1, 1]} : vector<8x384xf32> to vector<8x128xf32>
    %163 = arith.addf %161, %162 : vector<8x128xf32>
    %164 = arith.negf %163 : vector<8x128xf32>
    %165 = math.exp %164 : vector<8x128xf32>
    %cst_50 = arith.constant 1.000000e+00 : f32
    %166 = vector.broadcast %cst_50 : f32 to vector<8x128xf32>
    %167 = arith.addf %166, %165 : vector<8x128xf32>
    %168 = arith.divf %166, %167 : vector<8x128xf32>
    %169 = vector.extract_strided_slice %122 {offsets = [0, 256], sizes = [8, 128], strides = [1, 1]} : vector<8x384xf32> to vector<8x128xf32>
    %170 = vector.extract_strided_slice %124 {offsets = [0, 256], sizes = [8, 128], strides = [1, 1]} : vector<8x384xf32> to vector<8x128xf32>
    %171 = vector.broadcast %11 : vector<1x128xf32> to vector<8x128xf32>
    %172 = arith.addf %170, %171 : vector<8x128xf32>
    %173 = arith.mulf %160, %172 : vector<8x128xf32>
    %174 = arith.addf %169, %173 : vector<8x128xf32>
    %175 = math.tanh %174 : vector<8x128xf32>
    %cst_51 = arith.constant 1.000000e+00 : f32
    %176 = vector.broadcast %cst_51 : f32 to vector<8x128xf32>
    %177 = arith.subf %176, %168 : vector<8x128xf32>
    %178 = arith.mulf %177, %175 : vector<8x128xf32>
    %179 = arith.mulf %168, %113 : vector<8x128xf32>
    %180 = arith.addf %178, %179 : vector<8x128xf32>
    %181 = arith.addi %12, %c1_i32 : i32
    %182 = vector.broadcast %181 : i32 to vector<8x1xi32>
    %183 = arith.cmpi sgt, %3, %182 : vector<8x1xi32>
    %184 = arith.addi %14, %114 : i32
    %185 = vector.broadcast %184 : i32 to vector<8x1xi32>
    %186 = arith.cmpi sgt, %3, %185 : vector<8x1xi32>
    %cst_52 = arith.constant 0.000000e+00 : f32
    %187 = vector.shape_cast %183 : vector<8x1xi1> to vector<8x1xi1>
    %188 = vector.broadcast %187 : vector<8x1xi1> to vector<8x128xi1>
    %189 = vector.broadcast %cst_52 : f32 to vector<8x128xf32>
    %190 = arith.select %188, %152, %189 : vector<8x128xi1>, vector<8x128xf32>
    %191 = arith.index_cast %c1_i32 : i32 to index
    %c0_53 = arith.constant 0 : index
    %c0_54 = arith.constant 0 : index
    %192 = vector.load %arg6[%191, %c0_53, %c0_54] : memref<8x8x128xf32, #tpu.memory_space<vmem>>, vector<1x8x128xf32>
    %193 = vector.shape_cast %192 : vector<1x8x128xf32> to vector<8x128xf32>
    %194 = vector.shape_cast %190 : vector<8x128xf32> to vector<1x8x128xf32>
    tpu.vector_store %arg6[%191, %c0_53, %c0_54], %194 {strides = array<i32>} : memref<8x8x128xf32, #tpu.memory_space<vmem>>, vector<1x8x128xf32>,
    %cst_55 = arith.constant 0.000000e+00 : f32
    %195 = vector.shape_cast %186 : vector<8x1xi1> to vector<8x1xi1>
    %196 = vector.broadcast %195 : vector<8x1xi1> to vector<8x128xi1>
    %197 = vector.broadcast %cst_55 : f32 to vector<8x128xf32>
    %198 = arith.select %196, %180, %197 : vector<8x128xi1>, vector<8x128xf32>
    %199 = arith.index_cast %114 : i32 to index
    %c0_56 = arith.constant 0 : index
    %c0_57 = arith.constant 0 : index
    %200 = vector.load %arg7[%199, %c0_56, %c0_57] : memref<8x8x128xf32, #tpu.memory_space<vmem>>, vector<1x8x128xf32>
    %201 = vector.shape_cast %200 : vector<1x8x128xf32> to vector<8x128xf32>
    %202 = vector.shape_cast %198 : vector<8x128xf32> to vector<1x8x128xf32>
    tpu.vector_store %arg7[%199, %c0_56, %c0_57], %202 {strides = array<i32>} : memref<8x8x128xf32, #tpu.memory_space<vmem>>, vector<1x8x128xf32>,
    %203 = vector.shape_cast %183 : vector<8x1xi1> to vector<8x1xi1>
    %204 = vector.broadcast %203 : vector<8x1xi1> to vector<8x128xi1>
    %205 = arith.select %204, %152, %110 : vector<8x128xi1>, vector<8x128xf32>
    %206 = vector.shape_cast %186 : vector<8x1xi1> to vector<8x1xi1>
    %207 = vector.broadcast %206 : vector<8x1xi1> to vector<8x128xi1>
    %208 = arith.select %207, %180, %113 : vector<8x128xi1>, vector<8x128xf32>
    %c2_i32 = arith.constant 2 : i32
    %c7_i32_58 = arith.constant 7 : i32
    %209 = arith.subi %c7_i32_58, %c2_i32 : i32
    %210 = arith.index_cast %c2_i32 : i32 to index
    %c0_59 = arith.constant 0 : index
    %c0_60 = arith.constant 0 : index
    %211 = vector.load %arg2[%210, %c0_59, %c0_60] : memref<8x8x384xbf16, #tpu.memory_space<vmem>>, vector<1x8x384xbf16>
    %212 = vector.shape_cast %211 : vector<1x8x384xbf16> to vector<8x384xbf16>
    %213 = arith.extf %212 : vector<8x384xbf16> to vector<8x384xf32>
    %214 = arith.index_cast %209 : i32 to index
    %c0_61 = arith.constant 0 : index
    %c0_62 = arith.constant 0 : index
    %215 = vector.load %arg3[%214, %c0_61, %c0_62] : memref<8x8x384xbf16, #tpu.memory_space<vmem>>, vector<1x8x384xbf16>
    %216 = vector.shape_cast %215 : vector<1x8x384xbf16> to vector<8x384xbf16>
    %217 = arith.extf %216 : vector<8x384xbf16> to vector<8x384xf32>
    %cst_63 = arith.constant dense<0.000000e+00> : vector<8x384xf32>
    %218 = tpu.matmul %205, %5, %cst_63 {dimension_numbers = #tpu.dot_dimension_numbers<[1], [0], [0], [1], [0, 0, 1, 1], [], []>} : vector<8x128xf32>, vector<128x384xf32>, vector<8x384xf32> -> vector<8x384xf32>
    %cst_64 = arith.constant dense<0.000000e+00> : vector<8x384xf32>
    %219 = tpu.matmul %208, %7, %cst_64 {dimension_numbers = #tpu.dot_dimension_numbers<[1], [0], [0], [1], [0, 0, 1, 1], [], []>} : vector<8x128xf32>, vector<128x384xf32>, vector<8x384xf32> -> vector<8x384xf32>
    %220 = vector.extract_strided_slice %213 {offsets = [0, 0], sizes = [8, 128], strides = [1, 1]} : vector<8x384xf32> to vector<8x128xf32>
    %221 = vector.extract_strided_slice %218 {offsets = [0, 0], sizes = [8, 128], strides = [1, 1]} : vector<8x384xf32> to vector<8x128xf32>
    %222 = arith.addf %220, %221 : vector<8x128xf32>
    %223 = arith.negf %222 : vector<8x128xf32>
    %224 = math.exp %223 : vector<8x128xf32>
    %cst_65 = arith.constant 1.000000e+00 : f32
    %225 = vector.broadcast %cst_65 : f32 to vector<8x128xf32>
    %226 = arith.addf %225, %224 : vector<8x128xf32>
    %227 = arith.divf %225, %226 : vector<8x128xf32>
    %228 = vector.extract_strided_slice %213 {offsets = [0, 128], sizes = [8, 128], strides = [1, 1]} : vector<8x384xf32> to vector<8x128xf32>
    %229 = vector.extract_strided_slice %218 {offsets = [0, 128], sizes = [8, 128], strides = [1, 1]} : vector<8x384xf32> to vector<8x128xf32>
    %230 = arith.addf %228, %229 : vector<8x128xf32>
    %231 = arith.negf %230 : vector<8x128xf32>
    %232 = math.exp %231 : vector<8x128xf32>
    %cst_66 = arith.constant 1.000000e+00 : f32
    %233 = vector.broadcast %cst_66 : f32 to vector<8x128xf32>
    %234 = arith.addf %233, %232 : vector<8x128xf32>
    %235 = arith.divf %233, %234 : vector<8x128xf32>
    %236 = vector.extract_strided_slice %213 {offsets = [0, 256], sizes = [8, 128], strides = [1, 1]} : vector<8x384xf32> to vector<8x128xf32>
    %237 = vector.extract_strided_slice %218 {offsets = [0, 256], sizes = [8, 128], strides = [1, 1]} : vector<8x384xf32> to vector<8x128xf32>
    %238 = vector.broadcast %9 : vector<1x128xf32> to vector<8x128xf32>
    %239 = arith.addf %237, %238 : vector<8x128xf32>
    %240 = arith.mulf %227, %239 : vector<8x128xf32>
    %241 = arith.addf %236, %240 : vector<8x128xf32>
    %242 = math.tanh %241 : vector<8x128xf32>
    %cst_67 = arith.constant 1.000000e+00 : f32
    %243 = vector.broadcast %cst_67 : f32 to vector<8x128xf32>
    %244 = arith.subf %243, %235 : vector<8x128xf32>
    %245 = arith.mulf %244, %242 : vector<8x128xf32>
    %246 = arith.mulf %235, %205 : vector<8x128xf32>
    %247 = arith.addf %245, %246 : vector<8x128xf32>
    %248 = vector.extract_strided_slice %217 {offsets = [0, 0], sizes = [8, 128], strides = [1, 1]} : vector<8x384xf32> to vector<8x128xf32>
    %249 = vector.extract_strided_slice %219 {offsets = [0, 0], sizes = [8, 128], strides = [1, 1]} : vector<8x384xf32> to vector<8x128xf32>
    %250 = arith.addf %248, %249 : vector<8x128xf32>
    %251 = arith.negf %250 : vector<8x128xf32>
    %252 = math.exp %251 : vector<8x128xf32>
    %cst_68 = arith.constant 1.000000e+00 : f32
    %253 = vector.broadcast %cst_68 : f32 to vector<8x128xf32>
    %254 = arith.addf %253, %252 : vector<8x128xf32>
    %255 = arith.divf %253, %254 : vector<8x128xf32>
    %256 = vector.extract_strided_slice %217 {offsets = [0, 128], sizes = [8, 128], strides = [1, 1]} : vector<8x384xf32> to vector<8x128xf32>
    %257 = vector.extract_strided_slice %219 {offsets = [0, 128], sizes = [8, 128], strides = [1, 1]} : vector<8x384xf32> to vector<8x128xf32>
    %258 = arith.addf %256, %257 : vector<8x128xf32>
    %259 = arith.negf %258 : vector<8x128xf32>
    %260 = math.exp %259 : vector<8x128xf32>
    %cst_69 = arith.constant 1.000000e+00 : f32
    %261 = vector.broadcast %cst_69 : f32 to vector<8x128xf32>
    %262 = arith.addf %261, %260 : vector<8x128xf32>
    %263 = arith.divf %261, %262 : vector<8x128xf32>
    %264 = vector.extract_strided_slice %217 {offsets = [0, 256], sizes = [8, 128], strides = [1, 1]} : vector<8x384xf32> to vector<8x128xf32>
    %265 = vector.extract_strided_slice %219 {offsets = [0, 256], sizes = [8, 128], strides = [1, 1]} : vector<8x384xf32> to vector<8x128xf32>
    %266 = vector.broadcast %11 : vector<1x128xf32> to vector<8x128xf32>
    %267 = arith.addf %265, %266 : vector<8x128xf32>
    %268 = arith.mulf %255, %267 : vector<8x128xf32>
    %269 = arith.addf %264, %268 : vector<8x128xf32>
    %270 = math.tanh %269 : vector<8x128xf32>
    %cst_70 = arith.constant 1.000000e+00 : f32
    %271 = vector.broadcast %cst_70 : f32 to vector<8x128xf32>
    %272 = arith.subf %271, %263 : vector<8x128xf32>
    %273 = arith.mulf %272, %270 : vector<8x128xf32>
    %274 = arith.mulf %263, %208 : vector<8x128xf32>
    %275 = arith.addf %273, %274 : vector<8x128xf32>
    %276 = arith.addi %12, %c2_i32 : i32
    %277 = vector.broadcast %276 : i32 to vector<8x1xi32>
    %278 = arith.cmpi sgt, %3, %277 : vector<8x1xi32>
    %279 = arith.addi %14, %209 : i32
    %280 = vector.broadcast %279 : i32 to vector<8x1xi32>
    %281 = arith.cmpi sgt, %3, %280 : vector<8x1xi32>
    %cst_71 = arith.constant 0.000000e+00 : f32
    %282 = vector.shape_cast %278 : vector<8x1xi1> to vector<8x1xi1>
    %283 = vector.broadcast %282 : vector<8x1xi1> to vector<8x128xi1>
    %284 = vector.broadcast %cst_71 : f32 to vector<8x128xf32>
    %285 = arith.select %283, %247, %284 : vector<8x128xi1>, vector<8x128xf32>
    %286 = arith.index_cast %c2_i32 : i32 to index
    %c0_72 = arith.constant 0 : index
    %c0_73 = arith.constant 0 : index
    %287 = vector.load %arg6[%286, %c0_72, %c0_73] : memref<8x8x128xf32, #tpu.memory_space<vmem>>, vector<1x8x128xf32>
    %288 = vector.shape_cast %287 : vector<1x8x128xf32> to vector<8x128xf32>
    %289 = vector.shape_cast %285 : vector<8x128xf32> to vector<1x8x128xf32>
    tpu.vector_store %arg6[%286, %c0_72, %c0_73], %289 {strides = array<i32>} : memref<8x8x128xf32, #tpu.memory_space<vmem>>, vector<1x8x128xf32>,
    %cst_74 = arith.constant 0.000000e+00 : f32
    %290 = vector.shape_cast %281 : vector<8x1xi1> to vector<8x1xi1>
    %291 = vector.broadcast %290 : vector<8x1xi1> to vector<8x128xi1>
    %292 = vector.broadcast %cst_74 : f32 to vector<8x128xf32>
    %293 = arith.select %291, %275, %292 : vector<8x128xi1>, vector<8x128xf32>
    %294 = arith.index_cast %209 : i32 to index
    %c0_75 = arith.constant 0 : index
    %c0_76 = arith.constant 0 : index
    %295 = vector.load %arg7[%294, %c0_75, %c0_76] : memref<8x8x128xf32, #tpu.memory_space<vmem>>, vector<1x8x128xf32>
    %296 = vector.shape_cast %295 : vector<1x8x128xf32> to vector<8x128xf32>
    %297 = vector.shape_cast %293 : vector<8x128xf32> to vector<1x8x128xf32>
    tpu.vector_store %arg7[%294, %c0_75, %c0_76], %297 {strides = array<i32>} : memref<8x8x128xf32, #tpu.memory_space<vmem>>, vector<1x8x128xf32>,
    %298 = vector.shape_cast %278 : vector<8x1xi1> to vector<8x1xi1>
    %299 = vector.broadcast %298 : vector<8x1xi1> to vector<8x128xi1>
    %300 = arith.select %299, %247, %205 : vector<8x128xi1>, vector<8x128xf32>
    %301 = vector.shape_cast %281 : vector<8x1xi1> to vector<8x1xi1>
    %302 = vector.broadcast %301 : vector<8x1xi1> to vector<8x128xi1>
    %303 = arith.select %302, %275, %208 : vector<8x128xi1>, vector<8x128xf32>
    %c3_i32 = arith.constant 3 : i32
    %c7_i32_77 = arith.constant 7 : i32
    %304 = arith.subi %c7_i32_77, %c3_i32 : i32
    %305 = arith.index_cast %c3_i32 : i32 to index
    %c0_78 = arith.constant 0 : index
    %c0_79 = arith.constant 0 : index
    %306 = vector.load %arg2[%305, %c0_78, %c0_79] : memref<8x8x384xbf16, #tpu.memory_space<vmem>>, vector<1x8x384xbf16>
    %307 = vector.shape_cast %306 : vector<1x8x384xbf16> to vector<8x384xbf16>
    %308 = arith.extf %307 : vector<8x384xbf16> to vector<8x384xf32>
    %309 = arith.index_cast %304 : i32 to index
    %c0_80 = arith.constant 0 : index
    %c0_81 = arith.constant 0 : index
    %310 = vector.load %arg3[%309, %c0_80, %c0_81] : memref<8x8x384xbf16, #tpu.memory_space<vmem>>, vector<1x8x384xbf16>
    %311 = vector.shape_cast %310 : vector<1x8x384xbf16> to vector<8x384xbf16>
    %312 = arith.extf %311 : vector<8x384xbf16> to vector<8x384xf32>
    %cst_82 = arith.constant dense<0.000000e+00> : vector<8x384xf32>
    %313 = tpu.matmul %300, %5, %cst_82 {dimension_numbers = #tpu.dot_dimension_numbers<[1], [0], [0], [1], [0, 0, 1, 1], [], []>} : vector<8x128xf32>, vector<128x384xf32>, vector<8x384xf32> -> vector<8x384xf32>
    %cst_83 = arith.constant dense<0.000000e+00> : vector<8x384xf32>
    %314 = tpu.matmul %303, %7, %cst_83 {dimension_numbers = #tpu.dot_dimension_numbers<[1], [0], [0], [1], [0, 0, 1, 1], [], []>} : vector<8x128xf32>, vector<128x384xf32>, vector<8x384xf32> -> vector<8x384xf32>
    %315 = vector.extract_strided_slice %308 {offsets = [0, 0], sizes = [8, 128], strides = [1, 1]} : vector<8x384xf32> to vector<8x128xf32>
    %316 = vector.extract_strided_slice %313 {offsets = [0, 0], sizes = [8, 128], strides = [1, 1]} : vector<8x384xf32> to vector<8x128xf32>
    %317 = arith.addf %315, %316 : vector<8x128xf32>
    %318 = arith.negf %317 : vector<8x128xf32>
    %319 = math.exp %318 : vector<8x128xf32>
    %cst_84 = arith.constant 1.000000e+00 : f32
    %320 = vector.broadcast %cst_84 : f32 to vector<8x128xf32>
    %321 = arith.addf %320, %319 : vector<8x128xf32>
    %322 = arith.divf %320, %321 : vector<8x128xf32>
    %323 = vector.extract_strided_slice %308 {offsets = [0, 128], sizes = [8, 128], strides = [1, 1]} : vector<8x384xf32> to vector<8x128xf32>
    %324 = vector.extract_strided_slice %313 {offsets = [0, 128], sizes = [8, 128], strides = [1, 1]} : vector<8x384xf32> to vector<8x128xf32>
    %325 = arith.addf %323, %324 : vector<8x128xf32>
    %326 = arith.negf %325 : vector<8x128xf32>
    %327 = math.exp %326 : vector<8x128xf32>
    %cst_85 = arith.constant 1.000000e+00 : f32
    %328 = vector.broadcast %cst_85 : f32 to vector<8x128xf32>
    %329 = arith.addf %328, %327 : vector<8x128xf32>
    %330 = arith.divf %328, %329 : vector<8x128xf32>
    %331 = vector.extract_strided_slice %308 {offsets = [0, 256], sizes = [8, 128], strides = [1, 1]} : vector<8x384xf32> to vector<8x128xf32>
    %332 = vector.extract_strided_slice %313 {offsets = [0, 256], sizes = [8, 128], strides = [1, 1]} : vector<8x384xf32> to vector<8x128xf32>
    %333 = vector.broadcast %9 : vector<1x128xf32> to vector<8x128xf32>
    %334 = arith.addf %332, %333 : vector<8x128xf32>
    %335 = arith.mulf %322, %334 : vector<8x128xf32>
    %336 = arith.addf %331, %335 : vector<8x128xf32>
    %337 = math.tanh %336 : vector<8x128xf32>
    %cst_86 = arith.constant 1.000000e+00 : f32
    %338 = vector.broadcast %cst_86 : f32 to vector<8x128xf32>
    %339 = arith.subf %338, %330 : vector<8x128xf32>
    %340 = arith.mulf %339, %337 : vector<8x128xf32>
    %341 = arith.mulf %330, %300 : vector<8x128xf32>
    %342 = arith.addf %340, %341 : vector<8x128xf32>
    %343 = vector.extract_strided_slice %312 {offsets = [0, 0], sizes = [8, 128], strides = [1, 1]} : vector<8x384xf32> to vector<8x128xf32>
    %344 = vector.extract_strided_slice %314 {offsets = [0, 0], sizes = [8, 128], strides = [1, 1]} : vector<8x384xf32> to vector<8x128xf32>
    %345 = arith.addf %343, %344 : vector<8x128xf32>
    %346 = arith.negf %345 : vector<8x128xf32>
    %347 = math.exp %346 : vector<8x128xf32>
    %cst_87 = arith.constant 1.000000e+00 : f32
    %348 = vector.broadcast %cst_87 : f32 to vector<8x128xf32>
    %349 = arith.addf %348, %347 : vector<8x128xf32>
    %350 = arith.divf %348, %349 : vector<8x128xf32>
    %351 = vector.extract_strided_slice %312 {offsets = [0, 128], sizes = [8, 128], strides = [1, 1]} : vector<8x384xf32> to vector<8x128xf32>
    %352 = vector.extract_strided_slice %314 {offsets = [0, 128], sizes = [8, 128], strides = [1, 1]} : vector<8x384xf32> to vector<8x128xf32>
    %353 = arith.addf %351, %352 : vector<8x128xf32>
    %354 = arith.negf %353 : vector<8x128xf32>
    %355 = math.exp %354 : vector<8x128xf32>
    %cst_88 = arith.constant 1.000000e+00 : f32
    %356 = vector.broadcast %cst_88 : f32 to vector<8x128xf32>
    %357 = arith.addf %356, %355 : vector<8x128xf32>
    %358 = arith.divf %356, %357 : vector<8x128xf32>
    %359 = vector.extract_strided_slice %312 {offsets = [0, 256], sizes = [8, 128], strides = [1, 1]} : vector<8x384xf32> to vector<8x128xf32>
    %360 = vector.extract_strided_slice %314 {offsets = [0, 256], sizes = [8, 128], strides = [1, 1]} : vector<8x384xf32> to vector<8x128xf32>
    %361 = vector.broadcast %11 : vector<1x128xf32> to vector<8x128xf32>
    %362 = arith.addf %360, %361 : vector<8x128xf32>
    %363 = arith.mulf %350, %362 : vector<8x128xf32>
    %364 = arith.addf %359, %363 : vector<8x128xf32>
    %365 = math.tanh %364 : vector<8x128xf32>
    %cst_89 = arith.constant 1.000000e+00 : f32
    %366 = vector.broadcast %cst_89 : f32 to vector<8x128xf32>
    %367 = arith.subf %366, %358 : vector<8x128xf32>
    %368 = arith.mulf %367, %365 : vector<8x128xf32>
    %369 = arith.mulf %358, %303 : vector<8x128xf32>
    %370 = arith.addf %368, %369 : vector<8x128xf32>
    %371 = arith.addi %12, %c3_i32 : i32
    %372 = vector.broadcast %371 : i32 to vector<8x1xi32>
    %373 = arith.cmpi sgt, %3, %372 : vector<8x1xi32>
    %374 = arith.addi %14, %304 : i32
    %375 = vector.broadcast %374 : i32 to vector<8x1xi32>
    %376 = arith.cmpi sgt, %3, %375 : vector<8x1xi32>
    %cst_90 = arith.constant 0.000000e+00 : f32
    %377 = vector.shape_cast %373 : vector<8x1xi1> to vector<8x1xi1>
    %378 = vector.broadcast %377 : vector<8x1xi1> to vector<8x128xi1>
    %379 = vector.broadcast %cst_90 : f32 to vector<8x128xf32>
    %380 = arith.select %378, %342, %379 : vector<8x128xi1>, vector<8x128xf32>
    %381 = arith.index_cast %c3_i32 : i32 to index
    %c0_91 = arith.constant 0 : index
    %c0_92 = arith.constant 0 : index
    %382 = vector.load %arg6[%381, %c0_91, %c0_92] : memref<8x8x128xf32, #tpu.memory_space<vmem>>, vector<1x8x128xf32>
    %383 = vector.shape_cast %382 : vector<1x8x128xf32> to vector<8x128xf32>
    %384 = vector.shape_cast %380 : vector<8x128xf32> to vector<1x8x128xf32>
    tpu.vector_store %arg6[%381, %c0_91, %c0_92], %384 {strides = array<i32>} : memref<8x8x128xf32, #tpu.memory_space<vmem>>, vector<1x8x128xf32>,
    %cst_93 = arith.constant 0.000000e+00 : f32
    %385 = vector.shape_cast %376 : vector<8x1xi1> to vector<8x1xi1>
    %386 = vector.broadcast %385 : vector<8x1xi1> to vector<8x128xi1>
    %387 = vector.broadcast %cst_93 : f32 to vector<8x128xf32>
    %388 = arith.select %386, %370, %387 : vector<8x128xi1>, vector<8x128xf32>
    %389 = arith.index_cast %304 : i32 to index
    %c0_94 = arith.constant 0 : index
    %c0_95 = arith.constant 0 : index
    %390 = vector.load %arg7[%389, %c0_94, %c0_95] : memref<8x8x128xf32, #tpu.memory_space<vmem>>, vector<1x8x128xf32>
    %391 = vector.shape_cast %390 : vector<1x8x128xf32> to vector<8x128xf32>
    %392 = vector.shape_cast %388 : vector<8x128xf32> to vector<1x8x128xf32>
    tpu.vector_store %arg7[%389, %c0_94, %c0_95], %392 {strides = array<i32>} : memref<8x8x128xf32, #tpu.memory_space<vmem>>, vector<1x8x128xf32>,
    %393 = vector.shape_cast %373 : vector<8x1xi1> to vector<8x1xi1>
    %394 = vector.broadcast %393 : vector<8x1xi1> to vector<8x128xi1>
    %395 = arith.select %394, %342, %300 : vector<8x128xi1>, vector<8x128xf32>
    %396 = vector.shape_cast %376 : vector<8x1xi1> to vector<8x1xi1>
    %397 = vector.broadcast %396 : vector<8x1xi1> to vector<8x128xi1>
    %398 = arith.select %397, %370, %303 : vector<8x128xi1>, vector<8x128xf32>
    %c4_i32 = arith.constant 4 : i32
    %c7_i32_96 = arith.constant 7 : i32
    %399 = arith.subi %c7_i32_96, %c4_i32 : i32
    %400 = arith.index_cast %c4_i32 : i32 to index
    %c0_97 = arith.constant 0 : index
    %c0_98 = arith.constant 0 : index
    %401 = vector.load %arg2[%400, %c0_97, %c0_98] : memref<8x8x384xbf16, #tpu.memory_space<vmem>>, vector<1x8x384xbf16>
    %402 = vector.shape_cast %401 : vector<1x8x384xbf16> to vector<8x384xbf16>
    %403 = arith.extf %402 : vector<8x384xbf16> to vector<8x384xf32>
    %404 = arith.index_cast %399 : i32 to index
    %c0_99 = arith.constant 0 : index
    %c0_100 = arith.constant 0 : index
    %405 = vector.load %arg3[%404, %c0_99, %c0_100] : memref<8x8x384xbf16, #tpu.memory_space<vmem>>, vector<1x8x384xbf16>
    %406 = vector.shape_cast %405 : vector<1x8x384xbf16> to vector<8x384xbf16>
    %407 = arith.extf %406 : vector<8x384xbf16> to vector<8x384xf32>
    %cst_101 = arith.constant dense<0.000000e+00> : vector<8x384xf32>
    %408 = tpu.matmul %395, %5, %cst_101 {dimension_numbers = #tpu.dot_dimension_numbers<[1], [0], [0], [1], [0, 0, 1, 1], [], []>} : vector<8x128xf32>, vector<128x384xf32>, vector<8x384xf32> -> vector<8x384xf32>
    %cst_102 = arith.constant dense<0.000000e+00> : vector<8x384xf32>
    %409 = tpu.matmul %398, %7, %cst_102 {dimension_numbers = #tpu.dot_dimension_numbers<[1], [0], [0], [1], [0, 0, 1, 1], [], []>} : vector<8x128xf32>, vector<128x384xf32>, vector<8x384xf32> -> vector<8x384xf32>
    %410 = vector.extract_strided_slice %403 {offsets = [0, 0], sizes = [8, 128], strides = [1, 1]} : vector<8x384xf32> to vector<8x128xf32>
    %411 = vector.extract_strided_slice %408 {offsets = [0, 0], sizes = [8, 128], strides = [1, 1]} : vector<8x384xf32> to vector<8x128xf32>
    %412 = arith.addf %410, %411 : vector<8x128xf32>
    %413 = arith.negf %412 : vector<8x128xf32>
    %414 = math.exp %413 : vector<8x128xf32>
    %cst_103 = arith.constant 1.000000e+00 : f32
    %415 = vector.broadcast %cst_103 : f32 to vector<8x128xf32>
    %416 = arith.addf %415, %414 : vector<8x128xf32>
    %417 = arith.divf %415, %416 : vector<8x128xf32>
    %418 = vector.extract_strided_slice %403 {offsets = [0, 128], sizes = [8, 128], strides = [1, 1]} : vector<8x384xf32> to vector<8x128xf32>
    %419 = vector.extract_strided_slice %408 {offsets = [0, 128], sizes = [8, 128], strides = [1, 1]} : vector<8x384xf32> to vector<8x128xf32>
    %420 = arith.addf %418, %419 : vector<8x128xf32>
    %421 = arith.negf %420 : vector<8x128xf32>
    %422 = math.exp %421 : vector<8x128xf32>
    %cst_104 = arith.constant 1.000000e+00 : f32
    %423 = vector.broadcast %cst_104 : f32 to vector<8x128xf32>
    %424 = arith.addf %423, %422 : vector<8x128xf32>
    %425 = arith.divf %423, %424 : vector<8x128xf32>
    %426 = vector.extract_strided_slice %403 {offsets = [0, 256], sizes = [8, 128], strides = [1, 1]} : vector<8x384xf32> to vector<8x128xf32>
    %427 = vector.extract_strided_slice %408 {offsets = [0, 256], sizes = [8, 128], strides = [1, 1]} : vector<8x384xf32> to vector<8x128xf32>
    %428 = vector.broadcast %9 : vector<1x128xf32> to vector<8x128xf32>
    %429 = arith.addf %427, %428 : vector<8x128xf32>
    %430 = arith.mulf %417, %429 : vector<8x128xf32>
    %431 = arith.addf %426, %430 : vector<8x128xf32>
    %432 = math.tanh %431 : vector<8x128xf32>
    %cst_105 = arith.constant 1.000000e+00 : f32
    %433 = vector.broadcast %cst_105 : f32 to vector<8x128xf32>
    %434 = arith.subf %433, %425 : vector<8x128xf32>
    %435 = arith.mulf %434, %432 : vector<8x128xf32>
    %436 = arith.mulf %425, %395 : vector<8x128xf32>
    %437 = arith.addf %435, %436 : vector<8x128xf32>
    %438 = vector.extract_strided_slice %407 {offsets = [0, 0], sizes = [8, 128], strides = [1, 1]} : vector<8x384xf32> to vector<8x128xf32>
    %439 = vector.extract_strided_slice %409 {offsets = [0, 0], sizes = [8, 128], strides = [1, 1]} : vector<8x384xf32> to vector<8x128xf32>
    %440 = arith.addf %438, %439 : vector<8x128xf32>
    %441 = arith.negf %440 : vector<8x128xf32>
    %442 = math.exp %441 : vector<8x128xf32>
    %cst_106 = arith.constant 1.000000e+00 : f32
    %443 = vector.broadcast %cst_106 : f32 to vector<8x128xf32>
    %444 = arith.addf %443, %442 : vector<8x128xf32>
    %445 = arith.divf %443, %444 : vector<8x128xf32>
    %446 = vector.extract_strided_slice %407 {offsets = [0, 128], sizes = [8, 128], strides = [1, 1]} : vector<8x384xf32> to vector<8x128xf32>
    %447 = vector.extract_strided_slice %409 {offsets = [0, 128], sizes = [8, 128], strides = [1, 1]} : vector<8x384xf32> to vector<8x128xf32>
    %448 = arith.addf %446, %447 : vector<8x128xf32>
    %449 = arith.negf %448 : vector<8x128xf32>
    %450 = math.exp %449 : vector<8x128xf32>
    %cst_107 = arith.constant 1.000000e+00 : f32
    %451 = vector.broadcast %cst_107 : f32 to vector<8x128xf32>
    %452 = arith.addf %451, %450 : vector<8x128xf32>
    %453 = arith.divf %451, %452 : vector<8x128xf32>
    %454 = vector.extract_strided_slice %407 {offsets = [0, 256], sizes = [8, 128], strides = [1, 1]} : vector<8x384xf32> to vector<8x128xf32>
    %455 = vector.extract_strided_slice %409 {offsets = [0, 256], sizes = [8, 128], strides = [1, 1]} : vector<8x384xf32> to vector<8x128xf32>
    %456 = vector.broadcast %11 : vector<1x128xf32> to vector<8x128xf32>
    %457 = arith.addf %455, %456 : vector<8x128xf32>
    %458 = arith.mulf %445, %457 : vector<8x128xf32>
    %459 = arith.addf %454, %458 : vector<8x128xf32>
    %460 = math.tanh %459 : vector<8x128xf32>
    %cst_108 = arith.constant 1.000000e+00 : f32
    %461 = vector.broadcast %cst_108 : f32 to vector<8x128xf32>
    %462 = arith.subf %461, %453 : vector<8x128xf32>
    %463 = arith.mulf %462, %460 : vector<8x128xf32>
    %464 = arith.mulf %453, %398 : vector<8x128xf32>
    %465 = arith.addf %463, %464 : vector<8x128xf32>
    %466 = arith.addi %12, %c4_i32 : i32
    %467 = vector.broadcast %466 : i32 to vector<8x1xi32>
    %468 = arith.cmpi sgt, %3, %467 : vector<8x1xi32>
    %469 = arith.addi %14, %399 : i32
    %470 = vector.broadcast %469 : i32 to vector<8x1xi32>
    %471 = arith.cmpi sgt, %3, %470 : vector<8x1xi32>
    %cst_109 = arith.constant 0.000000e+00 : f32
    %472 = vector.shape_cast %468 : vector<8x1xi1> to vector<8x1xi1>
    %473 = vector.broadcast %472 : vector<8x1xi1> to vector<8x128xi1>
    %474 = vector.broadcast %cst_109 : f32 to vector<8x128xf32>
    %475 = arith.select %473, %437, %474 : vector<8x128xi1>, vector<8x128xf32>
    %476 = arith.index_cast %c4_i32 : i32 to index
    %c0_110 = arith.constant 0 : index
    %c0_111 = arith.constant 0 : index
    %477 = vector.load %arg6[%476, %c0_110, %c0_111] : memref<8x8x128xf32, #tpu.memory_space<vmem>>, vector<1x8x128xf32>
    %478 = vector.shape_cast %477 : vector<1x8x128xf32> to vector<8x128xf32>
    %479 = vector.shape_cast %475 : vector<8x128xf32> to vector<1x8x128xf32>
    tpu.vector_store %arg6[%476, %c0_110, %c0_111], %479 {strides = array<i32>} : memref<8x8x128xf32, #tpu.memory_space<vmem>>, vector<1x8x128xf32>,
    %cst_112 = arith.constant 0.000000e+00 : f32
    %480 = vector.shape_cast %471 : vector<8x1xi1> to vector<8x1xi1>
    %481 = vector.broadcast %480 : vector<8x1xi1> to vector<8x128xi1>
    %482 = vector.broadcast %cst_112 : f32 to vector<8x128xf32>
    %483 = arith.select %481, %465, %482 : vector<8x128xi1>, vector<8x128xf32>
    %484 = arith.index_cast %399 : i32 to index
    %c0_113 = arith.constant 0 : index
    %c0_114 = arith.constant 0 : index
    %485 = vector.load %arg7[%484, %c0_113, %c0_114] : memref<8x8x128xf32, #tpu.memory_space<vmem>>, vector<1x8x128xf32>
    %486 = vector.shape_cast %485 : vector<1x8x128xf32> to vector<8x128xf32>
    %487 = vector.shape_cast %483 : vector<8x128xf32> to vector<1x8x128xf32>
    tpu.vector_store %arg7[%484, %c0_113, %c0_114], %487 {strides = array<i32>} : memref<8x8x128xf32, #tpu.memory_space<vmem>>, vector<1x8x128xf32>,
    %488 = vector.shape_cast %468 : vector<8x1xi1> to vector<8x1xi1>
    %489 = vector.broadcast %488 : vector<8x1xi1> to vector<8x128xi1>
    %490 = arith.select %489, %437, %395 : vector<8x128xi1>, vector<8x128xf32>
    %491 = vector.shape_cast %471 : vector<8x1xi1> to vector<8x1xi1>
    %492 = vector.broadcast %491 : vector<8x1xi1> to vector<8x128xi1>
    %493 = arith.select %492, %465, %398 : vector<8x128xi1>, vector<8x128xf32>
    %c5_i32 = arith.constant 5 : i32
    %c7_i32_115 = arith.constant 7 : i32
    %494 = arith.subi %c7_i32_115, %c5_i32 : i32
    %495 = arith.index_cast %c5_i32 : i32 to index
    %c0_116 = arith.constant 0 : index
    %c0_117 = arith.constant 0 : index
    %496 = vector.load %arg2[%495, %c0_116, %c0_117] : memref<8x8x384xbf16, #tpu.memory_space<vmem>>, vector<1x8x384xbf16>
    %497 = vector.shape_cast %496 : vector<1x8x384xbf16> to vector<8x384xbf16>
    %498 = arith.extf %497 : vector<8x384xbf16> to vector<8x384xf32>
    %499 = arith.index_cast %494 : i32 to index
    %c0_118 = arith.constant 0 : index
    %c0_119 = arith.constant 0 : index
    %500 = vector.load %arg3[%499, %c0_118, %c0_119] : memref<8x8x384xbf16, #tpu.memory_space<vmem>>, vector<1x8x384xbf16>
    %501 = vector.shape_cast %500 : vector<1x8x384xbf16> to vector<8x384xbf16>
    %502 = arith.extf %501 : vector<8x384xbf16> to vector<8x384xf32>
    %cst_120 = arith.constant dense<0.000000e+00> : vector<8x384xf32>
    %503 = tpu.matmul %490, %5, %cst_120 {dimension_numbers = #tpu.dot_dimension_numbers<[1], [0], [0], [1], [0, 0, 1, 1], [], []>} : vector<8x128xf32>, vector<128x384xf32>, vector<8x384xf32> -> vector<8x384xf32>
    %cst_121 = arith.constant dense<0.000000e+00> : vector<8x384xf32>
    %504 = tpu.matmul %493, %7, %cst_121 {dimension_numbers = #tpu.dot_dimension_numbers<[1], [0], [0], [1], [0, 0, 1, 1], [], []>} : vector<8x128xf32>, vector<128x384xf32>, vector<8x384xf32> -> vector<8x384xf32>
    %505 = vector.extract_strided_slice %498 {offsets = [0, 0], sizes = [8, 128], strides = [1, 1]} : vector<8x384xf32> to vector<8x128xf32>
    %506 = vector.extract_strided_slice %503 {offsets = [0, 0], sizes = [8, 128], strides = [1, 1]} : vector<8x384xf32> to vector<8x128xf32>
    %507 = arith.addf %505, %506 : vector<8x128xf32>
    %508 = arith.negf %507 : vector<8x128xf32>
    %509 = math.exp %508 : vector<8x128xf32>
    %cst_122 = arith.constant 1.000000e+00 : f32
    %510 = vector.broadcast %cst_122 : f32 to vector<8x128xf32>
    %511 = arith.addf %510, %509 : vector<8x128xf32>
    %512 = arith.divf %510, %511 : vector<8x128xf32>
    %513 = vector.extract_strided_slice %498 {offsets = [0, 128], sizes = [8, 128], strides = [1, 1]} : vector<8x384xf32> to vector<8x128xf32>
    %514 = vector.extract_strided_slice %503 {offsets = [0, 128], sizes = [8, 128], strides = [1, 1]} : vector<8x384xf32> to vector<8x128xf32>
    %515 = arith.addf %513, %514 : vector<8x128xf32>
    %516 = arith.negf %515 : vector<8x128xf32>
    %517 = math.exp %516 : vector<8x128xf32>
    %cst_123 = arith.constant 1.000000e+00 : f32
    %518 = vector.broadcast %cst_123 : f32 to vector<8x128xf32>
    %519 = arith.addf %518, %517 : vector<8x128xf32>
    %520 = arith.divf %518, %519 : vector<8x128xf32>
    %521 = vector.extract_strided_slice %498 {offsets = [0, 256], sizes = [8, 128], strides = [1, 1]} : vector<8x384xf32> to vector<8x128xf32>
    %522 = vector.extract_strided_slice %503 {offsets = [0, 256], sizes = [8, 128], strides = [1, 1]} : vector<8x384xf32> to vector<8x128xf32>
    %523 = vector.broadcast %9 : vector<1x128xf32> to vector<8x128xf32>
    %524 = arith.addf %522, %523 : vector<8x128xf32>
    %525 = arith.mulf %512, %524 : vector<8x128xf32>
    %526 = arith.addf %521, %525 : vector<8x128xf32>
    %527 = math.tanh %526 : vector<8x128xf32>
    %cst_124 = arith.constant 1.000000e+00 : f32
    %528 = vector.broadcast %cst_124 : f32 to vector<8x128xf32>
    %529 = arith.subf %528, %520 : vector<8x128xf32>
    %530 = arith.mulf %529, %527 : vector<8x128xf32>
    %531 = arith.mulf %520, %490 : vector<8x128xf32>
    %532 = arith.addf %530, %531 : vector<8x128xf32>
    %533 = vector.extract_strided_slice %502 {offsets = [0, 0], sizes = [8, 128], strides = [1, 1]} : vector<8x384xf32> to vector<8x128xf32>
    %534 = vector.extract_strided_slice %504 {offsets = [0, 0], sizes = [8, 128], strides = [1, 1]} : vector<8x384xf32> to vector<8x128xf32>
    %535 = arith.addf %533, %534 : vector<8x128xf32>
    %536 = arith.negf %535 : vector<8x128xf32>
    %537 = math.exp %536 : vector<8x128xf32>
    %cst_125 = arith.constant 1.000000e+00 : f32
    %538 = vector.broadcast %cst_125 : f32 to vector<8x128xf32>
    %539 = arith.addf %538, %537 : vector<8x128xf32>
    %540 = arith.divf %538, %539 : vector<8x128xf32>
    %541 = vector.extract_strided_slice %502 {offsets = [0, 128], sizes = [8, 128], strides = [1, 1]} : vector<8x384xf32> to vector<8x128xf32>
    %542 = vector.extract_strided_slice %504 {offsets = [0, 128], sizes = [8, 128], strides = [1, 1]} : vector<8x384xf32> to vector<8x128xf32>
    %543 = arith.addf %541, %542 : vector<8x128xf32>
    %544 = arith.negf %543 : vector<8x128xf32>
    %545 = math.exp %544 : vector<8x128xf32>
    %cst_126 = arith.constant 1.000000e+00 : f32
    %546 = vector.broadcast %cst_126 : f32 to vector<8x128xf32>
    %547 = arith.addf %546, %545 : vector<8x128xf32>
    %548 = arith.divf %546, %547 : vector<8x128xf32>
    %549 = vector.extract_strided_slice %502 {offsets = [0, 256], sizes = [8, 128], strides = [1, 1]} : vector<8x384xf32> to vector<8x128xf32>
    %550 = vector.extract_strided_slice %504 {offsets = [0, 256], sizes = [8, 128], strides = [1, 1]} : vector<8x384xf32> to vector<8x128xf32>
    %551 = vector.broadcast %11 : vector<1x128xf32> to vector<8x128xf32>
    %552 = arith.addf %550, %551 : vector<8x128xf32>
    %553 = arith.mulf %540, %552 : vector<8x128xf32>
    %554 = arith.addf %549, %553 : vector<8x128xf32>
    %555 = math.tanh %554 : vector<8x128xf32>
    %cst_127 = arith.constant 1.000000e+00 : f32
    %556 = vector.broadcast %cst_127 : f32 to vector<8x128xf32>
    %557 = arith.subf %556, %548 : vector<8x128xf32>
    %558 = arith.mulf %557, %555 : vector<8x128xf32>
    %559 = arith.mulf %548, %493 : vector<8x128xf32>
    %560 = arith.addf %558, %559 : vector<8x128xf32>
    %561 = arith.addi %12, %c5_i32 : i32
    %562 = vector.broadcast %561 : i32 to vector<8x1xi32>
    %563 = arith.cmpi sgt, %3, %562 : vector<8x1xi32>
    %564 = arith.addi %14, %494 : i32
    %565 = vector.broadcast %564 : i32 to vector<8x1xi32>
    %566 = arith.cmpi sgt, %3, %565 : vector<8x1xi32>
    %cst_128 = arith.constant 0.000000e+00 : f32
    %567 = vector.shape_cast %563 : vector<8x1xi1> to vector<8x1xi1>
    %568 = vector.broadcast %567 : vector<8x1xi1> to vector<8x128xi1>
    %569 = vector.broadcast %cst_128 : f32 to vector<8x128xf32>
    %570 = arith.select %568, %532, %569 : vector<8x128xi1>, vector<8x128xf32>
    %571 = arith.index_cast %c5_i32 : i32 to index
    %c0_129 = arith.constant 0 : index
    %c0_130 = arith.constant 0 : index
    %572 = vector.load %arg6[%571, %c0_129, %c0_130] : memref<8x8x128xf32, #tpu.memory_space<vmem>>, vector<1x8x128xf32>
    %573 = vector.shape_cast %572 : vector<1x8x128xf32> to vector<8x128xf32>
    %574 = vector.shape_cast %570 : vector<8x128xf32> to vector<1x8x128xf32>
    tpu.vector_store %arg6[%571, %c0_129, %c0_130], %574 {strides = array<i32>} : memref<8x8x128xf32, #tpu.memory_space<vmem>>, vector<1x8x128xf32>,
    %cst_131 = arith.constant 0.000000e+00 : f32
    %575 = vector.shape_cast %566 : vector<8x1xi1> to vector<8x1xi1>
    %576 = vector.broadcast %575 : vector<8x1xi1> to vector<8x128xi1>
    %577 = vector.broadcast %cst_131 : f32 to vector<8x128xf32>
    %578 = arith.select %576, %560, %577 : vector<8x128xi1>, vector<8x128xf32>
    %579 = arith.index_cast %494 : i32 to index
    %c0_132 = arith.constant 0 : index
    %c0_133 = arith.constant 0 : index
    %580 = vector.load %arg7[%579, %c0_132, %c0_133] : memref<8x8x128xf32, #tpu.memory_space<vmem>>, vector<1x8x128xf32>
    %581 = vector.shape_cast %580 : vector<1x8x128xf32> to vector<8x128xf32>
    %582 = vector.shape_cast %578 : vector<8x128xf32> to vector<1x8x128xf32>
    tpu.vector_store %arg7[%579, %c0_132, %c0_133], %582 {strides = array<i32>} : memref<8x8x128xf32, #tpu.memory_space<vmem>>, vector<1x8x128xf32>,
    %583 = vector.shape_cast %563 : vector<8x1xi1> to vector<8x1xi1>
    %584 = vector.broadcast %583 : vector<8x1xi1> to vector<8x128xi1>
    %585 = arith.select %584, %532, %490 : vector<8x128xi1>, vector<8x128xf32>
    %586 = vector.shape_cast %566 : vector<8x1xi1> to vector<8x1xi1>
    %587 = vector.broadcast %586 : vector<8x1xi1> to vector<8x128xi1>
    %588 = arith.select %587, %560, %493 : vector<8x128xi1>, vector<8x128xf32>
    %c6_i32 = arith.constant 6 : i32
    %c7_i32_134 = arith.constant 7 : i32
    %589 = arith.subi %c7_i32_134, %c6_i32 : i32
    %590 = arith.index_cast %c6_i32 : i32 to index
    %c0_135 = arith.constant 0 : index
    %c0_136 = arith.constant 0 : index
    %591 = vector.load %arg2[%590, %c0_135, %c0_136] : memref<8x8x384xbf16, #tpu.memory_space<vmem>>, vector<1x8x384xbf16>
    %592 = vector.shape_cast %591 : vector<1x8x384xbf16> to vector<8x384xbf16>
    %593 = arith.extf %592 : vector<8x384xbf16> to vector<8x384xf32>
    %594 = arith.index_cast %589 : i32 to index
    %c0_137 = arith.constant 0 : index
    %c0_138 = arith.constant 0 : index
    %595 = vector.load %arg3[%594, %c0_137, %c0_138] : memref<8x8x384xbf16, #tpu.memory_space<vmem>>, vector<1x8x384xbf16>
    %596 = vector.shape_cast %595 : vector<1x8x384xbf16> to vector<8x384xbf16>
    %597 = arith.extf %596 : vector<8x384xbf16> to vector<8x384xf32>
    %cst_139 = arith.constant dense<0.000000e+00> : vector<8x384xf32>
    %598 = tpu.matmul %585, %5, %cst_139 {dimension_numbers = #tpu.dot_dimension_numbers<[1], [0], [0], [1], [0, 0, 1, 1], [], []>} : vector<8x128xf32>, vector<128x384xf32>, vector<8x384xf32> -> vector<8x384xf32>
    %cst_140 = arith.constant dense<0.000000e+00> : vector<8x384xf32>
    %599 = tpu.matmul %588, %7, %cst_140 {dimension_numbers = #tpu.dot_dimension_numbers<[1], [0], [0], [1], [0, 0, 1, 1], [], []>} : vector<8x128xf32>, vector<128x384xf32>, vector<8x384xf32> -> vector<8x384xf32>
    %600 = vector.extract_strided_slice %593 {offsets = [0, 0], sizes = [8, 128], strides = [1, 1]} : vector<8x384xf32> to vector<8x128xf32>
    %601 = vector.extract_strided_slice %598 {offsets = [0, 0], sizes = [8, 128], strides = [1, 1]} : vector<8x384xf32> to vector<8x128xf32>
    %602 = arith.addf %600, %601 : vector<8x128xf32>
    %603 = arith.negf %602 : vector<8x128xf32>
    %604 = math.exp %603 : vector<8x128xf32>
    %cst_141 = arith.constant 1.000000e+00 : f32
    %605 = vector.broadcast %cst_141 : f32 to vector<8x128xf32>
    %606 = arith.addf %605, %604 : vector<8x128xf32>
    %607 = arith.divf %605, %606 : vector<8x128xf32>
    %608 = vector.extract_strided_slice %593 {offsets = [0, 128], sizes = [8, 128], strides = [1, 1]} : vector<8x384xf32> to vector<8x128xf32>
    %609 = vector.extract_strided_slice %598 {offsets = [0, 128], sizes = [8, 128], strides = [1, 1]} : vector<8x384xf32> to vector<8x128xf32>
    %610 = arith.addf %608, %609 : vector<8x128xf32>
    %611 = arith.negf %610 : vector<8x128xf32>
    %612 = math.exp %611 : vector<8x128xf32>
    %cst_142 = arith.constant 1.000000e+00 : f32
    %613 = vector.broadcast %cst_142 : f32 to vector<8x128xf32>
    %614 = arith.addf %613, %612 : vector<8x128xf32>
    %615 = arith.divf %613, %614 : vector<8x128xf32>
    %616 = vector.extract_strided_slice %593 {offsets = [0, 256], sizes = [8, 128], strides = [1, 1]} : vector<8x384xf32> to vector<8x128xf32>
    %617 = vector.extract_strided_slice %598 {offsets = [0, 256], sizes = [8, 128], strides = [1, 1]} : vector<8x384xf32> to vector<8x128xf32>
    %618 = vector.broadcast %9 : vector<1x128xf32> to vector<8x128xf32>
    %619 = arith.addf %617, %618 : vector<8x128xf32>
    %620 = arith.mulf %607, %619 : vector<8x128xf32>
    %621 = arith.addf %616, %620 : vector<8x128xf32>
    %622 = math.tanh %621 : vector<8x128xf32>
    %cst_143 = arith.constant 1.000000e+00 : f32
    %623 = vector.broadcast %cst_143 : f32 to vector<8x128xf32>
    %624 = arith.subf %623, %615 : vector<8x128xf32>
    %625 = arith.mulf %624, %622 : vector<8x128xf32>
    %626 = arith.mulf %615, %585 : vector<8x128xf32>
    %627 = arith.addf %625, %626 : vector<8x128xf32>
    %628 = vector.extract_strided_slice %597 {offsets = [0, 0], sizes = [8, 128], strides = [1, 1]} : vector<8x384xf32> to vector<8x128xf32>
    %629 = vector.extract_strided_slice %599 {offsets = [0, 0], sizes = [8, 128], strides = [1, 1]} : vector<8x384xf32> to vector<8x128xf32>
    %630 = arith.addf %628, %629 : vector<8x128xf32>
    %631 = arith.negf %630 : vector<8x128xf32>
    %632 = math.exp %631 : vector<8x128xf32>
    %cst_144 = arith.constant 1.000000e+00 : f32
    %633 = vector.broadcast %cst_144 : f32 to vector<8x128xf32>
    %634 = arith.addf %633, %632 : vector<8x128xf32>
    %635 = arith.divf %633, %634 : vector<8x128xf32>
    %636 = vector.extract_strided_slice %597 {offsets = [0, 128], sizes = [8, 128], strides = [1, 1]} : vector<8x384xf32> to vector<8x128xf32>
    %637 = vector.extract_strided_slice %599 {offsets = [0, 128], sizes = [8, 128], strides = [1, 1]} : vector<8x384xf32> to vector<8x128xf32>
    %638 = arith.addf %636, %637 : vector<8x128xf32>
    %639 = arith.negf %638 : vector<8x128xf32>
    %640 = math.exp %639 : vector<8x128xf32>
    %cst_145 = arith.constant 1.000000e+00 : f32
    %641 = vector.broadcast %cst_145 : f32 to vector<8x128xf32>
    %642 = arith.addf %641, %640 : vector<8x128xf32>
    %643 = arith.divf %641, %642 : vector<8x128xf32>
    %644 = vector.extract_strided_slice %597 {offsets = [0, 256], sizes = [8, 128], strides = [1, 1]} : vector<8x384xf32> to vector<8x128xf32>
    %645 = vector.extract_strided_slice %599 {offsets = [0, 256], sizes = [8, 128], strides = [1, 1]} : vector<8x384xf32> to vector<8x128xf32>
    %646 = vector.broadcast %11 : vector<1x128xf32> to vector<8x128xf32>
    %647 = arith.addf %645, %646 : vector<8x128xf32>
    %648 = arith.mulf %635, %647 : vector<8x128xf32>
    %649 = arith.addf %644, %648 : vector<8x128xf32>
    %650 = math.tanh %649 : vector<8x128xf32>
    %cst_146 = arith.constant 1.000000e+00 : f32
    %651 = vector.broadcast %cst_146 : f32 to vector<8x128xf32>
    %652 = arith.subf %651, %643 : vector<8x128xf32>
    %653 = arith.mulf %652, %650 : vector<8x128xf32>
    %654 = arith.mulf %643, %588 : vector<8x128xf32>
    %655 = arith.addf %653, %654 : vector<8x128xf32>
    %656 = arith.addi %12, %c6_i32 : i32
    %657 = vector.broadcast %656 : i32 to vector<8x1xi32>
    %658 = arith.cmpi sgt, %3, %657 : vector<8x1xi32>
    %659 = arith.addi %14, %589 : i32
    %660 = vector.broadcast %659 : i32 to vector<8x1xi32>
    %661 = arith.cmpi sgt, %3, %660 : vector<8x1xi32>
    %cst_147 = arith.constant 0.000000e+00 : f32
    %662 = vector.shape_cast %658 : vector<8x1xi1> to vector<8x1xi1>
    %663 = vector.broadcast %662 : vector<8x1xi1> to vector<8x128xi1>
    %664 = vector.broadcast %cst_147 : f32 to vector<8x128xf32>
    %665 = arith.select %663, %627, %664 : vector<8x128xi1>, vector<8x128xf32>
    %666 = arith.index_cast %c6_i32 : i32 to index
    %c0_148 = arith.constant 0 : index
    %c0_149 = arith.constant 0 : index
    %667 = vector.load %arg6[%666, %c0_148, %c0_149] : memref<8x8x128xf32, #tpu.memory_space<vmem>>, vector<1x8x128xf32>
    %668 = vector.shape_cast %667 : vector<1x8x128xf32> to vector<8x128xf32>
    %669 = vector.shape_cast %665 : vector<8x128xf32> to vector<1x8x128xf32>
    tpu.vector_store %arg6[%666, %c0_148, %c0_149], %669 {strides = array<i32>} : memref<8x8x128xf32, #tpu.memory_space<vmem>>, vector<1x8x128xf32>,
    %cst_150 = arith.constant 0.000000e+00 : f32
    %670 = vector.shape_cast %661 : vector<8x1xi1> to vector<8x1xi1>
    %671 = vector.broadcast %670 : vector<8x1xi1> to vector<8x128xi1>
    %672 = vector.broadcast %cst_150 : f32 to vector<8x128xf32>
    %673 = arith.select %671, %655, %672 : vector<8x128xi1>, vector<8x128xf32>
    %674 = arith.index_cast %589 : i32 to index
    %c0_151 = arith.constant 0 : index
    %c0_152 = arith.constant 0 : index
    %675 = vector.load %arg7[%674, %c0_151, %c0_152] : memref<8x8x128xf32, #tpu.memory_space<vmem>>, vector<1x8x128xf32>
    %676 = vector.shape_cast %675 : vector<1x8x128xf32> to vector<8x128xf32>
    %677 = vector.shape_cast %673 : vector<8x128xf32> to vector<1x8x128xf32>
    tpu.vector_store %arg7[%674, %c0_151, %c0_152], %677 {strides = array<i32>} : memref<8x8x128xf32, #tpu.memory_space<vmem>>, vector<1x8x128xf32>,
    %678 = vector.shape_cast %658 : vector<8x1xi1> to vector<8x1xi1>
    %679 = vector.broadcast %678 : vector<8x1xi1> to vector<8x128xi1>
    %680 = arith.select %679, %627, %585 : vector<8x128xi1>, vector<8x128xf32>
    %681 = vector.shape_cast %661 : vector<8x1xi1> to vector<8x1xi1>
    %682 = vector.broadcast %681 : vector<8x1xi1> to vector<8x128xi1>
    %683 = arith.select %682, %655, %588 : vector<8x128xi1>, vector<8x128xf32>
    %c7_i32_153 = arith.constant 7 : i32
    %c7_i32_154 = arith.constant 7 : i32
    %684 = arith.subi %c7_i32_154, %c7_i32_153 : i32
    %685 = arith.index_cast %c7_i32_153 : i32 to index
    %c0_155 = arith.constant 0 : index
    %c0_156 = arith.constant 0 : index
    %686 = vector.load %arg2[%685, %c0_155, %c0_156] : memref<8x8x384xbf16, #tpu.memory_space<vmem>>, vector<1x8x384xbf16>
    %687 = vector.shape_cast %686 : vector<1x8x384xbf16> to vector<8x384xbf16>
    %688 = arith.extf %687 : vector<8x384xbf16> to vector<8x384xf32>
    %689 = arith.index_cast %684 : i32 to index
    %c0_157 = arith.constant 0 : index
    %c0_158 = arith.constant 0 : index
    %690 = vector.load %arg3[%689, %c0_157, %c0_158] : memref<8x8x384xbf16, #tpu.memory_space<vmem>>, vector<1x8x384xbf16>
    %691 = vector.shape_cast %690 : vector<1x8x384xbf16> to vector<8x384xbf16>
    %692 = arith.extf %691 : vector<8x384xbf16> to vector<8x384xf32>
    %cst_159 = arith.constant dense<0.000000e+00> : vector<8x384xf32>
    %693 = tpu.matmul %680, %5, %cst_159 {dimension_numbers = #tpu.dot_dimension_numbers<[1], [0], [0], [1], [0, 0, 1, 1], [], []>} : vector<8x128xf32>, vector<128x384xf32>, vector<8x384xf32> -> vector<8x384xf32>
    %cst_160 = arith.constant dense<0.000000e+00> : vector<8x384xf32>
    %694 = tpu.matmul %683, %7, %cst_160 {dimension_numbers = #tpu.dot_dimension_numbers<[1], [0], [0], [1], [0, 0, 1, 1], [], []>} : vector<8x128xf32>, vector<128x384xf32>, vector<8x384xf32> -> vector<8x384xf32>
    %695 = vector.extract_strided_slice %688 {offsets = [0, 0], sizes = [8, 128], strides = [1, 1]} : vector<8x384xf32> to vector<8x128xf32>
    %696 = vector.extract_strided_slice %693 {offsets = [0, 0], sizes = [8, 128], strides = [1, 1]} : vector<8x384xf32> to vector<8x128xf32>
    %697 = arith.addf %695, %696 : vector<8x128xf32>
    %698 = arith.negf %697 : vector<8x128xf32>
    %699 = math.exp %698 : vector<8x128xf32>
    %cst_161 = arith.constant 1.000000e+00 : f32
    %700 = vector.broadcast %cst_161 : f32 to vector<8x128xf32>
    %701 = arith.addf %700, %699 : vector<8x128xf32>
    %702 = arith.divf %700, %701 : vector<8x128xf32>
    %703 = vector.extract_strided_slice %688 {offsets = [0, 128], sizes = [8, 128], strides = [1, 1]} : vector<8x384xf32> to vector<8x128xf32>
    %704 = vector.extract_strided_slice %693 {offsets = [0, 128], sizes = [8, 128], strides = [1, 1]} : vector<8x384xf32> to vector<8x128xf32>
    %705 = arith.addf %703, %704 : vector<8x128xf32>
    %706 = arith.negf %705 : vector<8x128xf32>
    %707 = math.exp %706 : vector<8x128xf32>
    %cst_162 = arith.constant 1.000000e+00 : f32
    %708 = vector.broadcast %cst_162 : f32 to vector<8x128xf32>
    %709 = arith.addf %708, %707 : vector<8x128xf32>
    %710 = arith.divf %708, %709 : vector<8x128xf32>
    %711 = vector.extract_strided_slice %688 {offsets = [0, 256], sizes = [8, 128], strides = [1, 1]} : vector<8x384xf32> to vector<8x128xf32>
    %712 = vector.extract_strided_slice %693 {offsets = [0, 256], sizes = [8, 128], strides = [1, 1]} : vector<8x384xf32> to vector<8x128xf32>
    %713 = vector.broadcast %9 : vector<1x128xf32> to vector<8x128xf32>
    %714 = arith.addf %712, %713 : vector<8x128xf32>
    %715 = arith.mulf %702, %714 : vector<8x128xf32>
    %716 = arith.addf %711, %715 : vector<8x128xf32>
    %717 = math.tanh %716 : vector<8x128xf32>
    %cst_163 = arith.constant 1.000000e+00 : f32
    %718 = vector.broadcast %cst_163 : f32 to vector<8x128xf32>
    %719 = arith.subf %718, %710 : vector<8x128xf32>
    %720 = arith.mulf %719, %717 : vector<8x128xf32>
    %721 = arith.mulf %710, %680 : vector<8x128xf32>
    %722 = arith.addf %720, %721 : vector<8x128xf32>
    %723 = vector.extract_strided_slice %692 {offsets = [0, 0], sizes = [8, 128], strides = [1, 1]} : vector<8x384xf32> to vector<8x128xf32>
    %724 = vector.extract_strided_slice %694 {offsets = [0, 0], sizes = [8, 128], strides = [1, 1]} : vector<8x384xf32> to vector<8x128xf32>
    %725 = arith.addf %723, %724 : vector<8x128xf32>
    %726 = arith.negf %725 : vector<8x128xf32>
    %727 = math.exp %726 : vector<8x128xf32>
    %cst_164 = arith.constant 1.000000e+00 : f32
    %728 = vector.broadcast %cst_164 : f32 to vector<8x128xf32>
    %729 = arith.addf %728, %727 : vector<8x128xf32>
    %730 = arith.divf %728, %729 : vector<8x128xf32>
    %731 = vector.extract_strided_slice %692 {offsets = [0, 128], sizes = [8, 128], strides = [1, 1]} : vector<8x384xf32> to vector<8x128xf32>
    %732 = vector.extract_strided_slice %694 {offsets = [0, 128], sizes = [8, 128], strides = [1, 1]} : vector<8x384xf32> to vector<8x128xf32>
    %733 = arith.addf %731, %732 : vector<8x128xf32>
    %734 = arith.negf %733 : vector<8x128xf32>
    %735 = math.exp %734 : vector<8x128xf32>
    %cst_165 = arith.constant 1.000000e+00 : f32
    %736 = vector.broadcast %cst_165 : f32 to vector<8x128xf32>
    %737 = arith.addf %736, %735 : vector<8x128xf32>
    %738 = arith.divf %736, %737 : vector<8x128xf32>
    %739 = vector.extract_strided_slice %692 {offsets = [0, 256], sizes = [8, 128], strides = [1, 1]} : vector<8x384xf32> to vector<8x128xf32>
    %740 = vector.extract_strided_slice %694 {offsets = [0, 256], sizes = [8, 128], strides = [1, 1]} : vector<8x384xf32> to vector<8x128xf32>
    %741 = vector.broadcast %11 : vector<1x128xf32> to vector<8x128xf32>
    %742 = arith.addf %740, %741 : vector<8x128xf32>
    %743 = arith.mulf %730, %742 : vector<8x128xf32>
    %744 = arith.addf %739, %743 : vector<8x128xf32>
    %745 = math.tanh %744 : vector<8x128xf32>
    %cst_166 = arith.constant 1.000000e+00 : f32
    %746 = vector.broadcast %cst_166 : f32 to vector<8x128xf32>
    %747 = arith.subf %746, %738 : vector<8x128xf32>
    %748 = arith.mulf %747, %745 : vector<8x128xf32>
    %749 = arith.mulf %738, %683 : vector<8x128xf32>
    %750 = arith.addf %748, %749 : vector<8x128xf32>
    %751 = arith.addi %12, %c7_i32_153 : i32
    %752 = vector.broadcast %751 : i32 to vector<8x1xi32>
    %753 = arith.cmpi sgt, %3, %752 : vector<8x1xi32>
    %754 = arith.addi %14, %684 : i32
    %755 = vector.broadcast %754 : i32 to vector<8x1xi32>
    %756 = arith.cmpi sgt, %3, %755 : vector<8x1xi32>
    %cst_167 = arith.constant 0.000000e+00 : f32
    %757 = vector.shape_cast %753 : vector<8x1xi1> to vector<8x1xi1>
    %758 = vector.broadcast %757 : vector<8x1xi1> to vector<8x128xi1>
    %759 = vector.broadcast %cst_167 : f32 to vector<8x128xf32>
    %760 = arith.select %758, %722, %759 : vector<8x128xi1>, vector<8x128xf32>
    %761 = arith.index_cast %c7_i32_153 : i32 to index
    %c0_168 = arith.constant 0 : index
    %c0_169 = arith.constant 0 : index
    %762 = vector.load %arg6[%761, %c0_168, %c0_169] : memref<8x8x128xf32, #tpu.memory_space<vmem>>, vector<1x8x128xf32>
    %763 = vector.shape_cast %762 : vector<1x8x128xf32> to vector<8x128xf32>
    %764 = vector.shape_cast %760 : vector<8x128xf32> to vector<1x8x128xf32>
    tpu.vector_store %arg6[%761, %c0_168, %c0_169], %764 {strides = array<i32>} : memref<8x8x128xf32, #tpu.memory_space<vmem>>, vector<1x8x128xf32>,
    %cst_170 = arith.constant 0.000000e+00 : f32
    %765 = vector.shape_cast %756 : vector<8x1xi1> to vector<8x1xi1>
    %766 = vector.broadcast %765 : vector<8x1xi1> to vector<8x128xi1>
    %767 = vector.broadcast %cst_170 : f32 to vector<8x128xf32>
    %768 = arith.select %766, %750, %767 : vector<8x128xi1>, vector<8x128xf32>
    %769 = arith.index_cast %684 : i32 to index
    %c0_171 = arith.constant 0 : index
    %c0_172 = arith.constant 0 : index
    %770 = vector.load %arg7[%769, %c0_171, %c0_172] : memref<8x8x128xf32, #tpu.memory_space<vmem>>, vector<1x8x128xf32>
    %771 = vector.shape_cast %770 : vector<1x8x128xf32> to vector<8x128xf32>
    %772 = vector.shape_cast %768 : vector<8x128xf32> to vector<1x8x128xf32>
    tpu.vector_store %arg7[%769, %c0_171, %c0_172], %772 {strides = array<i32>} : memref<8x8x128xf32, #tpu.memory_space<vmem>>, vector<1x8x128xf32>,
    %773 = vector.shape_cast %753 : vector<8x1xi1> to vector<8x1xi1>
    %774 = vector.broadcast %773 : vector<8x1xi1> to vector<8x128xi1>
    %775 = arith.select %774, %722, %680 : vector<8x128xi1>, vector<8x128xf32>
    %776 = vector.shape_cast %756 : vector<8x1xi1> to vector<8x1xi1>
    %777 = vector.broadcast %776 : vector<8x1xi1> to vector<8x128xi1>
    %778 = arith.select %777, %750, %683 : vector<8x128xi1>, vector<8x128xf32>
    %c8_i32_173 = arith.constant 8 : i32
    %c0_174 = arith.constant 0 : index
    %c0_175 = arith.constant 0 : index
    %c0_176 = arith.constant 0 : index
    %779 = vector.load %arg9[%c0_174, %c0_175, %c0_176] : memref<2x8x128xf32, #tpu.memory_space<vmem>>, vector<1x8x128xf32>
    %780 = vector.shape_cast %779 : vector<1x8x128xf32> to vector<8x128xf32>
    %781 = vector.shape_cast %775 : vector<8x128xf32> to vector<1x8x128xf32>
    tpu.vector_store %arg9[%c0_174, %c0_175, %c0_176], %781 {strides = array<i32>} : memref<2x8x128xf32, #tpu.memory_space<vmem>>, vector<1x8x128xf32>,
    %c1_177 = arith.constant 1 : index
    %c0_178 = arith.constant 0 : index
    %c0_179 = arith.constant 0 : index
    %782 = vector.load %arg9[%c1_177, %c0_178, %c0_179] : memref<2x8x128xf32, #tpu.memory_space<vmem>>, vector<1x8x128xf32>
    %783 = vector.shape_cast %782 : vector<1x8x128xf32> to vector<8x128xf32>
    %784 = vector.shape_cast %778 : vector<8x128xf32> to vector<1x8x128xf32>
    tpu.vector_store %arg9[%c1_177, %c0_178, %c0_179], %784 {strides = array<i32>} : memref<2x8x128xf32, #tpu.memory_space<vmem>>, vector<1x8x128xf32>,
    %c0_180 = arith.constant 0 : index
    %c0_181 = arith.constant 0 : index
    %c0_182 = arith.constant 0 : index
    %785 = vector.load %arg8[%c0_180, %c0_181, %c0_182] : memref<2x8x128xf32, #tpu.memory_space<vmem>>, vector<1x8x128xf32>
    %786 = vector.shape_cast %785 : vector<1x8x128xf32> to vector<8x128xf32>
    %787 = vector.shape_cast %775 : vector<8x128xf32> to vector<1x8x128xf32>
    tpu.vector_store %arg8[%c0_180, %c0_181, %c0_182], %787 {strides = array<i32>} : memref<2x8x128xf32, #tpu.memory_space<vmem>>, vector<1x8x128xf32>,
    %c1_183 = arith.constant 1 : index
    %c0_184 = arith.constant 0 : index
    %c0_185 = arith.constant 0 : index
    %788 = vector.load %arg8[%c1_183, %c0_184, %c0_185] : memref<2x8x128xf32, #tpu.memory_space<vmem>>, vector<1x8x128xf32>
    %789 = vector.shape_cast %788 : vector<1x8x128xf32> to vector<8x128xf32>
    %790 = vector.shape_cast %778 : vector<8x128xf32> to vector<1x8x128xf32>
    tpu.vector_store %arg8[%c1_183, %c0_184, %c0_185], %790 {strides = array<i32>} : memref<2x8x128xf32, #tpu.memory_space<vmem>>, vector<1x8x128xf32>,
    return
  }
  func.func @transform_0(%arg0: i32) -> (i32, i32) {
    %c0_i32 = arith.constant 0 : i32
    %c0_i32_0 = arith.constant 0 : i32
    %c0_i32_1 = arith.constant 0 : i32
    return %c0_i32, %c0_i32_0 : i32, i32
  }
  func.func @transform_1(%arg0: i32) -> (i32, i32, i32) {
    %c0_i32 = arith.constant 0 : i32
    %c0_i32_0 = arith.constant 0 : i32
    %c0_i32_1 = arith.constant 0 : i32
    return %arg0, %c0_i32, %c0_i32_0 : i32, i32, i32
  }
  func.func @transform_2(%arg0: i32) -> (i32, i32, i32) {
    %c0_i32 = arith.constant 0 : i32
    %0 = arith.subi %c0_i32, %arg0 : i32
    %c0_i32_0 = arith.constant 0 : i32
    %c0_i32_1 = arith.constant 0 : i32
    %c0_i32_2 = arith.constant 0 : i32
    return %0, %c0_i32_0, %c0_i32_1 : i32, i32, i32
  }
  func.func @transform_3(%arg0: i32) -> (i32, i32, i32) {
    %c0_i32 = arith.constant 0 : i32
    %c0_i32_0 = arith.constant 0 : i32
    %c0_i32_1 = arith.constant 0 : i32
    %c0_i32_2 = arith.constant 0 : i32
    return %c0_i32, %c0_i32_0, %c0_i32_1 : i32, i32, i32
  }
  func.func @transform_4(%arg0: i32) -> (i32, i32, i32) {
    %c0_i32 = arith.constant 0 : i32
    %c0_i32_0 = arith.constant 0 : i32
    %c0_i32_1 = arith.constant 0 : i32
    %c0_i32_2 = arith.constant 0 : i32
    return %c0_i32, %c0_i32_0, %c0_i32_1 : i32, i32, i32
  }
  func.func @transform_5(%arg0: i32) -> (i32, i32, i32) {
    %c0_i32 = arith.constant 0 : i32
    %c0_i32_0 = arith.constant 0 : i32
    %c0_i32_1 = arith.constant 0 : i32
    return %arg0, %c0_i32, %c0_i32_0 : i32, i32, i32
  }
  func.func @transform_6(%arg0: i32) -> (i32, i32, i32) {
    %c0_i32 = arith.constant 0 : i32
    %0 = arith.subi %c0_i32, %arg0 : i32
    %c0_i32_0 = arith.constant 0 : i32
    %c0_i32_1 = arith.constant 0 : i32
    %c0_i32_2 = arith.constant 0 : i32
    return %0, %c0_i32_0, %c0_i32_1 : i32, i32, i32
  }
  func.func @transform_7(%arg0: i32) -> (i32, i32, i32) {
    %c0_i32 = arith.constant 0 : i32
    %c0_i32_0 = arith.constant 0 : i32
    %c0_i32_1 = arith.constant 0 : i32
    %c0_i32_2 = arith.constant 0 : i32
    return %c0_i32, %c0_i32_0, %c0_i32_1 : i32, i32, i32
  }
}

</mosaic_0001>

<llo_original>
// kernel: encoder_forward.2
$region0: #{encoder_forward.2}
  #allocation0 [shape = 'u32[]', space=smem, size = 0x4, offset = 0x4, fixed_abs, tag = 'smem constant byte address 0x4 - core index']
  #allocation1 [shape = 'u32[72,128]{1,0:T(1,128)}', space=vmem, size = 0x9000, scoped, tag = 'internal scratch']
  #allocation2 [shape = 'f32[2,8,128]{2,1,0:T(8,128)}', space=vmem, size = 0x2000, scoped, tag = 'scratch operand']
  %s0 = inlined_call_operand.vmem [shape: s32[8,1], index: 0, kind: input, shape index: {}]
  %s1 = inlined_call_operand.vmem [shape: bf16[8,8,384], index: 1, kind: input, shape index: {}]
  %s2 = inlined_call_operand.vmem [shape: bf16[8,8,384], index: 2, kind: input, shape index: {}]
  %s3 = inlined_call_operand.vmem [shape: f32[2,128,384], index: 3, kind: input, shape index: {}]
  %s4 = inlined_call_operand.vmem [shape: f32[2,1,128], index: 4, kind: input, shape index: {}]
  %s5 = inlined_call_operand.vmem [shape: f32[8,8,128], index: 5, kind: output, shape index: {0}]
  %s6 = inlined_call_operand.vmem [shape: f32[8,8,128], index: 6, kind: output, shape index: {1}]
  %s7 = inlined_call_operand.vmem [shape: f32[2,8,128], index: 7, kind: output, shape index: {2}]
  %8 = xla_tuple %s5, %s6, %s7
  %s9 = sld [smem:[#allocation0]]
  $region50: #{encoder_forward.2} parent=0
    _
  %s11 = ssub.s32 1, %s9
  %s12 = scalar_select 0, %s11, %s9
  // Predicated region
  $region2: #{encoder_forward.2} parent=0 // pred_check
    _
  $region3: #{encoder_forward.2} parent=0 // pred_check_branch
    %14 = sbr.rel (0) target = $region5
  $region4: #{encoder_forward.2} parent=0 // pred_region
    _
  $region5: #{encoder_forward.2} parent=0 // pred_fallthru
    _
  // Predicated region
  $region6: #{encoder_forward.2} parent=0 // pred_check
    _
  $region7: #{encoder_forward.2} parent=0 // pred_check_branch
    %16 = sbr.rel (0) target = $region9
  $region8: #{encoder_forward.2} parent=0 // pred_region
    _
  $region9: #{encoder_forward.2} parent=0 // pred_fallthru
    _
  // Predicated region
  $region10: #{encoder_forward.2} parent=0 // pred_check
    _
  $region11: #{encoder_forward.2} parent=0 // pred_check_branch
    %18 = sbr.rel (0) target = $region13
  $region12: #{encoder_forward.2} parent=0 // pred_region
    %s19 = ssub.s32 0, 0
    %s20 = smul.u32 8, %s19
    %p21 = scmp.lt.s32.totalorder %s20, 7
    %s22 = scalar_select %p21, %s20, 7
    %s23 = smul.addr %s22, 3
    %s24 = smul.addr %s23, 4
    %s25 = scalar_lea.vmem %s2, %s24
    %s26 = ssub.s32 0, 0
    %s27 = smul.u32 8, %s26
  $region13: #{encoder_forward.2} parent=0 // pred_fallthru
    _
  // Predicated region
  $region14: #{encoder_forward.2} parent=0 // pred_check
    _
  $region15: #{encoder_forward.2} parent=0 // pred_check_branch
    %29 = sbr.rel (0) target = $region17
  $region16: #{encoder_forward.2} parent=0 // pred_region
    _
  $region17: #{encoder_forward.2} parent=0 // pred_fallthru
    _
  // Predicated region
  $region18: #{encoder_forward.2} parent=0 // pred_check
    _
  $region19: #{encoder_forward.2} parent=0 // pred_check_branch
    %31 = sbr.rel (0) target = $region21
  $region20: #{encoder_forward.2} parent=0 // pred_region
    _
  $region21: #{encoder_forward.2} parent=0 // pred_fallthru
    _
  %s32 = ssub.s32 0, 0
  %s33 = smul.u32 8, %s32
  %p34 = scmp.lt.s32.totalorder %s33, 7
  %s35 = scalar_select %p34, %s33, 7
  %s36 = smul.addr %s35, 3
  %s37 = smul.addr %s36, 4
  %s38 = scalar_lea.vmem %s2, %s37
  %s39 = ssub.s32 0, 0
  %s40 = smul.u32 8, %s39
  %p41 = scmp.lt.s32.totalorder %s40, 7
  %s42 = scalar_select %p41, %s40, 7
  %s43 = smul.addr %s42, 8
  %s44 = scalar_lea.vmem %s6, %s43
  %s45 = ssub.s32 0, 0
  %s46 = smul.u32 8, %s45
  %p47 = scmp.lt.s32.totalorder %s46, 7
  %s48 = scalar_select %p47, %s46, 7
  %s49 = smul.addr %s48, 3
  %s50 = smul.addr %s49, 4
  %s51 = scalar_lea.vmem %s2, %s50
  %s52 = ssub.s32 0, 0
  %s53 = smul.u32 8, %s52
  %s54 = ssub.s32 0, 0
  %s55 = smul.u32 8, %s54
  %p56 = scmp.lt.s32.totalorder %s55, 7
  %s57 = scalar_select %p56, %s55, 7
  %s58 = smul.addr %s57, 8
  %s59 = scalar_lea.vmem %s6, %s58
  %s60 = ssub.s32 0, 0
  %s61 = smul.u32 8, %s60
  %p62 = scmp.eq.s32.totalorder 0, 0
  // Predicated region
  $region22: #{encoder_forward.2} parent=0 // pred_check
    %p63 = pneg %p62
  $region23: #{encoder_forward.2} parent=0 // pred_check_branch
    %65 = sbr.rel (%p63) target = $region25
  $region24: #{encoder_forward.2} parent=0 // pred_region
    %66 = vst [vmem:[#allocation2] sm:$0xff] 0.0
    %67 = vst [vmem:[#allocation2 + $0x8] sm:$0xff] 0.0
  $region25: #{encoder_forward.2} parent=0 // pred_fallthru
    _
  %v68 = vld [vmem:[%s0] sm:$0xff]
  %v69 = vld [vmem:[%s3] sm:$0xff]
  %v70 = vld [vmem:[%s3 + $0x8] sm:$0xff]
  %v71 = vld [vmem:[%s3 + $0x10] sm:$0xff]
  %v72 = vld [vmem:[%s3 + $0x18] sm:$0xff]
  %v73 = vld [vmem:[%s3 + $0x20] sm:$0xff]
  %v74 = vld [vmem:[%s3 + $0x28] sm:$0xff]
  %v75 = vld [vmem:[%s3 + $0x30] sm:$0xff]
  %v76 = vld [vmem:[%s3 + $0x38] sm:$0xff]
  %v77 = vld [vmem:[%s3 + $0x40] sm:$0xff]
  %v78 = vld [vmem:[%s3 + $0x48] sm:$0xff]
  %v79 = vld [vmem:[%s3 + $0x50] sm:$0xff]
  %v80 = vld [vmem:[%s3 + $0x58] sm:$0xff]
  %v81 = vld [vmem:[%s3 + $0x60] sm:$0xff]
  %v82 = vld [vmem:[%s3 + $0x68] sm:$0xff]
  %v83 = vld [vmem:[%s3 + $0x70] sm:$0xff]
  %v84 = vld [vmem:[%s3 + $0x78] sm:$0xff]
  %v85 = vld [vmem:[%s3 + $0x80] sm:$0xff]
  %v86 = vld [vmem:[%s3 + $0x88] sm:$0xff]
  %v87 = vld [vmem:[%s3 + $0x90] sm:$0xff]
  %v88 = vld [vmem:[%s3 + $0x98] sm:$0xff]
  %v89 = vld [vmem:[%s3 + $0xa0] sm:$0xff]
  %v90 = vld [vmem:[%s3 + $0xa8] sm:$0xff]
  %v91 = vld [vmem:[%s3 + $0xb0] sm:$0xff]
  %v92 = vld [vmem:[%s3 + $0xb8] sm:$0xff]
  %v93 = vld [vmem:[%s3 + $0xc0] sm:$0xff]
  %v94 = vld [vmem:[%s3 + $0xc8] sm:$0xff]
  %v95 = vld [vmem:[%s3 + $0xd0] sm:$0xff]
  %v96 = vld [vmem:[%s3 + $0xd8] sm:$0xff]
  %v97 = vld [vmem:[%s3 + $0xe0] sm:$0xff]
  %v98 = vld [vmem:[%s3 + $0xe8] sm:$0xff]
  %v99 = vld [vmem:[%s3 + $0xf0] sm:$0xff]
  %v100 = vld [vmem:[%s3 + $0xf8] sm:$0xff]
  %v101 = vld [vmem:[%s3 + $0x100] sm:$0xff]
  %v102 = vld [vmem:[%s3 + $0x108] sm:$0xff]
  %v103 = vld [vmem:[%s3 + $0x110] sm:$0xff]
  %v104 = vld [vmem:[%s3 + $0x118] sm:$0xff]
  %v105 = vld [vmem:[%s3 + $0x120] sm:$0xff]
  %v106 = vld [vmem:[%s3 + $0x128] sm:$0xff]
  %v107 = vld [vmem:[%s3 + $0x130] sm:$0xff]
  %v108 = vld [vmem:[%s3 + $0x138] sm:$0xff]
  %v109 = vld [vmem:[%s3 + $0x140] sm:$0xff]
  %v110 = vld [vmem:[%s3 + $0x148] sm:$0xff]
  %v111 = vld [vmem:[%s3 + $0x150] sm:$0xff]
  %v112 = vld [vmem:[%s3 + $0x158] sm:$0xff]
  %v113 = vld [vmem:[%s3 + $0x160] sm:$0xff]
  %v114 = vld [vmem:[%s3 + $0x168] sm:$0xff]
  %v115 = vld [vmem:[%s3 + $0x170] sm:$0xff]
  %v116 = vld [vmem:[%s3 + $0x178] sm:$0xff]
  %s117 = scalar_lea.vmem %s3, 384
  %v118 = vld [vmem:[%s117] sm:$0xff]
  %v119 = vld [vmem:[%s117 + $0x8] sm:$0xff]
  %v120 = vld [vmem:[%s117 + $0x10] sm:$0xff]
  %v121 = vld [vmem:[%s117 + $0x18] sm:$0xff]
  %v122 = vld [vmem:[%s117 + $0x20] sm:$0xff]
  %v123 = vld [vmem:[%s117 + $0x28] sm:$0xff]
  %v124 = vld [vmem:[%s117 + $0x30] sm:$0xff]
  %v125 = vld [vmem:[%s117 + $0x38] sm:$0xff]
  %v126 = vld [vmem:[%s117 + $0x40] sm:$0xff]
  %v127 = vld [vmem:[%s117 + $0x48] sm:$0xff]
  %v128 = vld [vmem:[%s117 + $0x50] sm:$0xff]
  %v129 = vld [vmem:[%s117 + $0x58] sm:$0xff]
  %v130 = vld [vmem:[%s117 + $0x60] sm:$0xff]
  %v131 = vld [vmem:[%s117 + $0x68] sm:$0xff]
  %v132 = vld [vmem:[%s117 + $0x70] sm:$0xff]
  %v133 = vld [vmem:[%s117 + $0x78] sm:$0xff]
  %v134 = vld [vmem:[%s117 + $0x80] sm:$0xff]
  %v135 = vld [vmem:[%s117 + $0x88] sm:$0xff]
  %v136 = vld [vmem:[%s117 + $0x90] sm:$0xff]
  %v137 = vld [vmem:[%s117 + $0x98] sm:$0xff]
  %v138 = vld [vmem:[%s117 + $0xa0] sm:$0xff]
  %v139 = vld [vmem:[%s117 + $0xa8] sm:$0xff]
  %v140 = vld [vmem:[%s117 + $0xb0] sm:$0xff]
  %v141 = vld [vmem:[%s117 + $0xb8] sm:$0xff]
  %v142 = vld [vmem:[%s117 + $0xc0] sm:$0xff]
  %v143 = vld [vmem:[%s117 + $0xc8] sm:$0xff]
  %v144 = vld [vmem:[%s117 + $0xd0] sm:$0xff]
  %v145 = vld [vmem:[%s117 + $0xd8] sm:$0xff]
  %v146 = vld [vmem:[%s117 + $0xe0] sm:$0xff]
  %v147 = vld [vmem:[%s117 + $0xe8] sm:$0xff]
  %v148 = vld [vmem:[%s117 + $0xf0] sm:$0xff]
  %v149 = vld [vmem:[%s117 + $0xf8] sm:$0xff]
  %v150 = vld [vmem:[%s117 + $0x100] sm:$0xff]
  %v151 = vld [vmem:[%s117 + $0x108] sm:$0xff]
  %v152 = vld [vmem:[%s117 + $0x110] sm:$0xff]
  %v153 = vld [vmem:[%s117 + $0x118] sm:$0xff]
  %v154 = vld [vmem:[%s117 + $0x120] sm:$0xff]
  %v155 = vld [vmem:[%s117 + $0x128] sm:$0xff]
  %v156 = vld [vmem:[%s117 + $0x130] sm:$0xff]
  %v157 = vld [vmem:[%s117 + $0x138] sm:$0xff]
  %v158 = vld [vmem:[%s117 + $0x140] sm:$0xff]
  %v159 = vld [vmem:[%s117 + $0x148] sm:$0xff]
  %v160 = vld [vmem:[%s117 + $0x150] sm:$0xff]
  %v161 = vld [vmem:[%s117 + $0x158] sm:$0xff]
  %v162 = vld [vmem:[%s117 + $0x160] sm:$0xff]
  %v163 = vld [vmem:[%s117 + $0x168] sm:$0xff]
  %v164 = vld [vmem:[%s117 + $0x170] sm:$0xff]
  %v165 = vld [vmem:[%s117 + $0x178] sm:$0xff]
  %v166 = vld [vmem:[%s4] sm:$0x1]
  %s167 = scalar_lea.vmem %s4, 1
  %v168 = vld [vmem:[%s167] sm:$0x1]
  %s169 = smul.u32 0, 8
  %s170 = ssub.s32 0, 0
  %s171 = smul.u32 %s170, 8
  %v172 = vld [vmem:[#allocation2] sm:$0xff]
  %s173 = scalar_lea.vmem [#allocation2], 8
  %v174 = vld [vmem:[%s173] sm:$0xff]
  %v175 = vld [vmem:[%s1] sm:$0xff]
  %v176 = vld [vmem:[%s1 + $0x8] sm:$0xf]
  %v177 = vunpack.c.l.bf16 %v175
  %v178 = vunpack.c.h.bf16 %v175
  %v179 = vunpack.c.l.bf16 %v176
  %s180 = scalar_lea.vmem %s51, 84
  %v181 = vld [vmem:[%s180] sm:$0xff]
  %v182 = vld [vmem:[%s180 + $0x8] sm:$0xf]
  %v183 = vunpack.c.l.bf16 %v181
  %v184 = vunpack.c.h.bf16 %v181
  %v185 = vunpack.c.l.bf16 %v182
  %186 = vmatpush.msra.mxu0 %v114
  %187 = vmatpush.msra.mxu0 %v111
  %188 = vmatpush.msra.mxu0 %v108
  %189 = vmatpush.msra.mxu0 %v105
  %190 = vmatpush.msra.mxu0 %v102
  %191 = vmatpush.msra.mxu0 %v99
  %192 = vmatpush.msra.mxu0 %v96
  %193 = vmatpush.msra.mxu0 %v93
  %194 = vmatpush.msra.mxu0 %v90
  %195 = vmatpush.msra.mxu0 %v87
  %196 = vmatpush.msra.mxu0 %v84
  %197 = vmatpush.msra.mxu0 %v81
  %198 = vmatpush.msra.mxu0 %v78
  %199 = vmatpush.msra.mxu0 %v75
  %200 = vmatpush.msra.mxu0 %v72
  %201 = vmatpush.msra.mxu0 %v69
  %202 = vmatmul.f32.gmra.mxu0 %v172
  %v203 = vpop.f32.mrf.mxu0
  %v204 = vadd.f32 0.0, %v203
  %205 = vdwg.mxu0
  %206 = vmatpush.msra.mxu0 %v115
  %207 = vmatpush.msra.mxu0 %v112
  %208 = vmatpush.msra.mxu0 %v109
  %209 = vmatpush.msra.mxu0 %v106
  %210 = vmatpush.msra.mxu0 %v103
  %211 = vmatpush.msra.mxu0 %v100
  %212 = vmatpush.msra.mxu0 %v97
  %213 = vmatpush.msra.mxu0 %v94
  %214 = vmatpush.msra.mxu0 %v91
  %215 = vmatpush.msra.mxu0 %v88
  %216 = vmatpush.msra.mxu0 %v85
  %217 = vmatpush.msra.mxu0 %v82
  %218 = vmatpush.msra.mxu0 %v79
  %219 = vmatpush.msra.mxu0 %v76
  %220 = vmatpush.msra.mxu0 %v73
  %221 = vmatpush.msra.mxu0 %v70
  %222 = vmatmul.f32.gmra.mxu0 %v172
  %v223 = vpop.f32.mrf.mxu0
  %v224 = vadd.f32 0.0, %v223
  %225 = vdwg.mxu0
  %226 = vmatpush.msra.mxu0 %v116
  %227 = vmatpush.msra.mxu0 %v113
  %228 = vmatpush.msra.mxu0 %v110
  %229 = vmatpush.msra.mxu0 %v107
  %230 = vmatpush.msra.mxu0 %v104
  %231 = vmatpush.msra.mxu0 %v101
  %232 = vmatpush.msra.mxu0 %v98
  %233 = vmatpush.msra.mxu0 %v95
  %234 = vmatpush.msra.mxu0 %v92
  %235 = vmatpush.msra.mxu0 %v89
  %236 = vmatpush.msra.mxu0 %v86
  %237 = vmatpush.msra.mxu0 %v83
  %238 = vmatpush.msra.mxu0 %v80
  %239 = vmatpush.msra.mxu0 %v77
  %240 = vmatpush.msra.mxu0 %v74
  %241 = vmatpush.msra.mxu0 %v71
  %242 = vmatmul.f32.gmra.mxu0 %v172
  %v243 = vpop.f32.mrf.mxu0
  %v244 = vadd.f32 0.0, %v243
  %245 = vdwg.mxu0
  %246 = vmatpush.msra.mxu0 %v163
  %247 = vmatpush.msra.mxu0 %v160
  %248 = vmatpush.msra.mxu0 %v157
  %249 = vmatpush.msra.mxu0 %v154
  %250 = vmatpush.msra.mxu0 %v151
  %251 = vmatpush.msra.mxu0 %v148
  %252 = vmatpush.msra.mxu0 %v145
  %253 = vmatpush.msra.mxu0 %v142
  %254 = vmatpush.msra.mxu0 %v139
  %255 = vmatpush.msra.mxu0 %v136
  %256 = vmatpush.msra.mxu0 %v133
  %257 = vmatpush.msra.mxu0 %v130
  %258 = vmatpush.msra.mxu0 %v127
  %259 = vmatpush.msra.mxu0 %v124
  %260 = vmatpush.msra.mxu0 %v121
  %261 = vmatpush.msra.mxu0 %v118
  %262 = vmatmul.f32.gmra.mxu0 %v174
  %v263 = vpop.f32.mrf.mxu0
  %v264 = vadd.f32 0.0, %v263
  %265 = vdwg.mxu0
  %266 = vmatpush.msra.mxu0 %v164
  %267 = vmatpush.msra.mxu0 %v161
  %268 = vmatpush.msra.mxu0 %v158
  %269 = vmatpush.msra.mxu0 %v155
  %270 = vmatpush.msra.mxu0 %v152
  %271 = vmatpush.msra.mxu0 %v149
  %272 = vmatpush.msra.mxu0 %v146
  %273 = vmatpush.msra.mxu0 %v143
  %274 = vmatpush.msra.mxu0 %v140
  %275 = vmatpush.msra.mxu0 %v137
  %276 = vmatpush.msra.mxu0 %v134
  %277 = vmatpush.msra.mxu0 %v131
  %278 = vmatpush.msra.mxu0 %v128
  %279 = vmatpush.msra.mxu0 %v125
  %280 = vmatpush.msra.mxu0 %v122
  %281 = vmatpush.msra.mxu0 %v119
  %282 = vmatmul.f32.gmra.mxu0 %v174
  %v283 = vpop.f32.mrf.mxu0
  %v284 = vadd.f32 0.0, %v283
  %285 = vdwg.mxu0
  %286 = vmatpush.msra.mxu0 %v165
  %287 = vmatpush.msra.mxu0 %v162
  %288 = vmatpush.msra.mxu0 %v159
  %289 = vmatpush.msra.mxu0 %v156
  %290 = vmatpush.msra.mxu0 %v153
  %291 = vmatpush.msra.mxu0 %v150
  %292 = vmatpush.msra.mxu0 %v147
  %293 = vmatpush.msra.mxu0 %v144
  %294 = vmatpush.msra.mxu0 %v141
  %295 = vmatpush.msra.mxu0 %v138
  %296 = vmatpush.msra.mxu0 %v135
  %297 = vmatpush.msra.mxu0 %v132
  %298 = vmatpush.msra.mxu0 %v129
  %299 = vmatpush.msra.mxu0 %v126
  %300 = vmatpush.msra.mxu0 %v123
  %301 = vmatpush.msra.mxu0 %v120
  %302 = vmatmul.f32.gmra.mxu0 %v174
  %v303 = vpop.f32.mrf.mxu0
  %v304 = vadd.f32 0.0, %v303
  %305 = vdwg.mxu0
  %v306 = vadd.f32 %v177, %v204
  %v307 = vxor.u32 %v306, 2147483648
  %v308 = vmul.f32 %v307, 1.442695
  %v309 = vpow.pop %v308
  %v310 = vadd.f32 %v309, 1.0
  %v311 = vrcp.pop %v310
  %v312 = vmul.f32 %v310, %v311
  %v313 = vsub.f32 1.0, %v312
  %v314 = vmul.f32 %v311, %v313
  %v315 = vadd.f32 %v311, %v314
  %vm316 = vweird.f32 %v310
  %vm317 = vweird.f32 %v311
  %vm318 = vmor %vm316, %vm317
  %v319 = vsel %vm318, %v311, %v315
  %v320 = vand.u32 2147483647, %v310
  %vm321 = vcmp.eq.f32.partialorder %v320, 8.507059e+37
  %v322 = vand.u32 %v310, 2147483648
  %v323 = vor.u32 1.1754944e-38, %v322
  %v324 = vsel %vm321, %v323, %v319
  %v325 = vmul.f32 1.0, %v324
  %v326 = vadd.f32 %v178, %v224
  %v327 = vxor.u32 %v326, 2147483648
  %v328 = vmul.f32 %v327, 1.442695
  %v329 = vpow.pop %v328
  %v330 = vadd.f32 %v329, 1.0
  %v331 = vrcp.pop %v330
  %v332 = vmul.f32 %v330, %v331
  %v333 = vsub.f32 1.0, %v332
  %v334 = vmul.f32 %v331, %v333
  %v335 = vadd.f32 %v331, %v334
  %vm336 = vweird.f32 %v330
  %vm337 = vweird.f32 %v331
  %vm338 = vmor %vm336, %vm337
  %v339 = vsel %vm338, %v331, %v335
  %v340 = vand.u32 2147483647, %v330
  %vm341 = vcmp.eq.f32.partialorder %v340, 8.507059e+37
  %v342 = vand.u32 %v330, 2147483648
  %v343 = vor.u32 1.1754944e-38, %v342
  %v344 = vsel %vm341, %v343, %v339
  %v345 = vmul.f32 1.0, %v344
  %v347 = vperm.slane %v166, 0
  %v349 = vadd.f32 %v244, %v347
  %v350 = vmul.f32 %v325, %v349
  %v351 = vadd.f32 %v179, %v350
  %v352 = vtanh.pop %v351
  %v353 = vsub.f32 1.0, %v345
  %v354 = vmul.f32 %v353, %v352
  %v355 = vmul.f32 %v345, %v172
  %v356 = vadd.f32 %v354, %v355
  %v357 = vadd.f32 %v183, %v264
  %v358 = vxor.u32 %v357, 2147483648
  %v359 = vmul.f32 %v358, 1.442695
  %v360 = vpow.pop %v359
  %v361 = vadd.f32 %v360, 1.0
  %v362 = vrcp.pop %v361
  %v363 = vmul.f32 %v361, %v362
  %v364 = vsub.f32 1.0, %v363
  %v365 = vmul.f32 %v362, %v364
  %v366 = vadd.f32 %v362, %v365
  %vm367 = vweird.f32 %v361
  %vm368 = vweird.f32 %v362
  %vm369 = vmor %vm367, %vm368
  %v370 = vsel %vm369, %v362, %v366
  %v371 = vand.u32 2147483647, %v361
  %vm372 = vcmp.eq.f32.partialorder %v371, 8.507059e+37
  %v373 = vand.u32 %v361, 2147483648
  %v374 = vor.u32 1.1754944e-38, %v373
  %v375 = vsel %vm372, %v374, %v370
  %v376 = vmul.f32 1.0, %v375
  %v377 = vadd.f32 %v184, %v284
  %v378 = vxor.u32 %v377, 2147483648
  %v379 = vmul.f32 %v378, 1.442695
  %v380 = vpow.pop %v379
  %v381 = vadd.f32 %v380, 1.0
  %v382 = vrcp.pop %v381
  %v383 = vmul.f32 %v381, %v382
  %v384 = vsub.f32 1.0, %v383
  %v385 = vmul.f32 %v382, %v384
  %v386 = vadd.f32 %v382, %v385
  %vm387 = vweird.f32 %v381
  %vm388 = vweird.f32 %v382
  %vm389 = vmor %vm387, %vm388
  %v390 = vsel %vm389, %v382, %v386
  %v391 = vand.u32 2147483647, %v381
  %vm392 = vcmp.eq.f32.partialorder %v391, 8.507059e+37
  %v393 = vand.u32 %v381, 2147483648
  %v394 = vor.u32 1.1754944e-38, %v393
  %v395 = vsel %vm392, %v394, %v390
  %v396 = vmul.f32 1.0, %v395
  %v398 = vperm.slane %v168, 0
  %v400 = vadd.f32 %v304, %v398
  %v401 = vmul.f32 %v376, %v400
  %v402 = vadd.f32 %v185, %v401
  %v403 = vtanh.pop %v402
  %v404 = vsub.f32 1.0, %v396
  %v405 = vmul.f32 %v404, %v403
  %v406 = vmul.f32 %v396, %v174
  %v407 = vadd.f32 %v405, %v406
  %v408 = vstv %s169
  %vm409 = vcmp.gt.s32.totalorder %v68, %v408
  %s410 = sadd.s32 %s171, 7
  %v411 = vstv %s410
  %vm412 = vcmp.gt.s32.totalorder %v68, %v411
  %v413 = vsel %vm409, 1, 0
  %414 = vset.pattern.permute.xlu0 0
  %415 = vperm.xlu0 %414, %v413
  %v416 = vpop.permute.xlu0 %415
  %vm417 = vcmp.eq.s32.totalorder %v416, 1
  %v418 = vsel %vm417, %v356, 0.0
  %419 = vst [vmem:[%s5] sm:$0xff] %v418
  %v420 = vsel %vm412, 1, 0
  %421 = vset.pattern.permute.xlu0 0
  %422 = vperm.xlu0 %421, %v420
  %v423 = vpop.permute.xlu0 %422
  %vm424 = vcmp.eq.s32.totalorder %v423, 1
  %v425 = vsel %vm424, %v407, 0.0
  %s426 = scalar_lea.vmem %s59, 56
  %427 = vst [vmem:[%s426] sm:$0xff] %v425
  %v428 = vsel %vm417, %v356, %v172
  %v429 = vsel %vm424, %v407, %v174
  %s430 = scalar_lea.vmem %s1, 12
  %v431 = vld [vmem:[%s430] sm:$0xff]
  %v432 = vld [vmem:[%s430 + $0x8] sm:$0xf]
  %v433 = vunpack.c.l.bf16 %v431
  %v434 = vunpack.c.h.bf16 %v431
  %v435 = vunpack.c.l.bf16 %v432
  %s436 = scalar_lea.vmem %s51, 72
  %v437 = vld [vmem:[%s436] sm:$0xff]
  %v438 = vld [vmem:[%s436 + $0x8] sm:$0xf]
  %v439 = vunpack.c.l.bf16 %v437
  %v440 = vunpack.c.h.bf16 %v437
  %v441 = vunpack.c.l.bf16 %v438
  %442 = vmatpush.msra.mxu0 %v114
  %443 = vmatpush.msra.mxu0 %v111
  %444 = vmatpush.msra.mxu0 %v108
  %445 = vmatpush.msra.mxu0 %v105
  %446 = vmatpush.msra.mxu0 %v102
  %447 = vmatpush.msra.mxu0 %v99
  %448 = vmatpush.msra.mxu0 %v96
  %449 = vmatpush.msra.mxu0 %v93
  %450 = vmatpush.msra.mxu0 %v90
  %451 = vmatpush.msra.mxu0 %v87
  %452 = vmatpush.msra.mxu0 %v84
  %453 = vmatpush.msra.mxu0 %v81
  %454 = vmatpush.msra.mxu0 %v78
  %455 = vmatpush.msra.mxu0 %v75
  %456 = vmatpush.msra.mxu0 %v72
  %457 = vmatpush.msra.mxu0 %v69
  %458 = vmatmul.f32.gmra.mxu0 %v428
  %v459 = vpop.f32.mrf.mxu0
  %v460 = vadd.f32 0.0, %v459
  %461 = vdwg.mxu0
  %462 = vmatpush.msra.mxu0 %v115
  %463 = vmatpush.msra.mxu0 %v112
  %464 = vmatpush.msra.mxu0 %v109
  %465 = vmatpush.msra.mxu0 %v106
  %466 = vmatpush.msra.mxu0 %v103
  %467 = vmatpush.msra.mxu0 %v100
  %468 = vmatpush.msra.mxu0 %v97
  %469 = vmatpush.msra.mxu0 %v94
  %470 = vmatpush.msra.mxu0 %v91
  %471 = vmatpush.msra.mxu0 %v88
  %472 = vmatpush.msra.mxu0 %v85
  %473 = vmatpush.msra.mxu0 %v82
  %474 = vmatpush.msra.mxu0 %v79
  %475 = vmatpush.msra.mxu0 %v76
  %476 = vmatpush.msra.mxu0 %v73
  %477 = vmatpush.msra.mxu0 %v70
  %478 = vmatmul.f32.gmra.mxu0 %v428
  %v479 = vpop.f32.mrf.mxu0
  %v480 = vadd.f32 0.0, %v479
  %481 = vdwg.mxu0
  %482 = vmatpush.msra.mxu0 %v116
  %483 = vmatpush.msra.mxu0 %v113
  %484 = vmatpush.msra.mxu0 %v110
  %485 = vmatpush.msra.mxu0 %v107
  %486 = vmatpush.msra.mxu0 %v104
  %487 = vmatpush.msra.mxu0 %v101
  %488 = vmatpush.msra.mxu0 %v98
  %489 = vmatpush.msra.mxu0 %v95
  %490 = vmatpush.msra.mxu0 %v92
  %491 = vmatpush.msra.mxu0 %v89
  %492 = vmatpush.msra.mxu0 %v86
  %493 = vmatpush.msra.mxu0 %v83
  %494 = vmatpush.msra.mxu0 %v80
  %495 = vmatpush.msra.mxu0 %v77
  %496 = vmatpush.msra.mxu0 %v74
  %497 = vmatpush.msra.mxu0 %v71
  %498 = vmatmul.f32.gmra.mxu0 %v428
  %v499 = vpop.f32.mrf.mxu0
  %v500 = vadd.f32 0.0, %v499
  %501 = vdwg.mxu0
  %502 = vmatpush.msra.mxu0 %v163
  %503 = vmatpush.msra.mxu0 %v160
  %504 = vmatpush.msra.mxu0 %v157
  %505 = vmatpush.msra.mxu0 %v154
  %506 = vmatpush.msra.mxu0 %v151
  %507 = vmatpush.msra.mxu0 %v148
  %508 = vmatpush.msra.mxu0 %v145
  %509 = vmatpush.msra.mxu0 %v142
  %510 = vmatpush.msra.mxu0 %v139
  %511 = vmatpush.msra.mxu0 %v136
  %512 = vmatpush.msra.mxu0 %v133
  %513 = vmatpush.msra.mxu0 %v130
  %514 = vmatpush.msra.mxu0 %v127
  %515 = vmatpush.msra.mxu0 %v124
  %516 = vmatpush.msra.mxu0 %v121
  %517 = vmatpush.msra.mxu0 %v118
  %518 = vmatmul.f32.gmra.mxu0 %v429
  %v519 = vpop.f32.mrf.mxu0
  %v520 = vadd.f32 0.0, %v519
  %521 = vdwg.mxu0
  %522 = vmatpush.msra.mxu0 %v164
  %523 = vmatpush.msra.mxu0 %v161
  %524 = vmatpush.msra.mxu0 %v158
  %525 = vmatpush.msra.mxu0 %v155
  %526 = vmatpush.msra.mxu0 %v152
  %527 = vmatpush.msra.mxu0 %v149
  %528 = vmatpush.msra.mxu0 %v146
  %529 = vmatpush.msra.mxu0 %v143
  %530 = vmatpush.msra.mxu0 %v140
  %531 = vmatpush.msra.mxu0 %v137
  %532 = vmatpush.msra.mxu0 %v134
  %533 = vmatpush.msra.mxu0 %v131
  %534 = vmatpush.msra.mxu0 %v128
  %535 = vmatpush.msra.mxu0 %v125
  %536 = vmatpush.msra.mxu0 %v122
  %537 = vmatpush.msra.mxu0 %v119
  %538 = vmatmul.f32.gmra.mxu0 %v429
  %v539 = vpop.f32.mrf.mxu0
  %v540 = vadd.f32 0.0, %v539
  %541 = vdwg.mxu0
  %542 = vmatpush.msra.mxu0 %v165
  %543 = vmatpush.msra.mxu0 %v162
  %544 = vmatpush.msra.mxu0 %v159
  %545 = vmatpush.msra.mxu0 %v156
  %546 = vmatpush.msra.mxu0 %v153
  %547 = vmatpush.msra.mxu0 %v150
  %548 = vmatpush.msra.mxu0 %v147
  %549 = vmatpush.msra.mxu0 %v144
  %550 = vmatpush.msra.mxu0 %v141
  %551 = vmatpush.msra.mxu0 %v138
  %552 = vmatpush.msra.mxu0 %v135
  %553 = vmatpush.msra.mxu0 %v132
  %554 = vmatpush.msra.mxu0 %v129
  %555 = vmatpush.msra.mxu0 %v126
  %556 = vmatpush.msra.mxu0 %v123
  %557 = vmatpush.msra.mxu0 %v120
  %558 = vmatmul.f32.gmra.mxu0 %v429
  %v559 = vpop.f32.mrf.mxu0
  %v560 = vadd.f32 0.0, %v559
  %561 = vdwg.mxu0
  %v562 = vadd.f32 %v433, %v460
  %v563 = vxor.u32 %v562, 2147483648
  %v564 = vmul.f32 %v563, 1.442695
  %v565 = vpow.pop %v564
  %v566 = vadd.f32 %v565, 1.0
  %v567 = vrcp.pop %v566
  %v568 = vmul.f32 %v566, %v567
  %v569 = vsub.f32 1.0, %v568
  %v570 = vmul.f32 %v567, %v569
  %v571 = vadd.f32 %v567, %v570
  %vm572 = vweird.f32 %v566
  %vm573 = vweird.f32 %v567
  %vm574 = vmor %vm572, %vm573
  %v575 = vsel %vm574, %v567, %v571
  %v576 = vand.u32 2147483647, %v566
  %vm577 = vcmp.eq.f32.partialorder %v576, 8.507059e+37
  %v578 = vand.u32 %v566, 2147483648
  %v579 = vor.u32 1.1754944e-38, %v578
  %v580 = vsel %vm577, %v579, %v575
  %v581 = vmul.f32 1.0, %v580
  %v582 = vadd.f32 %v434, %v480
  %v583 = vxor.u32 %v582, 2147483648
  %v584 = vmul.f32 %v583, 1.442695
  %v585 = vpow.pop %v584
  %v586 = vadd.f32 %v585, 1.0
  %v587 = vrcp.pop %v586
  %v588 = vmul.f32 %v586, %v587
  %v589 = vsub.f32 1.0, %v588
  %v590 = vmul.f32 %v587, %v589
  %v591 = vadd.f32 %v587, %v590
  %vm592 = vweird.f32 %v586
  %vm593 = vweird.f32 %v587
  %vm594 = vmor %vm592, %vm593
  %v595 = vsel %vm594, %v587, %v591
  %v596 = vand.u32 2147483647, %v586
  %vm597 = vcmp.eq.f32.partialorder %v596, 8.507059e+37
  %v598 = vand.u32 %v586, 2147483648
  %v599 = vor.u32 1.1754944e-38, %v598
  %v600 = vsel %vm597, %v599, %v595
  %v601 = vmul.f32 1.0, %v600
  %v602 = vadd.f32 %v500, %v347
  %v603 = vmul.f32 %v581, %v602
  %v604 = vadd.f32 %v435, %v603
  %v605 = vtanh.pop %v604
  %v606 = vsub.f32 1.0, %v601
  %v607 = vmul.f32 %v606, %v605
  %v608 = vmul.f32 %v601, %v428
  %v609 = vadd.f32 %v607, %v608
  %v610 = vadd.f32 %v439, %v520
  %v611 = vxor.u32 %v610, 2147483648
  %v612 = vmul.f32 %v611, 1.442695
  %v613 = vpow.pop %v612
  %v614 = vadd.f32 %v613, 1.0
  %v615 = vrcp.pop %v614
  %v616 = vmul.f32 %v614, %v615
  %v617 = vsub.f32 1.0, %v616
  %v618 = vmul.f32 %v615, %v617
  %v619 = vadd.f32 %v615, %v618
  %vm620 = vweird.f32 %v614
  %vm621 = vweird.f32 %v615
  %vm622 = vmor %vm620, %vm621
  %v623 = vsel %vm622, %v615, %v619
  %v624 = vand.u32 2147483647, %v614
  %vm625 = vcmp.eq.f32.partialorder %v624, 8.507059e+37
  %v626 = vand.u32 %v614, 2147483648
  %v627 = vor.u32 1.1754944e-38, %v626
  %v628 = vsel %vm625, %v627, %v623
  %v629 = vmul.f32 1.0, %v628
  %v630 = vadd.f32 %v440, %v540
  %v631 = vxor.u32 %v630, 2147483648
  %v632 = vmul.f32 %v631, 1.442695
  %v633 = vpow.pop %v632
  %v634 = vadd.f32 %v633, 1.0
  %v635 = vrcp.pop %v634
  %v636 = vmul.f32 %v634, %v635
  %v637 = vsub.f32 1.0, %v636
  %v638 = vmul.f32 %v635, %v637
  %v639 = vadd.f32 %v635, %v638
  %vm640 = vweird.f32 %v634
  %vm641 = vweird.f32 %v635
  %vm642 = vmor %vm640, %vm641
  %v643 = vsel %vm642, %v635, %v639
  %v644 = vand.u32 2147483647, %v634
  %vm645 = vcmp.eq.f32.partialorder %v644, 8.507059e+37
  %v646 = vand.u32 %v634, 2147483648
  %v647 = vor.u32 1.1754944e-38, %v646
  %v648 = vsel %vm645, %v647, %v643
  %v649 = vmul.f32 1.0, %v648
  %v650 = vadd.f32 %v560, %v398
  %v651 = vmul.f32 %v629, %v650
  %v652 = vadd.f32 %v441, %v651
  %v653 = vtanh.pop %v652
  %v654 = vsub.f32 1.0, %v649
  %v655 = vmul.f32 %v654, %v653
  %v656 = vmul.f32 %v649, %v429
  %v657 = vadd.f32 %v655, %v656
  %s658 = sadd.s32 %s169, 1
  %v659 = vstv %s658
  %vm660 = vcmp.gt.s32.totalorder %v68, %v659
  %s661 = sadd.s32 %s171, 6
  %v662 = vstv %s661
  %vm663 = vcmp.gt.s32.totalorder %v68, %v662
  %v664 = vsel %vm660, 1, 0
  %665 = vset.pattern.permute.xlu0 0
  %666 = vperm.xlu0 %665, %v664
  %v667 = vpop.permute.xlu0 %666
  %vm668 = vcmp.eq.s32.totalorder %v667, 1
  %v669 = vsel %vm668, %v609, 0.0
  %s670 = scalar_lea.vmem %s5, 8
  %671 = vst [vmem:[%s670] sm:$0xff] %v669
  %v672 = vsel %vm663, 1, 0
  %673 = vset.pattern.permute.xlu0 0
  %674 = vperm.xlu0 %673, %v672
  %v675 = vpop.permute.xlu0 %674
  %vm676 = vcmp.eq.s32.totalorder %v675, 1
  %v677 = vsel %vm676, %v657, 0.0
  %s678 = scalar_lea.vmem %s59, 48
  %679 = vst [vmem:[%s678] sm:$0xff] %v677
  %v680 = vsel %vm668, %v609, %v428
  %v681 = vsel %vm676, %v657, %v429
  %s682 = scalar_lea.vmem %s1, 24
  %v683 = vld [vmem:[%s682] sm:$0xff]
  %v684 = vld [vmem:[%s682 + $0x8] sm:$0xf]
  %v685 = vunpack.c.l.bf16 %v683
  %v686 = vunpack.c.h.bf16 %v683
  %v687 = vunpack.c.l.bf16 %v684
  %s688 = scalar_lea.vmem %s51, 60
  %v689 = vld [vmem:[%s688] sm:$0xff]
  %v690 = vld [vmem:[%s688 + $0x8] sm:$0xf]
  %v691 = vunpack.c.l.bf16 %v689
  %v692 = vunpack.c.h.bf16 %v689
  %v693 = vunpack.c.l.bf16 %v690
  %694 = vmatpush.msra.mxu0 %v114
  %695 = vmatpush.msra.mxu0 %v111
  %696 = vmatpush.msra.mxu0 %v108
  %697 = vmatpush.msra.mxu0 %v105
  %698 = vmatpush.msra.mxu0 %v102
  %699 = vmatpush.msra.mxu0 %v99
  %700 = vmatpush.msra.mxu0 %v96
  %701 = vmatpush.msra.mxu0 %v93
  %702 = vmatpush.msra.mxu0 %v90
  %703 = vmatpush.msra.mxu0 %v87
  %704 = vmatpush.msra.mxu0 %v84
  %705 = vmatpush.msra.mxu0 %v81
  %706 = vmatpush.msra.mxu0 %v78
  %707 = vmatpush.msra.mxu0 %v75
  %708 = vmatpush.msra.mxu0 %v72
  %709 = vmatpush.msra.mxu0 %v69
  %710 = vmatmul.f32.gmra.mxu0 %v680
  %v711 = vpop.f32.mrf.mxu0
  %v712 = vadd.f32 0.0, %v711
  %713 = vdwg.mxu0
  %714 = vmatpush.msra.mxu0 %v115
  %715 = vmatpush.msra.mxu0 %v112
  %716 = vmatpush.msra.mxu0 %v109
  %717 = vmatpush.msra.mxu0 %v106
  %718 = vmatpush.msra.mxu0 %v103
  %719 = vmatpush.msra.mxu0 %v100
  %720 = vmatpush.msra.mxu0 %v97
  %721 = vmatpush.msra.mxu0 %v94
  %722 = vmatpush.msra.mxu0 %v91
  %723 = vmatpush.msra.mxu0 %v88
  %724 = vmatpush.msra.mxu0 %v85
  %725 = vmatpush.msra.mxu0 %v82
  %726 = vmatpush.msra.mxu0 %v79
  %727 = vmatpush.msra.mxu0 %v76
  %728 = vmatpush.msra.mxu0 %v73
  %729 = vmatpush.msra.mxu0 %v70
  %730 = vmatmul.f32.gmra.mxu0 %v680
  %v731 = vpop.f32.mrf.mxu0
  %v732 = vadd.f32 0.0, %v731
  %733 = vdwg.mxu0
  %734 = vmatpush.msra.mxu0 %v116
  %735 = vmatpush.msra.mxu0 %v113
  %736 = vmatpush.msra.mxu0 %v110
  %737 = vmatpush.msra.mxu0 %v107
  %738 = vmatpush.msra.mxu0 %v104
  %739 = vmatpush.msra.mxu0 %v101
  %740 = vmatpush.msra.mxu0 %v98
  %741 = vmatpush.msra.mxu0 %v95
  %742 = vmatpush.msra.mxu0 %v92
  %743 = vmatpush.msra.mxu0 %v89
  %744 = vmatpush.msra.mxu0 %v86
  %745 = vmatpush.msra.mxu0 %v83
  %746 = vmatpush.msra.mxu0 %v80
  %747 = vmatpush.msra.mxu0 %v77
  %748 = vmatpush.msra.mxu0 %v74
  %749 = vmatpush.msra.mxu0 %v71
  %750 = vmatmul.f32.gmra.mxu0 %v680
  %v751 = vpop.f32.mrf.mxu0
  %v752 = vadd.f32 0.0, %v751
  %753 = vdwg.mxu0
  %754 = vmatpush.msra.mxu0 %v163
  %755 = vmatpush.msra.mxu0 %v160
  %756 = vmatpush.msra.mxu0 %v157
  %757 = vmatpush.msra.mxu0 %v154
  %758 = vmatpush.msra.mxu0 %v151
  %759 = vmatpush.msra.mxu0 %v148
  %760 = vmatpush.msra.mxu0 %v145
  %761 = vmatpush.msra.mxu0 %v142
  %762 = vmatpush.msra.mxu0 %v139
  %763 = vmatpush.msra.mxu0 %v136
  %764 = vmatpush.msra.mxu0 %v133
  %765 = vmatpush.msra.mxu0 %v130
  %766 = vmatpush.msra.mxu0 %v127
  %767 = vmatpush.msra.mxu0 %v124
  %768 = vmatpush.msra.mxu0 %v121
  %769 = vmatpush.msra.mxu0 %v118
  %770 = vmatmul.f32.gmra.mxu0 %v681
  %v771 = vpop.f32.mrf.mxu0
  %v772 = vadd.f32 0.0, %v771
  %773 = vdwg.mxu0
  %774 = vmatpush.msra.mxu0 %v164
  %775 = vmatpush.msra.mxu0 %v161
  %776 = vmatpush.msra.mxu0 %v158
  %777 = vmatpush.msra.mxu0 %v155
  %778 = vmatpush.msra.mxu0 %v152
  %779 = vmatpush.msra.mxu0 %v149
  %780 = vmatpush.msra.mxu0 %v146
  %781 = vmatpush.msra.mxu0 %v143
  %782 = vmatpush.msra.mxu0 %v140
  %783 = vmatpush.msra.mxu0 %v137
  %784 = vmatpush.msra.mxu0 %v134
  %785 = vmatpush.msra.mxu0 %v131
  %786 = vmatpush.msra.mxu0 %v128
  %787 = vmatpush.msra.mxu0 %v125
  %788 = vmatpush.msra.mxu0 %v122
  %789 = vmatpush.msra.mxu0 %v119
  %790 = vmatmul.f32.gmra.mxu0 %v681
  %v791 = vpop.f32.mrf.mxu0
  %v792 = vadd.f32 0.0, %v791
  %793 = vdwg.mxu0
  %794 = vmatpush.msra.mxu0 %v165
  %795 = vmatpush.msra.mxu0 %v162
  %796 = vmatpush.msra.mxu0 %v159
  %797 = vmatpush.msra.mxu0 %v156
  %798 = vmatpush.msra.mxu0 %v153
  %799 = vmatpush.msra.mxu0 %v150
  %800 = vmatpush.msra.mxu0 %v147
  %801 = vmatpush.msra.mxu0 %v144
  %802 = vmatpush.msra.mxu0 %v141
  %803 = vmatpush.msra.mxu0 %v138
  %804 = vmatpush.msra.mxu0 %v135
  %805 = vmatpush.msra.mxu0 %v132
  %806 = vmatpush.msra.mxu0 %v129
  %807 = vmatpush.msra.mxu0 %v126
  %808 = vmatpush.msra.mxu0 %v123
  %809 = vmatpush.msra.mxu0 %v120
  %810 = vmatmul.f32.gmra.mxu0 %v681
  %v811 = vpop.f32.mrf.mxu0
  %v812 = vadd.f32 0.0, %v811
  %813 = vdwg.mxu0
  %v814 = vadd.f32 %v685, %v712
  %v815 = vxor.u32 %v814, 2147483648
  %v816 = vmul.f32 %v815, 1.442695
  %v817 = vpow.pop %v816
  %v818 = vadd.f32 %v817, 1.0
  %v819 = vrcp.pop %v818
  %v820 = vmul.f32 %v818, %v819
  %v821 = vsub.f32 1.0, %v820
  %v822 = vmul.f32 %v819, %v821
  %v823 = vadd.f32 %v819, %v822
  %vm824 = vweird.f32 %v818
  %vm825 = vweird.f32 %v819
  %vm826 = vmor %vm824, %vm825
  %v827 = vsel %vm826, %v819, %v823
  %v828 = vand.u32 2147483647, %v818
  %vm829 = vcmp.eq.f32.partialorder %v828, 8.507059e+37
  %v830 = vand.u32 %v818, 2147483648
  %v831 = vor.u32 1.1754944e-38, %v830
  %v832 = vsel %vm829, %v831, %v827
  %v833 = vmul.f32 1.0, %v832
  %v834 = vadd.f32 %v686, %v732
  %v835 = vxor.u32 %v834, 2147483648
  %v836 = vmul.f32 %v835, 1.442695
  %v837 = vpow.pop %v836
  %v838 = vadd.f32 %v837, 1.0
  %v839 = vrcp.pop %v838
  %v840 = vmul.f32 %v838, %v839
  %v841 = vsub.f32 1.0, %v840
  %v842 = vmul.f32 %v839, %v841
  %v843 = vadd.f32 %v839, %v842
  %vm844 = vweird.f32 %v838
  %vm845 = vweird.f32 %v839
  %vm846 = vmor %vm844, %vm845
  %v847 = vsel %vm846, %v839, %v843
  %v848 = vand.u32 2147483647, %v838
  %vm849 = vcmp.eq.f32.partialorder %v848, 8.507059e+37
  %v850 = vand.u32 %v838, 2147483648
  %v851 = vor.u32 1.1754944e-38, %v850
  %v852 = vsel %vm849, %v851, %v847
  %v853 = vmul.f32 1.0, %v852
  %v854 = vadd.f32 %v752, %v347
  %v855 = vmul.f32 %v833, %v854
  %v856 = vadd.f32 %v687, %v855
  %v857 = vtanh.pop %v856
  %v858 = vsub.f32 1.0, %v853
  %v859 = vmul.f32 %v858, %v857
  %v860 = vmul.f32 %v853, %v680
  %v861 = vadd.f32 %v859, %v860
  %v862 = vadd.f32 %v691, %v772
  %v863 = vxor.u32 %v862, 2147483648
  %v864 = vmul.f32 %v863, 1.442695
  %v865 = vpow.pop %v864
  %v866 = vadd.f32 %v865, 1.0
  %v867 = vrcp.pop %v866
  %v868 = vmul.f32 %v866, %v867
  %v869 = vsub.f32 1.0, %v868
  %v870 = vmul.f32 %v867, %v869
  %v871 = vadd.f32 %v867, %v870
  %vm872 = vweird.f32 %v866
  %vm873 = vweird.f32 %v867
  %vm874 = vmor %vm872, %vm873
  %v875 = vsel %vm874, %v867, %v871
  %v876 = vand.u32 2147483647, %v866
  %vm877 = vcmp.eq.f32.partialorder %v876, 8.507059e+37
  %v878 = vand.u32 %v866, 2147483648
  %v879 = vor.u32 1.1754944e-38, %v878
  %v880 = vsel %vm877, %v879, %v875
  %v881 = vmul.f32 1.0, %v880
  %v882 = vadd.f32 %v692, %v792
  %v883 = vxor.u32 %v882, 2147483648
  %v884 = vmul.f32 %v883, 1.442695
  %v885 = vpow.pop %v884
  %v886 = vadd.f32 %v885, 1.0
  %v887 = vrcp.pop %v886
  %v888 = vmul.f32 %v886, %v887
  %v889 = vsub.f32 1.0, %v888
  %v890 = vmul.f32 %v887, %v889
  %v891 = vadd.f32 %v887, %v890
  %vm892 = vweird.f32 %v886
  %vm893 = vweird.f32 %v887
  %vm894 = vmor %vm892, %vm893
  %v895 = vsel %vm894, %v887, %v891
  %v896 = vand.u32 2147483647, %v886
  %vm897 = vcmp.eq.f32.partialorder %v896, 8.507059e+37
  %v898 = vand.u32 %v886, 2147483648
  %v899 = vor.u32 1.1754944e-38, %v898
  %v900 = vsel %vm897, %v899, %v895
  %v901 = vmul.f32 1.0, %v900
  %v902 = vadd.f32 %v812, %v398
  %v903 = vmul.f32 %v881, %v902
  %v904 = vadd.f32 %v693, %v903
  %v905 = vtanh.pop %v904
  %v906 = vsub.f32 1.0, %v901
  %v907 = vmul.f32 %v906, %v905
  %v908 = vmul.f32 %v901, %v681
  %v909 = vadd.f32 %v907, %v908
  %s910 = sadd.s32 %s169, 2
  %v911 = vstv %s910
  %vm912 = vcmp.gt.s32.totalorder %v68, %v911
  %s913 = sadd.s32 %s171, 5
  %v914 = vstv %s913
  %vm915 = vcmp.gt.s32.totalorder %v68, %v914
  %v916 = vsel %vm912, 1, 0
  %917 = vset.pattern.permute.xlu0 0
  %918 = vperm.xlu0 %917, %v916
  %v919 = vpop.permute.xlu0 %918
  %vm920 = vcmp.eq.s32.totalorder %v919, 1
  %v921 = vsel %vm920, %v861, 0.0
  %s922 = scalar_lea.vmem %s5, 16
  %923 = vst [vmem:[%s922] sm:$0xff] %v921
  %v924 = vsel %vm915, 1, 0
  %925 = vset.pattern.permute.xlu0 0
  %926 = vperm.xlu0 %925, %v924
  %v927 = vpop.permute.xlu0 %926
  %vm928 = vcmp.eq.s32.totalorder %v927, 1
  %v929 = vsel %vm928, %v909, 0.0
  %s930 = scalar_lea.vmem %s59, 40
  %931 = vst [vmem:[%s930] sm:$0xff] %v929
  %v932 = vsel %vm920, %v861, %v680
  %v933 = vsel %vm928, %v909, %v681
  %s934 = scalar_lea.vmem %s1, 36
  %v935 = vld [vmem:[%s934] sm:$0xff]
  %v936 = vld [vmem:[%s934 + $0x8] sm:$0xf]
  %v937 = vunpack.c.l.bf16 %v935
  %v938 = vunpack.c.h.bf16 %v935
  %v939 = vunpack.c.l.bf16 %v936
  %s940 = scalar_lea.vmem %s51, 48
  %v941 = vld [vmem:[%s940] sm:$0xff]
  %v942 = vld [vmem:[%s940 + $0x8] sm:$0xf]
  %v943 = vunpack.c.l.bf16 %v941
  %v944 = vunpack.c.h.bf16 %v941
  %v945 = vunpack.c.l.bf16 %v942
  %946 = vmatpush.msra.mxu0 %v114
  %947 = vmatpush.msra.mxu0 %v111
  %948 = vmatpush.msra.mxu0 %v108
  %949 = vmatpush.msra.mxu0 %v105
  %950 = vmatpush.msra.mxu0 %v102
  %951 = vmatpush.msra.mxu0 %v99
  %952 = vmatpush.msra.mxu0 %v96
  %953 = vmatpush.msra.mxu0 %v93
  %954 = vmatpush.msra.mxu0 %v90
  %955 = vmatpush.msra.mxu0 %v87
  %956 = vmatpush.msra.mxu0 %v84
  %957 = vmatpush.msra.mxu0 %v81
  %958 = vmatpush.msra.mxu0 %v78
  %959 = vmatpush.msra.mxu0 %v75
  %960 = vmatpush.msra.mxu0 %v72
  %961 = vmatpush.msra.mxu0 %v69
  %962 = vmatmul.f32.gmra.mxu0 %v932
  %v963 = vpop.f32.mrf.mxu0
  %v964 = vadd.f32 0.0, %v963
  %965 = vdwg.mxu0
  %966 = vmatpush.msra.mxu0 %v115
  %967 = vmatpush.msra.mxu0 %v112
  %968 = vmatpush.msra.mxu0 %v109
  %969 = vmatpush.msra.mxu0 %v106
  %970 = vmatpush.msra.mxu0 %v103
  %971 = vmatpush.msra.mxu0 %v100
  %972 = vmatpush.msra.mxu0 %v97
  %973 = vmatpush.msra.mxu0 %v94
  %974 = vmatpush.msra.mxu0 %v91
  %975 = vmatpush.msra.mxu0 %v88
  %976 = vmatpush.msra.mxu0 %v85
  %977 = vmatpush.msra.mxu0 %v82
  %978 = vmatpush.msra.mxu0 %v79
  %979 = vmatpush.msra.mxu0 %v76
  %980 = vmatpush.msra.mxu0 %v73
  %981 = vmatpush.msra.mxu0 %v70
  %982 = vmatmul.f32.gmra.mxu0 %v932
  %v983 = vpop.f32.mrf.mxu0
  %v984 = vadd.f32 0.0, %v983
  %985 = vdwg.mxu0
  %986 = vmatpush.msra.mxu0 %v116
  %987 = vmatpush.msra.mxu0 %v113
  %988 = vmatpush.msra.mxu0 %v110
  %989 = vmatpush.msra.mxu0 %v107
  %990 = vmatpush.msra.mxu0 %v104
  %991 = vmatpush.msra.mxu0 %v101
  %992 = vmatpush.msra.mxu0 %v98
  %993 = vmatpush.msra.mxu0 %v95
  %994 = vmatpush.msra.mxu0 %v92
  %995 = vmatpush.msra.mxu0 %v89
  %996 = vmatpush.msra.mxu0 %v86
  %997 = vmatpush.msra.mxu0 %v83
  %998 = vmatpush.msra.mxu0 %v80
  %999 = vmatpush.msra.mxu0 %v77
  %1000 = vmatpush.msra.mxu0 %v74
  %1001 = vmatpush.msra.mxu0 %v71
  %1002 = vmatmul.f32.gmra.mxu0 %v932
  %v1003 = vpop.f32.mrf.mxu0
  %v1004 = vadd.f32 0.0, %v1003
  %1005 = vdwg.mxu0
  %1006 = vmatpush.msra.mxu0 %v163
  %1007 = vmatpush.msra.mxu0 %v160
  %1008 = vmatpush.msra.mxu0 %v157
  %1009 = vmatpush.msra.mxu0 %v154
  %1010 = vmatpush.msra.mxu0 %v151
  %1011 = vmatpush.msra.mxu0 %v148
  %1012 = vmatpush.msra.mxu0 %v145
  %1013 = vmatpush.msra.mxu0 %v142
  %1014 = vmatpush.msra.mxu0 %v139
  %1015 = vmatpush.msra.mxu0 %v136
  %1016 = vmatpush.msra.mxu0 %v133
  %1017 = vmatpush.msra.mxu0 %v130
  %1018 = vmatpush.msra.mxu0 %v127
  %1019 = vmatpush.msra.mxu0 %v124
  %1020 = vmatpush.msra.mxu0 %v121
  %1021 = vmatpush.msra.mxu0 %v118
  %1022 = vmatmul.f32.gmra.mxu0 %v933
  %v1023 = vpop.f32.mrf.mxu0
  %v1024 = vadd.f32 0.0, %v1023
  %1025 = vdwg.mxu0
  %1026 = vmatpush.msra.mxu0 %v164
  %1027 = vmatpush.msra.mxu0 %v161
  %1028 = vmatpush.msra.mxu0 %v158
  %1029 = vmatpush.msra.mxu0 %v155
  %1030 = vmatpush.msra.mxu0 %v152
  %1031 = vmatpush.msra.mxu0 %v149
  %1032 = vmatpush.msra.mxu0 %v146
  %1033 = vmatpush.msra.mxu0 %v143
  %1034 = vmatpush.msra.mxu0 %v140
  %1035 = vmatpush.msra.mxu0 %v137
  %1036 = vmatpush.msra.mxu0 %v134
  %1037 = vmatpush.msra.mxu0 %v131
  %1038 = vmatpush.msra.mxu0 %v128
  %1039 = vmatpush.msra.mxu0 %v125
  %1040 = vmatpush.msra.mxu0 %v122
  %1041 = vmatpush.msra.mxu0 %v119
  %1042 = vmatmul.f32.gmra.mxu0 %v933
  %v1043 = vpop.f32.mrf.mxu0
  %v1044 = vadd.f32 0.0, %v1043
  %1045 = vdwg.mxu0
  %1046 = vmatpush.msra.mxu0 %v165
  %1047 = vmatpush.msra.mxu0 %v162
  %1048 = vmatpush.msra.mxu0 %v159
  %1049 = vmatpush.msra.mxu0 %v156
  %1050 = vmatpush.msra.mxu0 %v153
  %1051 = vmatpush.msra.mxu0 %v150
  %1052 = vmatpush.msra.mxu0 %v147
  %1053 = vmatpush.msra.mxu0 %v144
  %1054 = vmatpush.msra.mxu0 %v141
  %1055 = vmatpush.msra.mxu0 %v138
  %1056 = vmatpush.msra.mxu0 %v135
  %1057 = vmatpush.msra.mxu0 %v132
  %1058 = vmatpush.msra.mxu0 %v129
  %1059 = vmatpush.msra.mxu0 %v126
  %1060 = vmatpush.msra.mxu0 %v123
  %1061 = vmatpush.msra.mxu0 %v120
  %1062 = vmatmul.f32.gmra.mxu0 %v933
  %v1063 = vpop.f32.mrf.mxu0
  %v1064 = vadd.f32 0.0, %v1063
  %1065 = vdwg.mxu0
  %v1066 = vadd.f32 %v937, %v964
  %v1067 = vxor.u32 %v1066, 2147483648
  %v1068 = vmul.f32 %v1067, 1.442695
  %v1069 = vpow.pop %v1068
  %v1070 = vadd.f32 %v1069, 1.0
  %v1071 = vrcp.pop %v1070
  %v1072 = vmul.f32 %v1070, %v1071
  %v1073 = vsub.f32 1.0, %v1072
  %v1074 = vmul.f32 %v1071, %v1073
  %v1075 = vadd.f32 %v1071, %v1074
  %vm1076 = vweird.f32 %v1070
  %vm1077 = vweird.f32 %v1071
  %vm1078 = vmor %vm1076, %vm1077
  %v1079 = vsel %vm1078, %v1071, %v1075
  %v1080 = vand.u32 2147483647, %v1070
  %vm1081 = vcmp.eq.f32.partialorder %v1080, 8.507059e+37
  %v1082 = vand.u32 %v1070, 2147483648
  %v1083 = vor.u32 1.1754944e-38, %v1082
  %v1084 = vsel %vm1081, %v1083, %v1079
  %v1085 = vmul.f32 1.0, %v1084
  %v1086 = vadd.f32 %v938, %v984
  %v1087 = vxor.u32 %v1086, 2147483648
  %v1088 = vmul.f32 %v1087, 1.442695
  %v1089 = vpow.pop %v1088
  %v1090 = vadd.f32 %v1089, 1.0
  %v1091 = vrcp.pop %v1090
  %v1092 = vmul.f32 %v1090, %v1091
  %v1093 = vsub.f32 1.0, %v1092
  %v1094 = vmul.f32 %v1091, %v1093
  %v1095 = vadd.f32 %v1091, %v1094
  %vm1096 = vweird.f32 %v1090
  %vm1097 = vweird.f32 %v1091
  %vm1098 = vmor %vm1096, %vm1097
  %v1099 = vsel %vm1098, %v1091, %v1095
  %v1100 = vand.u32 2147483647, %v1090
  %vm1101 = vcmp.eq.f32.partialorder %v1100, 8.507059e+37
  %v1102 = vand.u32 %v1090, 2147483648
  %v1103 = vor.u32 1.1754944e-38, %v1102
  %v1104 = vsel %vm1101, %v1103, %v1099
  %v1105 = vmul.f32 1.0, %v1104
  %v1106 = vadd.f32 %v1004, %v347
  %v1107 = vmul.f32 %v1085, %v1106
  %v1108 = vadd.f32 %v939, %v1107
  %v1109 = vtanh.pop %v1108
  %v1110 = vsub.f32 1.0, %v1105
  %v1111 = vmul.f32 %v1110, %v1109
  %v1112 = vmul.f32 %v1105, %v932
  %v1113 = vadd.f32 %v1111, %v1112
  %v1114 = vadd.f32 %v943, %v1024
  %v1115 = vxor.u32 %v1114, 2147483648
  %v1116 = vmul.f32 %v1115, 1.442695
  %v1117 = vpow.pop %v1116
  %v1118 = vadd.f32 %v1117, 1.0
  %v1119 = vrcp.pop %v1118
  %v1120 = vmul.f32 %v1118, %v1119
  %v1121 = vsub.f32 1.0, %v1120
  %v1122 = vmul.f32 %v1119, %v1121
  %v1123 = vadd.f32 %v1119, %v1122
  %vm1124 = vweird.f32 %v1118
  %vm1125 = vweird.f32 %v1119
  %vm1126 = vmor %vm1124, %vm1125
  %v1127 = vsel %vm1126, %v1119, %v1123
  %v1128 = vand.u32 2147483647, %v1118
  %vm1129 = vcmp.eq.f32.partialorder %v1128, 8.507059e+37
  %v1130 = vand.u32 %v1118, 2147483648
  %v1131 = vor.u32 1.1754944e-38, %v1130
  %v1132 = vsel %vm1129, %v1131, %v1127
  %v1133 = vmul.f32 1.0, %v1132
  %v1134 = vadd.f32 %v944, %v1044
  %v1135 = vxor.u32 %v1134, 2147483648
  %v1136 = vmul.f32 %v1135, 1.442695
  %v1137 = vpow.pop %v1136
  %v1138 = vadd.f32 %v1137, 1.0
  %v1139 = vrcp.pop %v1138
  %v1140 = vmul.f32 %v1138, %v1139
  %v1141 = vsub.f32 1.0, %v1140
  %v1142 = vmul.f32 %v1139, %v1141
  %v1143 = vadd.f32 %v1139, %v1142
  %vm1144 = vweird.f32 %v1138
  %vm1145 = vweird.f32 %v1139
  %vm1146 = vmor %vm1144, %vm1145
  %v1147 = vsel %vm1146, %v1139, %v1143
  %v1148 = vand.u32 2147483647, %v1138
  %vm1149 = vcmp.eq.f32.partialorder %v1148, 8.507059e+37
  %v1150 = vand.u32 %v1138, 2147483648
  %v1151 = vor.u32 1.1754944e-38, %v1150
  %v1152 = vsel %vm1149, %v1151, %v1147
  %v1153 = vmul.f32 1.0, %v1152
  %v1154 = vadd.f32 %v1064, %v398
  %v1155 = vmul.f32 %v1133, %v1154
  %v1156 = vadd.f32 %v945, %v1155
  %v1157 = vtanh.pop %v1156
  %v1158 = vsub.f32 1.0, %v1153
  %v1159 = vmul.f32 %v1158, %v1157
  %v1160 = vmul.f32 %v1153, %v933
  %v1161 = vadd.f32 %v1159, %v1160
  %s1162 = sadd.s32 %s169, 3
  %v1163 = vstv %s1162
  %vm1164 = vcmp.gt.s32.totalorder %v68, %v1163
  %s1165 = sadd.s32 %s171, 4
  %v1166 = vstv %s1165
  %vm1167 = vcmp.gt.s32.totalorder %v68, %v1166
  %v1168 = vsel %vm1164, 1, 0
  %1169 = vset.pattern.permute.xlu0 0
  %1170 = vperm.xlu0 %1169, %v1168
  %v1171 = vpop.permute.xlu0 %1170
  %vm1172 = vcmp.eq.s32.totalorder %v1171, 1
  %v1173 = vsel %vm1172, %v1113, 0.0
  %s1174 = scalar_lea.vmem %s5, 24
  %1175 = vst [vmem:[%s1174] sm:$0xff] %v1173
  %v1176 = vsel %vm1167, 1, 0
  %1177 = vset.pattern.permute.xlu0 0
  %1178 = vperm.xlu0 %1177, %v1176
  %v1179 = vpop.permute.xlu0 %1178
  %vm1180 = vcmp.eq.s32.totalorder %v1179, 1
  %v1181 = vsel %vm1180, %v1161, 0.0
  %s1182 = scalar_lea.vmem %s59, 32
  %1183 = vst [vmem:[%s1182] sm:$0xff] %v1181
  %v1184 = vsel %vm1172, %v1113, %v932
  %v1185 = vsel %vm1180, %v1161, %v933
  %s1186 = scalar_lea.vmem %s1, 48
  %v1187 = vld [vmem:[%s1186] sm:$0xff]
  %v1188 = vld [vmem:[%s1186 + $0x8] sm:$0xf]
  %v1189 = vunpack.c.l.bf16 %v1187
  %v1190 = vunpack.c.h.bf16 %v1187
  %v1191 = vunpack.c.l.bf16 %v1188
  %s1192 = scalar_lea.vmem %s51, 36
  %v1193 = vld [vmem:[%s1192] sm:$0xff]
  %v1194 = vld [vmem:[%s1192 + $0x8] sm:$0xf]
  %v1195 = vunpack.c.l.bf16 %v1193
  %v1196 = vunpack.c.h.bf16 %v1193
  %v1197 = vunpack.c.l.bf16 %v1194
  %1198 = vmatpush.msra.mxu0 %v114
  %1199 = vmatpush.msra.mxu0 %v111
  %1200 = vmatpush.msra.mxu0 %v108
  %1201 = vmatpush.msra.mxu0 %v105
  %1202 = vmatpush.msra.mxu0 %v102
  %1203 = vmatpush.msra.mxu0 %v99
  %1204 = vmatpush.msra.mxu0 %v96
  %1205 = vmatpush.msra.mxu0 %v93
  %1206 = vmatpush.msra.mxu0 %v90
  %1207 = vmatpush.msra.mxu0 %v87
  %1208 = vmatpush.msra.mxu0 %v84
  %1209 = vmatpush.msra.mxu0 %v81
  %1210 = vmatpush.msra.mxu0 %v78
  %1211 = vmatpush.msra.mxu0 %v75
  %1212 = vmatpush.msra.mxu0 %v72
  %1213 = vmatpush.msra.mxu0 %v69
  %1214 = vmatmul.f32.gmra.mxu0 %v1184
  %v1215 = vpop.f32.mrf.mxu0
  %v1216 = vadd.f32 0.0, %v1215
  %1217 = vdwg.mxu0
  %1218 = vmatpush.msra.mxu0 %v115
  %1219 = vmatpush.msra.mxu0 %v112
  %1220 = vmatpush.msra.mxu0 %v109
  %1221 = vmatpush.msra.mxu0 %v106
  %1222 = vmatpush.msra.mxu0 %v103
  %1223 = vmatpush.msra.mxu0 %v100
  %1224 = vmatpush.msra.mxu0 %v97
  %1225 = vmatpush.msra.mxu0 %v94
  %1226 = vmatpush.msra.mxu0 %v91
  %1227 = vmatpush.msra.mxu0 %v88
  %1228 = vmatpush.msra.mxu0 %v85
  %1229 = vmatpush.msra.mxu0 %v82
  %1230 = vmatpush.msra.mxu0 %v79
  %1231 = vmatpush.msra.mxu0 %v76
  %1232 = vmatpush.msra.mxu0 %v73
  %1233 = vmatpush.msra.mxu0 %v70
  %1234 = vmatmul.f32.gmra.mxu0 %v1184
  %v1235 = vpop.f32.mrf.mxu0
  %v1236 = vadd.f32 0.0, %v1235
  %1237 = vdwg.mxu0
  %1238 = vmatpush.msra.mxu0 %v116
  %1239 = vmatpush.msra.mxu0 %v113
  %1240 = vmatpush.msra.mxu0 %v110
  %1241 = vmatpush.msra.mxu0 %v107
  %1242 = vmatpush.msra.mxu0 %v104
  %1243 = vmatpush.msra.mxu0 %v101
  %1244 = vmatpush.msra.mxu0 %v98
  %1245 = vmatpush.msra.mxu0 %v95
  %1246 = vmatpush.msra.mxu0 %v92
  %1247 = vmatpush.msra.mxu0 %v89
  %1248 = vmatpush.msra.mxu0 %v86
  %1249 = vmatpush.msra.mxu0 %v83
  %1250 = vmatpush.msra.mxu0 %v80
  %1251 = vmatpush.msra.mxu0 %v77
  %1252 = vmatpush.msra.mxu0 %v74
  %1253 = vmatpush.msra.mxu0 %v71
  %1254 = vmatmul.f32.gmra.mxu0 %v1184
  %v1255 = vpop.f32.mrf.mxu0
  %v1256 = vadd.f32 0.0, %v1255
  %1257 = vdwg.mxu0
  %1258 = vmatpush.msra.mxu0 %v163
  %1259 = vmatpush.msra.mxu0 %v160
  %1260 = vmatpush.msra.mxu0 %v157
  %1261 = vmatpush.msra.mxu0 %v154
  %1262 = vmatpush.msra.mxu0 %v151
  %1263 = vmatpush.msra.mxu0 %v148
  %1264 = vmatpush.msra.mxu0 %v145
  %1265 = vmatpush.msra.mxu0 %v142
  %1266 = vmatpush.msra.mxu0 %v139
  %1267 = vmatpush.msra.mxu0 %v136
  %1268 = vmatpush.msra.mxu0 %v133
  %1269 = vmatpush.msra.mxu0 %v130
  %1270 = vmatpush.msra.mxu0 %v127
  %1271 = vmatpush.msra.mxu0 %v124
  %1272 = vmatpush.msra.mxu0 %v121
  %1273 = vmatpush.msra.mxu0 %v118
  %1274 = vmatmul.f32.gmra.mxu0 %v1185
  %v1275 = vpop.f32.mrf.mxu0
  %v1276 = vadd.f32 0.0, %v1275
  %1277 = vdwg.mxu0
  %1278 = vmatpush.msra.mxu0 %v164
  %1279 = vmatpush.msra.mxu0 %v161
  %1280 = vmatpush.msra.mxu0 %v158
  %1281 = vmatpush.msra.mxu0 %v155
  %1282 = vmatpush.msra.mxu0 %v152
  %1283 = vmatpush.msra.mxu0 %v149
  %1284 = vmatpush.msra.mxu0 %v146
  %1285 = vmatpush.msra.mxu0 %v143
  %1286 = vmatpush.msra.mxu0 %v140
  %1287 = vmatpush.msra.mxu0 %v137
  %1288 = vmatpush.msra.mxu0 %v134
  %1289 = vmatpush.msra.mxu0 %v131
  %1290 = vmatpush.msra.mxu0 %v128
  %1291 = vmatpush.msra.mxu0 %v125
  %1292 = vmatpush.msra.mxu0 %v122
  %1293 = vmatpush.msra.mxu0 %v119
  %1294 = vmatmul.f32.gmra.mxu0 %v1185
  %v1295 = vpop.f32.mrf.mxu0
  %v1296 = vadd.f32 0.0, %v1295
  %1297 = vdwg.mxu0
  %1298 = vmatpush.msra.mxu0 %v165
  %1299 = vmatpush.msra.mxu0 %v162
  %1300 = vmatpush.msra.mxu0 %v159
  %1301 = vmatpush.msra.mxu0 %v156
  %1302 = vmatpush.msra.mxu0 %v153
  %1303 = vmatpush.msra.mxu0 %v150
  %1304 = vmatpush.msra.mxu0 %v147
  %1305 = vmatpush.msra.mxu0 %v144
  %1306 = vmatpush.msra.mxu0 %v141
  %1307 = vmatpush.msra.mxu0 %v138
  %1308 = vmatpush.msra.mxu0 %v135
  %1309 = vmatpush.msra.mxu0 %v132
  %1310 = vmatpush.msra.mxu0 %v129
  %1311 = vmatpush.msra.mxu0 %v126
  %1312 = vmatpush.msra.mxu0 %v123
  %1313 = vmatpush.msra.mxu0 %v120
  %1314 = vmatmul.f32.gmra.mxu0 %v1185
  %v1315 = vpop.f32.mrf.mxu0
  %v1316 = vadd.f32 0.0, %v1315
  %1317 = vdwg.mxu0
  %v1318 = vadd.f32 %v1189, %v1216
  %v1319 = vxor.u32 %v1318, 2147483648
  %v1320 = vmul.f32 %v1319, 1.442695
  %v1321 = vpow.pop %v1320
  %v1322 = vadd.f32 %v1321, 1.0
  %v1323 = vrcp.pop %v1322
  %v1324 = vmul.f32 %v1322, %v1323
  %v1325 = vsub.f32 1.0, %v1324
  %v1326 = vmul.f32 %v1323, %v1325
  %v1327 = vadd.f32 %v1323, %v1326
  %vm1328 = vweird.f32 %v1322
  %vm1329 = vweird.f32 %v1323
  %vm1330 = vmor %vm1328, %vm1329
  %v1331 = vsel %vm1330, %v1323, %v1327
  %v1332 = vand.u32 2147483647, %v1322
  %vm1333 = vcmp.eq.f32.partialorder %v1332, 8.507059e+37
  %v1334 = vand.u32 %v1322, 2147483648
  %v1335 = vor.u32 1.1754944e-38, %v1334
  %v1336 = vsel %vm1333, %v1335, %v1331
  %v1337 = vmul.f32 1.0, %v1336
  %v1338 = vadd.f32 %v1190, %v1236
  %v1339 = vxor.u32 %v1338, 2147483648
  %v1340 = vmul.f32 %v1339, 1.442695
  %v1341 = vpow.pop %v1340
  %v1342 = vadd.f32 %v1341, 1.0
  %v1343 = vrcp.pop %v1342
  %v1344 = vmul.f32 %v1342, %v1343
  %v1345 = vsub.f32 1.0, %v1344
  %v1346 = vmul.f32 %v1343, %v1345
  %v1347 = vadd.f32 %v1343, %v1346
  %vm1348 = vweird.f32 %v1342
  %vm1349 = vweird.f32 %v1343
  %vm1350 = vmor %vm1348, %vm1349
  %v1351 = vsel %vm1350, %v1343, %v1347
  %v1352 = vand.u32 2147483647, %v1342
  %vm1353 = vcmp.eq.f32.partialorder %v1352, 8.507059e+37
  %v1354 = vand.u32 %v1342, 2147483648
  %v1355 = vor.u32 1.1754944e-38, %v1354
  %v1356 = vsel %vm1353, %v1355, %v1351
  %v1357 = vmul.f32 1.0, %v1356
  %v1358 = vadd.f32 %v1256, %v347
  %v1359 = vmul.f32 %v1337, %v1358
  %v1360 = vadd.f32 %v1191, %v1359
  %v1361 = vtanh.pop %v1360
  %v1362 = vsub.f32 1.0, %v1357
  %v1363 = vmul.f32 %v1362, %v1361
  %v1364 = vmul.f32 %v1357, %v1184
  %v1365 = vadd.f32 %v1363, %v1364
  %v1366 = vadd.f32 %v1195, %v1276
  %v1367 = vxor.u32 %v1366, 2147483648
  %v1368 = vmul.f32 %v1367, 1.442695
  %v1369 = vpow.pop %v1368
  %v1370 = vadd.f32 %v1369, 1.0
  %v1371 = vrcp.pop %v1370
  %v1372 = vmul.f32 %v1370, %v1371
  %v1373 = vsub.f32 1.0, %v1372
  %v1374 = vmul.f32 %v1371, %v1373
  %v1375 = vadd.f32 %v1371, %v1374
  %vm1376 = vweird.f32 %v1370
  %vm1377 = vweird.f32 %v1371
  %vm1378 = vmor %vm1376, %vm1377
  %v1379 = vsel %vm1378, %v1371, %v1375
  %v1380 = vand.u32 2147483647, %v1370
  %vm1381 = vcmp.eq.f32.partialorder %v1380, 8.507059e+37
  %v1382 = vand.u32 %v1370, 2147483648
  %v1383 = vor.u32 1.1754944e-38, %v1382
  %v1384 = vsel %vm1381, %v1383, %v1379
  %v1385 = vmul.f32 1.0, %v1384
  %v1386 = vadd.f32 %v1196, %v1296
  %v1387 = vxor.u32 %v1386, 2147483648
  %v1388 = vmul.f32 %v1387, 1.442695
  %v1389 = vpow.pop %v1388
  %v1390 = vadd.f32 %v1389, 1.0
  %v1391 = vrcp.pop %v1390
  %v1392 = vmul.f32 %v1390, %v1391
  %v1393 = vsub.f32 1.0, %v1392
  %v1394 = vmul.f32 %v1391, %v1393
  %v1395 = vadd.f32 %v1391, %v1394
  %vm1396 = vweird.f32 %v1390
  %vm1397 = vweird.f32 %v1391
  %vm1398 = vmor %vm1396, %vm1397
  %v1399 = vsel %vm1398, %v1391, %v1395
  %v1400 = vand.u32 2147483647, %v1390
  %vm1401 = vcmp.eq.f32.partialorder %v1400, 8.507059e+37
  %v1402 = vand.u32 %v1390, 2147483648
  %v1403 = vor.u32 1.1754944e-38, %v1402
  %v1404 = vsel %vm1401, %v1403, %v1399
  %v1405 = vmul.f32 1.0, %v1404
  %v1406 = vadd.f32 %v1316, %v398
  %v1407 = vmul.f32 %v1385, %v1406
  %v1408 = vadd.f32 %v1197, %v1407
  %v1409 = vtanh.pop %v1408
  %v1410 = vsub.f32 1.0, %v1405
  %v1411 = vmul.f32 %v1410, %v1409
  %v1412 = vmul.f32 %v1405, %v1185
  %v1413 = vadd.f32 %v1411, %v1412
  %s1414 = sadd.s32 %s169, 4
  %v1415 = vstv %s1414
  %vm1416 = vcmp.gt.s32.totalorder %v68, %v1415
  %s1417 = sadd.s32 %s171, 3
  %v1418 = vstv %s1417
  %vm1419 = vcmp.gt.s32.totalorder %v68, %v1418
  %v1420 = vsel %vm1416, 1, 0
  %1421 = vset.pattern.permute.xlu0 0
  %1422 = vperm.xlu0 %1421, %v1420
  %v1423 = vpop.permute.xlu0 %1422
  %vm1424 = vcmp.eq.s32.totalorder %v1423, 1
  %v1425 = vsel %vm1424, %v1365, 0.0
  %s1426 = scalar_lea.vmem %s5, 32
  %1427 = vst [vmem:[%s1426] sm:$0xff] %v1425
  %v1428 = vsel %vm1419, 1, 0
  %1429 = vset.pattern.permute.xlu0 0
  %1430 = vperm.xlu0 %1429, %v1428
  %v1431 = vpop.permute.xlu0 %1430
  %vm1432 = vcmp.eq.s32.totalorder %v1431, 1
  %v1433 = vsel %vm1432, %v1413, 0.0
  %s1434 = scalar_lea.vmem %s59, 24
  %1435 = vst [vmem:[%s1434] sm:$0xff] %v1433
  %v1436 = vsel %vm1424, %v1365, %v1184
  %v1437 = vsel %vm1432, %v1413, %v1185
  %s1438 = scalar_lea.vmem %s1, 60
  %v1439 = vld [vmem:[%s1438] sm:$0xff]
  %v1440 = vld [vmem:[%s1438 + $0x8] sm:$0xf]
  %v1441 = vunpack.c.l.bf16 %v1439
  %v1442 = vunpack.c.h.bf16 %v1439
  %v1443 = vunpack.c.l.bf16 %v1440
  %s1444 = scalar_lea.vmem %s51, 24
  %v1445 = vld [vmem:[%s1444] sm:$0xff]
  %v1446 = vld [vmem:[%s1444 + $0x8] sm:$0xf]
  %v1447 = vunpack.c.l.bf16 %v1445
  %v1448 = vunpack.c.h.bf16 %v1445
  %v1449 = vunpack.c.l.bf16 %v1446
  %1450 = vmatpush.msra.mxu0 %v114
  %1451 = vmatpush.msra.mxu0 %v111
  %1452 = vmatpush.msra.mxu0 %v108
  %1453 = vmatpush.msra.mxu0 %v105
  %1454 = vmatpush.msra.mxu0 %v102
  %1455 = vmatpush.msra.mxu0 %v99
  %1456 = vmatpush.msra.mxu0 %v96
  %1457 = vmatpush.msra.mxu0 %v93
  %1458 = vmatpush.msra.mxu0 %v90
  %1459 = vmatpush.msra.mxu0 %v87
  %1460 = vmatpush.msra.mxu0 %v84
  %1461 = vmatpush.msra.mxu0 %v81
  %1462 = vmatpush.msra.mxu0 %v78
  %1463 = vmatpush.msra.mxu0 %v75
  %1464 = vmatpush.msra.mxu0 %v72
  %1465 = vmatpush.msra.mxu0 %v69
  %1466 = vmatmul.f32.gmra.mxu0 %v1436
  %v1467 = vpop.f32.mrf.mxu0
  %v1468 = vadd.f32 0.0, %v1467
  %1469 = vdwg.mxu0
  %1470 = vmatpush.msra.mxu0 %v115
  %1471 = vmatpush.msra.mxu0 %v112
  %1472 = vmatpush.msra.mxu0 %v109
  %1473 = vmatpush.msra.mxu0 %v106
  %1474 = vmatpush.msra.mxu0 %v103
  %1475 = vmatpush.msra.mxu0 %v100
  %1476 = vmatpush.msra.mxu0 %v97
  %1477 = vmatpush.msra.mxu0 %v94
  %1478 = vmatpush.msra.mxu0 %v91
  %1479 = vmatpush.msra.mxu0 %v88
  %1480 = vmatpush.msra.mxu0 %v85
  %1481 = vmatpush.msra.mxu0 %v82
  %1482 = vmatpush.msra.mxu0 %v79
  %1483 = vmatpush.msra.mxu0 %v76
  %1484 = vmatpush.msra.mxu0 %v73
  %1485 = vmatpush.msra.mxu0 %v70
  %1486 = vmatmul.f32.gmra.mxu0 %v1436
  %v1487 = vpop.f32.mrf.mxu0
  %v1488 = vadd.f32 0.0, %v1487
  %1489 = vdwg.mxu0
  %1490 = vmatpush.msra.mxu0 %v116
  %1491 = vmatpush.msra.mxu0 %v113
  %1492 = vmatpush.msra.mxu0 %v110
  %1493 = vmatpush.msra.mxu0 %v107
  %1494 = vmatpush.msra.mxu0 %v104
  %1495 = vmatpush.msra.mxu0 %v101
  %1496 = vmatpush.msra.mxu0 %v98
  %1497 = vmatpush.msra.mxu0 %v95
  %1498 = vmatpush.msra.mxu0 %v92
  %1499 = vmatpush.msra.mxu0 %v89
  %1500 = vmatpush.msra.mxu0 %v86
  %1501 = vmatpush.msra.mxu0 %v83
  %1502 = vmatpush.msra.mxu0 %v80
  %1503 = vmatpush.msra.mxu0 %v77
  %1504 = vmatpush.msra.mxu0 %v74
  %1505 = vmatpush.msra.mxu0 %v71
  %1506 = vmatmul.f32.gmra.mxu0 %v1436
  %v1507 = vpop.f32.mrf.mxu0
  %v1508 = vadd.f32 0.0, %v1507
  %1509 = vdwg.mxu0
  %1510 = vmatpush.msra.mxu0 %v163
  %1511 = vmatpush.msra.mxu0 %v160
  %1512 = vmatpush.msra.mxu0 %v157
  %1513 = vmatpush.msra.mxu0 %v154
  %1514 = vmatpush.msra.mxu0 %v151
  %1515 = vmatpush.msra.mxu0 %v148
  %1516 = vmatpush.msra.mxu0 %v145
  %1517 = vmatpush.msra.mxu0 %v142
  %1518 = vmatpush.msra.mxu0 %v139
  %1519 = vmatpush.msra.mxu0 %v136
  %1520 = vmatpush.msra.mxu0 %v133
  %1521 = vmatpush.msra.mxu0 %v130
  %1522 = vmatpush.msra.mxu0 %v127
  %1523 = vmatpush.msra.mxu0 %v124
  %1524 = vmatpush.msra.mxu0 %v121
  %1525 = vmatpush.msra.mxu0 %v118
  %1526 = vmatmul.f32.gmra.mxu0 %v1437
  %v1527 = vpop.f32.mrf.mxu0
  %v1528 = vadd.f32 0.0, %v1527
  %1529 = vdwg.mxu0
  %1530 = vmatpush.msra.mxu0 %v164
  %1531 = vmatpush.msra.mxu0 %v161
  %1532 = vmatpush.msra.mxu0 %v158
  %1533 = vmatpush.msra.mxu0 %v155
  %1534 = vmatpush.msra.mxu0 %v152
  %1535 = vmatpush.msra.mxu0 %v149
  %1536 = vmatpush.msra.mxu0 %v146
  %1537 = vmatpush.msra.mxu0 %v143
  %1538 = vmatpush.msra.mxu0 %v140
  %1539 = vmatpush.msra.mxu0 %v137
  %1540 = vmatpush.msra.mxu0 %v134
  %1541 = vmatpush.msra.mxu0 %v131
  %1542 = vmatpush.msra.mxu0 %v128
  %1543 = vmatpush.msra.mxu0 %v125
  %1544 = vmatpush.msra.mxu0 %v122
  %1545 = vmatpush.msra.mxu0 %v119
  %1546 = vmatmul.f32.gmra.mxu0 %v1437
  %v1547 = vpop.f32.mrf.mxu0
  %v1548 = vadd.f32 0.0, %v1547
  %1549 = vdwg.mxu0
  %1550 = vmatpush.msra.mxu0 %v165
  %1551 = vmatpush.msra.mxu0 %v162
  %1552 = vmatpush.msra.mxu0 %v159
  %1553 = vmatpush.msra.mxu0 %v156
  %1554 = vmatpush.msra.mxu0 %v153
  %1555 = vmatpush.msra.mxu0 %v150
  %1556 = vmatpush.msra.mxu0 %v147
  %1557 = vmatpush.msra.mxu0 %v144
  %1558 = vmatpush.msra.mxu0 %v141
  %1559 = vmatpush.msra.mxu0 %v138
  %1560 = vmatpush.msra.mxu0 %v135
  %1561 = vmatpush.msra.mxu0 %v132
  %1562 = vmatpush.msra.mxu0 %v129
  %1563 = vmatpush.msra.mxu0 %v126
  %1564 = vmatpush.msra.mxu0 %v123
  %1565 = vmatpush.msra.mxu0 %v120
  %1566 = vmatmul.f32.gmra.mxu0 %v1437
  %v1567 = vpop.f32.mrf.mxu0
  %v1568 = vadd.f32 0.0, %v1567
  %1569 = vdwg.mxu0
  %v1570 = vadd.f32 %v1441, %v1468
  %v1571 = vxor.u32 %v1570, 2147483648
  %v1572 = vmul.f32 %v1571, 1.442695
  %v1573 = vpow.pop %v1572
  %v1574 = vadd.f32 %v1573, 1.0
  %v1575 = vrcp.pop %v1574
  %v1576 = vmul.f32 %v1574, %v1575
  %v1577 = vsub.f32 1.0, %v1576
  %v1578 = vmul.f32 %v1575, %v1577
  %v1579 = vadd.f32 %v1575, %v1578
  %vm1580 = vweird.f32 %v1574
  %vm1581 = vweird.f32 %v1575
  %vm1582 = vmor %vm1580, %vm1581
  %v1583 = vsel %vm1582, %v1575, %v1579
  %v1584 = vand.u32 2147483647, %v1574
  %vm1585 = vcmp.eq.f32.partialorder %v1584, 8.507059e+37
  %v1586 = vand.u32 %v1574, 2147483648
  %v1587 = vor.u32 1.1754944e-38, %v1586
  %v1588 = vsel %vm1585, %v1587, %v1583
  %v1589 = vmul.f32 1.0, %v1588
  %v1590 = vadd.f32 %v1442, %v1488
  %v1591 = vxor.u32 %v1590, 2147483648
  %v1592 = vmul.f32 %v1591, 1.442695
  %v1593 = vpow.pop %v1592
  %v1594 = vadd.f32 %v1593, 1.0
  %v1595 = vrcp.pop %v1594
  %v1596 = vmul.f32 %v1594, %v1595
  %v1597 = vsub.f32 1.0, %v1596
  %v1598 = vmul.f32 %v1595, %v1597
  %v1599 = vadd.f32 %v1595, %v1598
  %vm1600 = vweird.f32 %v1594
  %vm1601 = vweird.f32 %v1595
  %vm1602 = vmor %vm1600, %vm1601
  %v1603 = vsel %vm1602, %v1595, %v1599
  %v1604 = vand.u32 2147483647, %v1594
  %vm1605 = vcmp.eq.f32.partialorder %v1604, 8.507059e+37
  %v1606 = vand.u32 %v1594, 2147483648
  %v1607 = vor.u32 1.1754944e-38, %v1606
  %v1608 = vsel %vm1605, %v1607, %v1603
  %v1609 = vmul.f32 1.0, %v1608
  %v1610 = vadd.f32 %v1508, %v347
  %v1611 = vmul.f32 %v1589, %v1610
  %v1612 = vadd.f32 %v1443, %v1611
  %v1613 = vtanh.pop %v1612
  %v1614 = vsub.f32 1.0, %v1609
  %v1615 = vmul.f32 %v1614, %v1613
  %v1616 = vmul.f32 %v1609, %v1436
  %v1617 = vadd.f32 %v1615, %v1616
  %v1618 = vadd.f32 %v1447, %v1528
  %v1619 = vxor.u32 %v1618, 2147483648
  %v1620 = vmul.f32 %v1619, 1.442695
  %v1621 = vpow.pop %v1620
  %v1622 = vadd.f32 %v1621, 1.0
  %v1623 = vrcp.pop %v1622
  %v1624 = vmul.f32 %v1622, %v1623
  %v1625 = vsub.f32 1.0, %v1624
  %v1626 = vmul.f32 %v1623, %v1625
  %v1627 = vadd.f32 %v1623, %v1626
  %vm1628 = vweird.f32 %v1622
  %vm1629 = vweird.f32 %v1623
  %vm1630 = vmor %vm1628, %vm1629
  %v1631 = vsel %vm1630, %v1623, %v1627
  %v1632 = vand.u32 2147483647, %v1622
  %vm1633 = vcmp.eq.f32.partialorder %v1632, 8.507059e+37
  %v1634 = vand.u32 %v1622, 2147483648
  %v1635 = vor.u32 1.1754944e-38, %v1634
  %v1636 = vsel %vm1633, %v1635, %v1631
  %v1637 = vmul.f32 1.0, %v1636
  %v1638 = vadd.f32 %v1448, %v1548
  %v1639 = vxor.u32 %v1638, 2147483648
  %v1640 = vmul.f32 %v1639, 1.442695
  %v1641 = vpow.pop %v1640
  %v1642 = vadd.f32 %v1641, 1.0
  %v1643 = vrcp.pop %v1642
  %v1644 = vmul.f32 %v1642, %v1643
  %v1645 = vsub.f32 1.0, %v1644
  %v1646 = vmul.f32 %v1643, %v1645
  %v1647 = vadd.f32 %v1643, %v1646
  %vm1648 = vweird.f32 %v1642
  %vm1649 = vweird.f32 %v1643
  %vm1650 = vmor %vm1648, %vm1649
  %v1651 = vsel %vm1650, %v1643, %v1647
  %v1652 = vand.u32 2147483647, %v1642
  %vm1653 = vcmp.eq.f32.partialorder %v1652, 8.507059e+37
  %v1654 = vand.u32 %v1642, 2147483648
  %v1655 = vor.u32 1.1754944e-38, %v1654
  %v1656 = vsel %vm1653, %v1655, %v1651
  %v1657 = vmul.f32 1.0, %v1656
  %v1658 = vadd.f32 %v1568, %v398
  %v1659 = vmul.f32 %v1637, %v1658
  %v1660 = vadd.f32 %v1449, %v1659
  %v1661 = vtanh.pop %v1660
  %v1662 = vsub.f32 1.0, %v1657
  %v1663 = vmul.f32 %v1662, %v1661
  %v1664 = vmul.f32 %v1657, %v1437
  %v1665 = vadd.f32 %v1663, %v1664
  %s1666 = sadd.s32 %s169, 5
  %v1667 = vstv %s1666
  %vm1668 = vcmp.gt.s32.totalorder %v68, %v1667
  %s1669 = sadd.s32 %s171, 2
  %v1670 = vstv %s1669
  %vm1671 = vcmp.gt.s32.totalorder %v68, %v1670
  %v1672 = vsel %vm1668, 1, 0
  %1673 = vset.pattern.permute.xlu0 0
  %1674 = vperm.xlu0 %1673, %v1672
  %v1675 = vpop.permute.xlu0 %1674
  %vm1676 = vcmp.eq.s32.totalorder %v1675, 1
  %v1677 = vsel %vm1676, %v1617, 0.0
  %s1678 = scalar_lea.vmem %s5, 40
  %1679 = vst [vmem:[%s1678] sm:$0xff] %v1677
  %v1680 = vsel %vm1671, 1, 0
  %1681 = vset.pattern.permute.xlu0 0
  %1682 = vperm.xlu0 %1681, %v1680
  %v1683 = vpop.permute.xlu0 %1682
  %vm1684 = vcmp.eq.s32.totalorder %v1683, 1
  %v1685 = vsel %vm1684, %v1665, 0.0
  %s1686 = scalar_lea.vmem %s59, 16
  %1687 = vst [vmem:[%s1686] sm:$0xff] %v1685
  %v1688 = vsel %vm1676, %v1617, %v1436
  %v1689 = vsel %vm1684, %v1665, %v1437
  %s1690 = scalar_lea.vmem %s1, 72
  %v1691 = vld [vmem:[%s1690] sm:$0xff]
  %v1692 = vld [vmem:[%s1690 + $0x8] sm:$0xf]
  %v1693 = vunpack.c.l.bf16 %v1691
  %v1694 = vunpack.c.h.bf16 %v1691
  %v1695 = vunpack.c.l.bf16 %v1692
  %s1696 = scalar_lea.vmem %s51, 12
  %v1697 = vld [vmem:[%s1696] sm:$0xff]
  %v1698 = vld [vmem:[%s1696 + $0x8] sm:$0xf]
  %v1699 = vunpack.c.l.bf16 %v1697
  %v1700 = vunpack.c.h.bf16 %v1697
  %v1701 = vunpack.c.l.bf16 %v1698
  %1702 = vmatpush.msra.mxu0 %v114
  %1703 = vmatpush.msra.mxu0 %v111
  %1704 = vmatpush.msra.mxu0 %v108
  %1705 = vmatpush.msra.mxu0 %v105
  %1706 = vmatpush.msra.mxu0 %v102
  %1707 = vmatpush.msra.mxu0 %v99
  %1708 = vmatpush.msra.mxu0 %v96
  %1709 = vmatpush.msra.mxu0 %v93
  %1710 = vmatpush.msra.mxu0 %v90
  %1711 = vmatpush.msra.mxu0 %v87
  %1712 = vmatpush.msra.mxu0 %v84
  %1713 = vmatpush.msra.mxu0 %v81
  %1714 = vmatpush.msra.mxu0 %v78
  %1715 = vmatpush.msra.mxu0 %v75
  %1716 = vmatpush.msra.mxu0 %v72
  %1717 = vmatpush.msra.mxu0 %v69
  %1718 = vmatmul.f32.gmra.mxu0 %v1688
  %v1719 = vpop.f32.mrf.mxu0
  %v1720 = vadd.f32 0.0, %v1719
  %1721 = vdwg.mxu0
  %1722 = vmatpush.msra.mxu0 %v115
  %1723 = vmatpush.msra.mxu0 %v112
  %1724 = vmatpush.msra.mxu0 %v109
  %1725 = vmatpush.msra.mxu0 %v106
  %1726 = vmatpush.msra.mxu0 %v103
  %1727 = vmatpush.msra.mxu0 %v100
  %1728 = vmatpush.msra.mxu0 %v97
  %1729 = vmatpush.msra.mxu0 %v94
  %1730 = vmatpush.msra.mxu0 %v91
  %1731 = vmatpush.msra.mxu0 %v88
  %1732 = vmatpush.msra.mxu0 %v85
  %1733 = vmatpush.msra.mxu0 %v82
  %1734 = vmatpush.msra.mxu0 %v79
  %1735 = vmatpush.msra.mxu0 %v76
  %1736 = vmatpush.msra.mxu0 %v73
  %1737 = vmatpush.msra.mxu0 %v70
  %1738 = vmatmul.f32.gmra.mxu0 %v1688
  %v1739 = vpop.f32.mrf.mxu0
  %v1740 = vadd.f32 0.0, %v1739
  %1741 = vdwg.mxu0
  %1742 = vmatpush.msra.mxu0 %v116
  %1743 = vmatpush.msra.mxu0 %v113
  %1744 = vmatpush.msra.mxu0 %v110
  %1745 = vmatpush.msra.mxu0 %v107
  %1746 = vmatpush.msra.mxu0 %v104
  %1747 = vmatpush.msra.mxu0 %v101
  %1748 = vmatpush.msra.mxu0 %v98
  %1749 = vmatpush.msra.mxu0 %v95
  %1750 = vmatpush.msra.mxu0 %v92
  %1751 = vmatpush.msra.mxu0 %v89
  %1752 = vmatpush.msra.mxu0 %v86
  %1753 = vmatpush.msra.mxu0 %v83
  %1754 = vmatpush.msra.mxu0 %v80
  %1755 = vmatpush.msra.mxu0 %v77
  %1756 = vmatpush.msra.mxu0 %v74
  %1757 = vmatpush.msra.mxu0 %v71
  %1758 = vmatmul.f32.gmra.mxu0 %v1688
  %v1759 = vpop.f32.mrf.mxu0
  %v1760 = vadd.f32 0.0, %v1759
  %1761 = vdwg.mxu0
  %1762 = vmatpush.msra.mxu0 %v163
  %1763 = vmatpush.msra.mxu0 %v160
  %1764 = vmatpush.msra.mxu0 %v157
  %1765 = vmatpush.msra.mxu0 %v154
  %1766 = vmatpush.msra.mxu0 %v151
  %1767 = vmatpush.msra.mxu0 %v148
  %1768 = vmatpush.msra.mxu0 %v145
  %1769 = vmatpush.msra.mxu0 %v142
  %1770 = vmatpush.msra.mxu0 %v139
  %1771 = vmatpush.msra.mxu0 %v136
  %1772 = vmatpush.msra.mxu0 %v133
  %1773 = vmatpush.msra.mxu0 %v130
  %1774 = vmatpush.msra.mxu0 %v127
  %1775 = vmatpush.msra.mxu0 %v124
  %1776 = vmatpush.msra.mxu0 %v121
  %1777 = vmatpush.msra.mxu0 %v118
  %1778 = vmatmul.f32.gmra.mxu0 %v1689
  %v1779 = vpop.f32.mrf.mxu0
  %v1780 = vadd.f32 0.0, %v1779
  %1781 = vdwg.mxu0
  %1782 = vmatpush.msra.mxu0 %v164
  %1783 = vmatpush.msra.mxu0 %v161
  %1784 = vmatpush.msra.mxu0 %v158
  %1785 = vmatpush.msra.mxu0 %v155
  %1786 = vmatpush.msra.mxu0 %v152
  %1787 = vmatpush.msra.mxu0 %v149
  %1788 = vmatpush.msra.mxu0 %v146
  %1789 = vmatpush.msra.mxu0 %v143
  %1790 = vmatpush.msra.mxu0 %v140
  %1791 = vmatpush.msra.mxu0 %v137
  %1792 = vmatpush.msra.mxu0 %v134
  %1793 = vmatpush.msra.mxu0 %v131
  %1794 = vmatpush.msra.mxu0 %v128
  %1795 = vmatpush.msra.mxu0 %v125
  %1796 = vmatpush.msra.mxu0 %v122
  %1797 = vmatpush.msra.mxu0 %v119
  %1798 = vmatmul.f32.gmra.mxu0 %v1689
  %v1799 = vpop.f32.mrf.mxu0
  %v1800 = vadd.f32 0.0, %v1799
  %1801 = vdwg.mxu0
  %1802 = vmatpush.msra.mxu0 %v165
  %1803 = vmatpush.msra.mxu0 %v162
  %1804 = vmatpush.msra.mxu0 %v159
  %1805 = vmatpush.msra.mxu0 %v156
  %1806 = vmatpush.msra.mxu0 %v153
  %1807 = vmatpush.msra.mxu0 %v150
  %1808 = vmatpush.msra.mxu0 %v147
  %1809 = vmatpush.msra.mxu0 %v144
  %1810 = vmatpush.msra.mxu0 %v141
  %1811 = vmatpush.msra.mxu0 %v138
  %1812 = vmatpush.msra.mxu0 %v135
  %1813 = vmatpush.msra.mxu0 %v132
  %1814 = vmatpush.msra.mxu0 %v129
  %1815 = vmatpush.msra.mxu0 %v126
  %1816 = vmatpush.msra.mxu0 %v123
  %1817 = vmatpush.msra.mxu0 %v120
  %1818 = vmatmul.f32.gmra.mxu0 %v1689
  %v1819 = vpop.f32.mrf.mxu0
  %v1820 = vadd.f32 0.0, %v1819
  %1821 = vdwg.mxu0
  %v1822 = vadd.f32 %v1693, %v1720
  %v1823 = vxor.u32 %v1822, 2147483648
  %v1824 = vmul.f32 %v1823, 1.442695
  %v1825 = vpow.pop %v1824
  %v1826 = vadd.f32 %v1825, 1.0
  %v1827 = vrcp.pop %v1826
  %v1828 = vmul.f32 %v1826, %v1827
  %v1829 = vsub.f32 1.0, %v1828
  %v1830 = vmul.f32 %v1827, %v1829
  %v1831 = vadd.f32 %v1827, %v1830
  %vm1832 = vweird.f32 %v1826
  %vm1833 = vweird.f32 %v1827
  %vm1834 = vmor %vm1832, %vm1833
  %v1835 = vsel %vm1834, %v1827, %v1831
  %v1836 = vand.u32 2147483647, %v1826
  %vm1837 = vcmp.eq.f32.partialorder %v1836, 8.507059e+37
  %v1838 = vand.u32 %v1826, 2147483648
  %v1839 = vor.u32 1.1754944e-38, %v1838
  %v1840 = vsel %vm1837, %v1839, %v1835
  %v1841 = vmul.f32 1.0, %v1840
  %v1842 = vadd.f32 %v1694, %v1740
  %v1843 = vxor.u32 %v1842, 2147483648
  %v1844 = vmul.f32 %v1843, 1.442695
  %v1845 = vpow.pop %v1844
  %v1846 = vadd.f32 %v1845, 1.0
  %v1847 = vrcp.pop %v1846
  %v1848 = vmul.f32 %v1846, %v1847
  %v1849 = vsub.f32 1.0, %v1848
  %v1850 = vmul.f32 %v1847, %v1849
  %v1851 = vadd.f32 %v1847, %v1850
  %vm1852 = vweird.f32 %v1846
  %vm1853 = vweird.f32 %v1847
  %vm1854 = vmor %vm1852, %vm1853
  %v1855 = vsel %vm1854, %v1847, %v1851
  %v1856 = vand.u32 2147483647, %v1846
  %vm1857 = vcmp.eq.f32.partialorder %v1856, 8.507059e+37
  %v1858 = vand.u32 %v1846, 2147483648
  %v1859 = vor.u32 1.1754944e-38, %v1858
  %v1860 = vsel %vm1857, %v1859, %v1855
  %v1861 = vmul.f32 1.0, %v1860
  %v1862 = vadd.f32 %v1760, %v347
  %v1863 = vmul.f32 %v1841, %v1862
  %v1864 = vadd.f32 %v1695, %v1863
  %v1865 = vtanh.pop %v1864
  %v1866 = vsub.f32 1.0, %v1861
  %v1867 = vmul.f32 %v1866, %v1865
  %v1868 = vmul.f32 %v1861, %v1688
  %v1869 = vadd.f32 %v1867, %v1868
  %v1870 = vadd.f32 %v1699, %v1780
  %v1871 = vxor.u32 %v1870, 2147483648
  %v1872 = vmul.f32 %v1871, 1.442695
  %v1873 = vpow.pop %v1872
  %v1874 = vadd.f32 %v1873, 1.0
  %v1875 = vrcp.pop %v1874
  %v1876 = vmul.f32 %v1874, %v1875
  %v1877 = vsub.f32 1.0, %v1876
  %v1878 = vmul.f32 %v1875, %v1877
  %v1879 = vadd.f32 %v1875, %v1878
  %vm1880 = vweird.f32 %v1874
  %vm1881 = vweird.f32 %v1875
  %vm1882 = vmor %vm1880, %vm1881
  %v1883 = vsel %vm1882, %v1875, %v1879
  %v1884 = vand.u32 2147483647, %v1874
  %vm1885 = vcmp.eq.f32.partialorder %v1884, 8.507059e+37
  %v1886 = vand.u32 %v1874, 2147483648
  %v1887 = vor.u32 1.1754944e-38, %v1886
  %v1888 = vsel %vm1885, %v1887, %v1883
  %v1889 = vmul.f32 1.0, %v1888
  %v1890 = vadd.f32 %v1700, %v1800
  %v1891 = vxor.u32 %v1890, 2147483648
  %v1892 = vmul.f32 %v1891, 1.442695
  %v1893 = vpow.pop %v1892
  %v1894 = vadd.f32 %v1893, 1.0
  %v1895 = vrcp.pop %v1894
  %v1896 = vmul.f32 %v1894, %v1895
  %v1897 = vsub.f32 1.0, %v1896
  %v1898 = vmul.f32 %v1895, %v1897
  %v1899 = vadd.f32 %v1895, %v1898
  %vm1900 = vweird.f32 %v1894
  %vm1901 = vweird.f32 %v1895
  %vm1902 = vmor %vm1900, %vm1901
  %v1903 = vsel %vm1902, %v1895, %v1899
  %v1904 = vand.u32 2147483647, %v1894
  %vm1905 = vcmp.eq.f32.partialorder %v1904, 8.507059e+37
  %v1906 = vand.u32 %v1894, 2147483648
  %v1907 = vor.u32 1.1754944e-38, %v1906
  %v1908 = vsel %vm1905, %v1907, %v1903
  %v1909 = vmul.f32 1.0, %v1908
  %v1910 = vadd.f32 %v1820, %v398
  %v1911 = vmul.f32 %v1889, %v1910
  %v1912 = vadd.f32 %v1701, %v1911
  %v1913 = vtanh.pop %v1912
  %v1914 = vsub.f32 1.0, %v1909
  %v1915 = vmul.f32 %v1914, %v1913
  %v1916 = vmul.f32 %v1909, %v1689
  %v1917 = vadd.f32 %v1915, %v1916
  %s1918 = sadd.s32 %s169, 6
  %v1919 = vstv %s1918
  %vm1920 = vcmp.gt.s32.totalorder %v68, %v1919
  %s1921 = sadd.s32 %s171, 1
  %v1922 = vstv %s1921
  %vm1923 = vcmp.gt.s32.totalorder %v68, %v1922
  %v1924 = vsel %vm1920, 1, 0
  %1925 = vset.pattern.permute.xlu0 0
  %1926 = vperm.xlu0 %1925, %v1924
  %v1927 = vpop.permute.xlu0 %1926
  %vm1928 = vcmp.eq.s32.totalorder %v1927, 1
  %v1929 = vsel %vm1928, %v1869, 0.0
  %s1930 = scalar_lea.vmem %s5, 48
  %1931 = vst [vmem:[%s1930] sm:$0xff] %v1929
  %v1932 = vsel %vm1923, 1, 0
  %1933 = vset.pattern.permute.xlu0 0
  %1934 = vperm.xlu0 %1933, %v1932
  %v1935 = vpop.permute.xlu0 %1934
  %vm1936 = vcmp.eq.s32.totalorder %v1935, 1
  %v1937 = vsel %vm1936, %v1917, 0.0
  %s1938 = scalar_lea.vmem %s59, 8
  %1939 = vst [vmem:[%s1938] sm:$0xff] %v1937
  %v1940 = vsel %vm1928, %v1869, %v1688
  %v1941 = vsel %vm1936, %v1917, %v1689
  %s1942 = scalar_lea.vmem %s1, 84
  %v1943 = vld [vmem:[%s1942] sm:$0xff]
  %v1944 = vld [vmem:[%s1942 + $0x8] sm:$0xf]
  %v1945 = vunpack.c.l.bf16 %v1943
  %v1946 = vunpack.c.h.bf16 %v1943
  %v1947 = vunpack.c.l.bf16 %v1944
  %v1948 = vld [vmem:[%s51] sm:$0xff]
  %v1949 = vld [vmem:[%s51 + $0x8] sm:$0xf]
  %v1950 = vunpack.c.l.bf16 %v1948
  %v1951 = vunpack.c.h.bf16 %v1948
  %v1952 = vunpack.c.l.bf16 %v1949
  %1953 = vmatpush.msra.mxu0 %v114
  %1954 = vmatpush.msra.mxu0 %v111
  %1955 = vmatpush.msra.mxu0 %v108
  %1956 = vmatpush.msra.mxu0 %v105
  %1957 = vmatpush.msra.mxu0 %v102
  %1958 = vmatpush.msra.mxu0 %v99
  %1959 = vmatpush.msra.mxu0 %v96
  %1960 = vmatpush.msra.mxu0 %v93
  %1961 = vmatpush.msra.mxu0 %v90
  %1962 = vmatpush.msra.mxu0 %v87
  %1963 = vmatpush.msra.mxu0 %v84
  %1964 = vmatpush.msra.mxu0 %v81
  %1965 = vmatpush.msra.mxu0 %v78
  %1966 = vmatpush.msra.mxu0 %v75
  %1967 = vmatpush.msra.mxu0 %v72
  %1968 = vmatpush.msra.mxu0 %v69
  %1969 = vmatmul.f32.gmra.mxu0 %v1940
  %v1970 = vpop.f32.mrf.mxu0
  %v1971 = vadd.f32 0.0, %v1970
  %1972 = vdwg.mxu0
  %1973 = vmatpush.msra.mxu0 %v115
  %1974 = vmatpush.msra.mxu0 %v112
  %1975 = vmatpush.msra.mxu0 %v109
  %1976 = vmatpush.msra.mxu0 %v106
  %1977 = vmatpush.msra.mxu0 %v103
  %1978 = vmatpush.msra.mxu0 %v100
  %1979 = vmatpush.msra.mxu0 %v97
  %1980 = vmatpush.msra.mxu0 %v94
  %1981 = vmatpush.msra.mxu0 %v91
  %1982 = vmatpush.msra.mxu0 %v88
  %1983 = vmatpush.msra.mxu0 %v85
  %1984 = vmatpush.msra.mxu0 %v82
  %1985 = vmatpush.msra.mxu0 %v79
  %1986 = vmatpush.msra.mxu0 %v76
  %1987 = vmatpush.msra.mxu0 %v73
  %1988 = vmatpush.msra.mxu0 %v70
  %1989 = vmatmul.f32.gmra.mxu0 %v1940
  %v1990 = vpop.f32.mrf.mxu0
  %v1991 = vadd.f32 0.0, %v1990
  %1992 = vdwg.mxu0
  %1993 = vmatpush.msra.mxu0 %v116
  %1994 = vmatpush.msra.mxu0 %v113
  %1995 = vmatpush.msra.mxu0 %v110
  %1996 = vmatpush.msra.mxu0 %v107
  %1997 = vmatpush.msra.mxu0 %v104
  %1998 = vmatpush.msra.mxu0 %v101
  %1999 = vmatpush.msra.mxu0 %v98
  %2000 = vmatpush.msra.mxu0 %v95
  %2001 = vmatpush.msra.mxu0 %v92
  %2002 = vmatpush.msra.mxu0 %v89
  %2003 = vmatpush.msra.mxu0 %v86
  %2004 = vmatpush.msra.mxu0 %v83
  %2005 = vmatpush.msra.mxu0 %v80
  %2006 = vmatpush.msra.mxu0 %v77
  %2007 = vmatpush.msra.mxu0 %v74
  %2008 = vmatpush.msra.mxu0 %v71
  %2009 = vmatmul.f32.gmra.mxu0 %v1940
  %v2010 = vpop.f32.mrf.mxu0
  %v2011 = vadd.f32 0.0, %v2010
  %2012 = vdwg.mxu0
  %2013 = vmatpush.msra.mxu0 %v163
  %2014 = vmatpush.msra.mxu0 %v160
  %2015 = vmatpush.msra.mxu0 %v157
  %2016 = vmatpush.msra.mxu0 %v154
  %2017 = vmatpush.msra.mxu0 %v151
  %2018 = vmatpush.msra.mxu0 %v148
  %2019 = vmatpush.msra.mxu0 %v145
  %2020 = vmatpush.msra.mxu0 %v142
  %2021 = vmatpush.msra.mxu0 %v139
  %2022 = vmatpush.msra.mxu0 %v136
  %2023 = vmatpush.msra.mxu0 %v133
  %2024 = vmatpush.msra.mxu0 %v130
  %2025 = vmatpush.msra.mxu0 %v127
  %2026 = vmatpush.msra.mxu0 %v124
  %2027 = vmatpush.msra.mxu0 %v121
  %2028 = vmatpush.msra.mxu0 %v118
  %2029 = vmatmul.f32.gmra.mxu0 %v1941
  %v2030 = vpop.f32.mrf.mxu0
  %v2031 = vadd.f32 0.0, %v2030
  %2032 = vdwg.mxu0
  %2033 = vmatpush.msra.mxu0 %v164
  %2034 = vmatpush.msra.mxu0 %v161
  %2035 = vmatpush.msra.mxu0 %v158
  %2036 = vmatpush.msra.mxu0 %v155
  %2037 = vmatpush.msra.mxu0 %v152
  %2038 = vmatpush.msra.mxu0 %v149
  %2039 = vmatpush.msra.mxu0 %v146
  %2040 = vmatpush.msra.mxu0 %v143
  %2041 = vmatpush.msra.mxu0 %v140
  %2042 = vmatpush.msra.mxu0 %v137
  %2043 = vmatpush.msra.mxu0 %v134
  %2044 = vmatpush.msra.mxu0 %v131
  %2045 = vmatpush.msra.mxu0 %v128
  %2046 = vmatpush.msra.mxu0 %v125
  %2047 = vmatpush.msra.mxu0 %v122
  %2048 = vmatpush.msra.mxu0 %v119
  %2049 = vmatmul.f32.gmra.mxu0 %v1941
  %v2050 = vpop.f32.mrf.mxu0
  %v2051 = vadd.f32 0.0, %v2050
  %2052 = vdwg.mxu0
  %2053 = vmatpush.msra.mxu0 %v165
  %2054 = vmatpush.msra.mxu0 %v162
  %2055 = vmatpush.msra.mxu0 %v159
  %2056 = vmatpush.msra.mxu0 %v156
  %2057 = vmatpush.msra.mxu0 %v153
  %2058 = vmatpush.msra.mxu0 %v150
  %2059 = vmatpush.msra.mxu0 %v147
  %2060 = vmatpush.msra.mxu0 %v144
  %2061 = vmatpush.msra.mxu0 %v141
  %2062 = vmatpush.msra.mxu0 %v138
  %2063 = vmatpush.msra.mxu0 %v135
  %2064 = vmatpush.msra.mxu0 %v132
  %2065 = vmatpush.msra.mxu0 %v129
  %2066 = vmatpush.msra.mxu0 %v126
  %2067 = vmatpush.msra.mxu0 %v123
  %2068 = vmatpush.msra.mxu0 %v120
  %2069 = vmatmul.f32.gmra.mxu0 %v1941
  %v2070 = vpop.f32.mrf.mxu0
  %v2071 = vadd.f32 0.0, %v2070
  %2072 = vdwg.mxu0
  %v2073 = vadd.f32 %v1945, %v1971
  %v2074 = vxor.u32 %v2073, 2147483648
  %v2075 = vmul.f32 %v2074, 1.442695
  %v2076 = vpow.pop %v2075
  %v2077 = vadd.f32 %v2076, 1.0
  %v2078 = vrcp.pop %v2077
  %v2079 = vmul.f32 %v2077, %v2078
  %v2080 = vsub.f32 1.0, %v2079
  %v2081 = vmul.f32 %v2078, %v2080
  %v2082 = vadd.f32 %v2078, %v2081
  %vm2083 = vweird.f32 %v2077
  %vm2084 = vweird.f32 %v2078
  %vm2085 = vmor %vm2083, %vm2084
  %v2086 = vsel %vm2085, %v2078, %v2082
  %v2087 = vand.u32 2147483647, %v2077
  %vm2088 = vcmp.eq.f32.partialorder %v2087, 8.507059e+37
  %v2089 = vand.u32 %v2077, 2147483648
  %v2090 = vor.u32 1.1754944e-38, %v2089
  %v2091 = vsel %vm2088, %v2090, %v2086
  %v2092 = vmul.f32 1.0, %v2091
  %v2093 = vadd.f32 %v1946, %v1991
  %v2094 = vxor.u32 %v2093, 2147483648
  %v2095 = vmul.f32 %v2094, 1.442695
  %v2096 = vpow.pop %v2095
  %v2097 = vadd.f32 %v2096, 1.0
  %v2098 = vrcp.pop %v2097
  %v2099 = vmul.f32 %v2097, %v2098
  %v2100 = vsub.f32 1.0, %v2099
  %v2101 = vmul.f32 %v2098, %v2100
  %v2102 = vadd.f32 %v2098, %v2101
  %vm2103 = vweird.f32 %v2097
  %vm2104 = vweird.f32 %v2098
  %vm2105 = vmor %vm2103, %vm2104
  %v2106 = vsel %vm2105, %v2098, %v2102
  %v2107 = vand.u32 2147483647, %v2097
  %vm2108 = vcmp.eq.f32.partialorder %v2107, 8.507059e+37
  %v2109 = vand.u32 %v2097, 2147483648
  %v2110 = vor.u32 1.1754944e-38, %v2109
  %v2111 = vsel %vm2108, %v2110, %v2106
  %v2112 = vmul.f32 1.0, %v2111
  %v2113 = vadd.f32 %v2011, %v347
  %v2114 = vmul.f32 %v2092, %v2113
  %v2115 = vadd.f32 %v1947, %v2114
  %v2116 = vtanh.pop %v2115
  %v2117 = vsub.f32 1.0, %v2112
  %v2118 = vmul.f32 %v2117, %v2116
  %v2119 = vmul.f32 %v2112, %v1940
  %v2120 = vadd.f32 %v2118, %v2119
  %v2121 = vadd.f32 %v1950, %v2031
  %v2122 = vxor.u32 %v2121, 2147483648
  %v2123 = vmul.f32 %v2122, 1.442695
  %v2124 = vpow.pop %v2123
  %v2125 = vadd.f32 %v2124, 1.0
  %v2126 = vrcp.pop %v2125
  %v2127 = vmul.f32 %v2125, %v2126
  %v2128 = vsub.f32 1.0, %v2127
  %v2129 = vmul.f32 %v2126, %v2128
  %v2130 = vadd.f32 %v2126, %v2129
  %vm2131 = vweird.f32 %v2125
  %vm2132 = vweird.f32 %v2126
  %vm2133 = vmor %vm2131, %vm2132
  %v2134 = vsel %vm2133, %v2126, %v2130
  %v2135 = vand.u32 2147483647, %v2125
  %vm2136 = vcmp.eq.f32.partialorder %v2135, 8.507059e+37
  %v2137 = vand.u32 %v2125, 2147483648
  %v2138 = vor.u32 1.1754944e-38, %v2137
  %v2139 = vsel %vm2136, %v2138, %v2134
  %v2140 = vmul.f32 1.0, %v2139
  %v2141 = vadd.f32 %v1951, %v2051
  %v2142 = vxor.u32 %v2141, 2147483648
  %v2143 = vmul.f32 %v2142, 1.442695
  %v2144 = vpow.pop %v2143
  %v2145 = vadd.f32 %v2144, 1.0
  %v2146 = vrcp.pop %v2145
  %v2147 = vmul.f32 %v2145, %v2146
  %v2148 = vsub.f32 1.0, %v2147
  %v2149 = vmul.f32 %v2146, %v2148
  %v2150 = vadd.f32 %v2146, %v2149
  %vm2151 = vweird.f32 %v2145
  %vm2152 = vweird.f32 %v2146
  %vm2153 = vmor %vm2151, %vm2152
  %v2154 = vsel %vm2153, %v2146, %v2150
  %v2155 = vand.u32 2147483647, %v2145
  %vm2156 = vcmp.eq.f32.partialorder %v2155, 8.507059e+37
  %v2157 = vand.u32 %v2145, 2147483648
  %v2158 = vor.u32 1.1754944e-38, %v2157
  %v2159 = vsel %vm2156, %v2158, %v2154
  %v2160 = vmul.f32 1.0, %v2159
  %v2161 = vadd.f32 %v2071, %v398
  %v2162 = vmul.f32 %v2140, %v2161
  %v2163 = vadd.f32 %v1952, %v2162
  %v2164 = vtanh.pop %v2163
  %v2165 = vsub.f32 1.0, %v2160
  %v2166 = vmul.f32 %v2165, %v2164
  %v2167 = vmul.f32 %v2160, %v1941
  %v2168 = vadd.f32 %v2166, %v2167
  %s2169 = sadd.s32 %s169, 7
  %v2170 = vstv %s2169
  %vm2171 = vcmp.gt.s32.totalorder %v68, %v2170
  %v2172 = vstv %s171
  %vm2173 = vcmp.gt.s32.totalorder %v68, %v2172
  %v2174 = vsel %vm2171, 1, 0
  %2175 = vset.pattern.permute.xlu0 0
  %2176 = vperm.xlu0 %2175, %v2174
  %v2177 = vpop.permute.xlu0 %2176
  %vm2178 = vcmp.eq.s32.totalorder %v2177, 1
  %v2179 = vsel %vm2178, %v2120, 0.0
  %s2180 = scalar_lea.vmem %s5, 56
  %2181 = vst [vmem:[%s2180] sm:$0xff] %v2179
  %v2182 = vsel %vm2173, 1, 0
  %2183 = vset.pattern.permute.xlu0 0
  %2184 = vperm.xlu0 %2183, %v2182
  %v2185 = vpop.permute.xlu0 %2184
  %vm2186 = vcmp.eq.s32.totalorder %v2185, 1
  %v2187 = vsel %vm2186, %v2168, 0.0
  %2188 = vst [vmem:[%s59] sm:$0xff] %v2187
  %v2189 = vsel %vm2178, %v2120, %v1940
  %v2190 = vsel %vm2186, %v2168, %v1941
  %2191 = vst [vmem:[#allocation2] sm:$0xff] %v2189
  %2192 = vst [vmem:[%s173] sm:$0xff] %v2190
  %2193 = vst [vmem:[%s7] sm:$0xff] %v2189
  %s2194 = scalar_lea.vmem %s7, 8
  %2195 = vst [vmem:[%s2194] sm:$0xff] %v2190
  %s2196 = ssub.s32 0, 0
  %s2197 = smul.u32 8, %s2196
  %p2198 = scmp.lt.s32.totalorder %s2197, 7
  %s2199 = scalar_select %p2198, %s2197, 7
  %s2200 = smul.addr %s2199, 8
  %s2201 = scalar_lea.vmem %s6, %s2200
  // Predicated region
  $region26: #{encoder_forward.2} parent=0 // pred_check
    _
  $region27: #{encoder_forward.2} parent=0 // pred_check_branch
    %2203 = sbr.rel (0) target = $region29
  $region28: #{encoder_forward.2} parent=0 // pred_region
    _
  $region29: #{encoder_forward.2} parent=0 // pred_fallthru
    _
  // Predicated region
  $region30: #{encoder_forward.2} parent=0 // pred_check
    _
  $region31: #{encoder_forward.2} parent=0 // pred_check_branch
    %2205 = sbr.rel (0) target = $region33
  $region32: #{encoder_forward.2} parent=0 // pred_region
    %s2206 = ssub.s32 0, 0
    %s2207 = smul.u32 8, %s2206
  $region33: #{encoder_forward.2} parent=0 // pred_fallthru
    _
  // Predicated region
  $region34: #{encoder_forward.2} parent=0 // pred_check
    _
  $region35: #{encoder_forward.2} parent=0 // pred_check_branch
    %2209 = sbr.rel (0) target = $region37
  $region36: #{encoder_forward.2} parent=0 // pred_region
    _
  $region37: #{encoder_forward.2} parent=0 // pred_fallthru
    _
  // Predicated region
  $region38: #{encoder_forward.2} parent=0 // pred_check
    _
  $region39: #{encoder_forward.2} parent=0 // pred_check_branch
    %2211 = sbr.rel (0) target = $region41
  $region40: #{encoder_forward.2} parent=0 // pred_region
    _
  $region41: #{encoder_forward.2} parent=0 // pred_fallthru
    _
  // Predicated region
  $region42: #{encoder_forward.2} parent=0 // pred_check
    _
  $region43: #{encoder_forward.2} parent=0 // pred_check_branch
    %2213 = sbr.rel (0) target = $region45
  $region44: #{encoder_forward.2} parent=0 // pred_region
    %s2214 = ssub.s32 0, 0
    %s2215 = smul.u32 8, %s2214
    %p2216 = scmp.lt.s32.totalorder %s2215, 7
    %s2217 = scalar_select %p2216, %s2215, 7
    %s2218 = smul.addr %s2217, 8
    %s2219 = scalar_lea.vmem %s6, %s2218
  $region45: #{encoder_forward.2} parent=0 // pred_fallthru
    _
  // Predicated region
  $region46: #{encoder_forward.2} parent=0 // pred_check
    _
  $region47: #{encoder_forward.2} parent=0 // pred_check_branch
    %2221 = sbr.rel (0) target = $region49
  $region48: #{encoder_forward.2} parent=0 // pred_region
    _
  $region49: #{encoder_forward.2} parent=0 // pred_fallthru
    _

</llo_original>
